<compile_context>
chip_gen: v5e
topology: v5e:2x2
jax: 0.10.0
libtpu: 0.0.40
codegen_flags: <defaults>
</compile_context>

<pallas_src>
import functools

import jax
import jax.numpy as jnp
from jax.experimental import pallas as pl
from jax.experimental.pallas import tpu as pltpu


# ----------------------------- hyperparameters ------------------------------
NUM_USERS = 32
NUM_ITEMS = 64
EMBED_K = 32
BATCH = 32          # number of (user, pos_item) pairs per forward call
B_BLK = 16          # pairs per grid block (batch-parallel grid axis)
NEG_NUM = 4         # negatives per pair
NBR_NUM = 8         # item-item neighbors per item

W1 = 1e-6
W2 = 1.0
W3 = 1e-6
W4 = 1.0
NEGATIVE_WEIGHT = 10.0
GAMMA = 1e-4
LM = 2.5
INITIAL_WEIGHT = 0.1  # std of embedding init


def _softplus(x):
    # numerically stable softplus = log(1 + exp(x))
    return jnp.maximum(x, 0.0) + jnp.log1p(jnp.exp(-jnp.abs(x)))


def ultragcn_loss_kernel(
    idx_ref,    # (B_BLK, 2+N) int32  columns: [user, pos_item, neg_0..neg_{N-1}]
    gu_ref,     # (U, K+1)     f32    [Gu | beta_uD]
    gi_ref,     # (I, K+1)     f32    [Gi | beta_iD]
    ii_ref,     # (I, 2*Nn)    f32    cols [0:Nn]=ii_constraint, [Nn:2Nn]=ii_neighbor ids (as f32)
    out_ref,    # (1, 1, 1)    f32    partial loss for this batch block
    *,
    num_users, num_items, embed_k, neg_num, nbr_num,
    w1, w2, w3, w4, negative_weight, gamma, lm,
):
    f32 = jnp.float32
    HIGH = jax.lax.Precision.HIGHEST   # exact one-hot gathers only
    Bb = idx_ref.shape[0]
    U, I, K = num_users, num_items, embed_k
    N, Nn = neg_num, nbr_num
    S = 1 + N + Nn                     # pos + negs + neighbors per pair
    S_pad = -(-S // 8) * 8             # sublane-aligned stacked width

    # -------- unpack the packed index slab (static ref slices) --------
    users = idx_ref[:, 0:1]            # (Bb, 1) int32
    pos = idx_ref[:, 1:2]              # (Bb, 1) int32
    neg = idx_ref[:, 2:2 + N]          # (Bb, N) int32

    gu_ext = gu_ref[...]               # (U, K+1)
    gi_ext = gi_ref[...]               # (I, K+1)

    # -------- user gather (+ beta_uD column) : one exact MXU one-hot matmul ----
    users_oh = (jax.lax.broadcasted_iota(jnp.int32, (Bb, U), 1) == users).astype(f32)
    u_gather = jax.lax.dot_general(
        users_oh, gu_ext, (((1,), (0,)), ((), ())),
        precision=HIGH, preferred_element_type=f32)          # (Bb, K+1)
    u_emb = u_gather[:, 0:K]                                 # (Bb, K)
    bu = u_gather[:, K:K + 1]                                # (Bb, 1)

    # -------- pos-item gather of [sim | neighbor ids] in ONE exact matmul ------
    pos_oh = (jax.lax.broadcasted_iota(jnp.int32, (Bb, I), 1) == pos).astype(f32)
    ii_g = jax.lax.dot_general(
        pos_oh, ii_ref[...], (((1,), (0,)), ((), ())),
        precision=HIGH, preferred_element_type=f32)          # (Bb, 2*Nn)
    sim = ii_g[:, 0:Nn]                                      # (Bb, Nn)
    # Exactness guard: ids are small non-negative integers (< 2**24) gathered at
    # HIGHEST precision, so they are recovered exactly; round-half-up then truncate.
    nbr_idx = (ii_g[:, Nn:2 * Nn] + 0.5).astype(jnp.int32)   # (Bb, Nn)

    # -------- stacked item gather: [pos | neg | neighbors] in ONE MXU matmul ---
    parts = [pos, neg, nbr_idx]
    if S_pad > S:
        parts.append(jnp.zeros((Bb, S_pad - S), jnp.int32))  # dummy rows (sliced off)
    item_idx = jnp.concatenate(parts, axis=1)                # (Bb, S_pad) int32
    stacked_oh = (jax.lax.broadcasted_iota(jnp.int32, (Bb, S_pad, I), 2)
                  == item_idx[:, :, None]).astype(f32)       # (Bb, S_pad, I)
    item_g = jax.lax.dot_general(
        stacked_oh.reshape(Bb * S_pad, I), gi_ext, (((1,), (0,)), ((), ())),
        precision=HIGH, preferred_element_type=f32)          # (Bb*S_pad, K+1)
    item_g = item_g.reshape(Bb, S_pad, K + 1)

    # -------- per-row scores: u . gi[item] over K (plain f32 VPU math) ---------
    scores = jnp.sum(u_emb[:, None, :] * item_g[:, 0:S, 0:K], axis=-1)   # (Bb, S)
    pos_scores = scores[:, 0:1]                              # (Bb, 1)
    neg_scores = scores[:, 1:1 + N]                          # (Bb, N)
    nbr_scores = scores[:, 1 + N:S]                          # (Bb, Nn)

    # beta_iD falls out of the gather as column K.
    bip = item_g[:, 0:1, K]                                  # (Bb, 1)
    bin_ = item_g[:, 1:1 + N, K]                             # (Bb, N)

    # -------- get_omegas --------
    if w2 > 0:
        pos_weight = w1 + w2 * (bu * bip)
    else:
        pos_weight = jnp.full_like(bip, w1)
    if w4 > 0:
        neg_weight = w3 + w4 * (bu * bin_)
    else:
        neg_weight = jnp.full_like(bin_, w3)

    # -------- cal_loss_l (BCE-with-logits, targets 1 / 0) --------
    pos_loss = pos_weight * _softplus(-pos_scores)                              # (Bb, 1)
    neg_loss = jnp.mean(neg_weight * _softplus(neg_scores), axis=-1,
                        keepdims=True)                                          # (Bb, 1)
    loss_l = jnp.sum(pos_loss + neg_loss * negative_weight)

    # -------- cal_loss_i: -sim * log(sigmoid(s)) == sim * softplus(-s) --------
    loss_i = jnp.sum(sim * _softplus(-nbr_scores))

    partial_loss = loss_l + lm * loss_i

    # TODO(synk): production path (large U/I, especially v7x's 64 MiB VMEM): keep
    # Gu/Gi in HBM (memory_space=pl.ANY), scalar-prefetch the index slab and
    # DMA-gather only the needed rows instead of one-hot matmuls, and tile the
    # norm term over a grid axis instead of summing the whole tables here.
    @pl.when(pl.program_id(0) == 0)
    def _():
        gu_emb = gu_ext[:, 0:K]        # exclude the folded beta column from the norm
        gi_emb = gi_ext[:, 0:K]
        norm = 0.5 * (jnp.sum(gu_emb * gu_emb) + jnp.sum(gi_emb * gi_emb))
        out_ref[...] = jnp.reshape(partial_loss + gamma * norm, (1, 1, 1))

    @pl.when(pl.program_id(0) > 0)
    def _():
        out_ref[...] = jnp.reshape(partial_loss, (1, 1, 1))


@jax.jit
def ultragcn_forward(gu, gi, beta_uD, beta_iD, ii_neighbor_mat, ii_constraint_mat,
                     users, pos_items, neg_items):
    """UltraGCN forward() scalar loss. All gathers + scoring + reductions run inside
    one Pallas call over a batch-parallel grid; the wrapper only packs dense slabs
    and sums the per-block partial losses."""
    U, K = gu.shape
    I = gi.shape[0]
    B = users.shape[0]
    N = neg_items.shape[1]
    Nn = ii_neighbor_mat.shape[1]
    assert B % B_BLK == 0, "BATCH must be a multiple of B_BLK"
    num_blocks = B // B_BLK
    S = 1 + N + Nn
    S_pad = -(-S // 8) * 8

    # One packed int32 index slab: [user | pos | neg_0..neg_{N-1}]  -> single DMA.
    # TODO(synk): move this to SMEM via PrefetchScalarGridSpec once the production
    # DMA-gather path lands (the one-hot gathers need the indices as a vector).
    idx_slab = jnp.concatenate(
        [users[:, None].astype(jnp.int32),
         pos_items[:, None].astype(jnp.int32),
         neg_items.astype(jnp.int32)], axis=1)                       # (B, 2+N)

    # Fold the beta vectors into the embedding tables as column K.
    gu_ext = jnp.concatenate(
        [gu.astype(jnp.float32), beta_uD.astype(jnp.float32)[:, None]], axis=1)   # (U, K+1)
    gi_ext = jnp.concatenate(
        [gi.astype(jnp.float32), beta_iD.astype(jnp.float32)[:, None]], axis=1)   # (I, K+1)

    # One packed item-item slab: [constraint values | neighbor ids (as f32)].
    ii_slab = jnp.concatenate(
        [ii_constraint_mat.astype(jnp.float32),
         ii_neighbor_mat.astype(jnp.float32)], axis=1)               # (I, 2*Nn)

    kernel = functools.partial(
        ultragcn_loss_kernel,
        num_users=U, num_items=I, embed_k=K, neg_num=N, nbr_num=Nn,
        w1=W1, w2=W2, w3=W3, w4=W4,
        negative_weight=NEGATIVE_WEIGHT, gamma=GAMMA, lm=LM,
    )

    # Advisory cost (HIGHEST f32 gathers lower to ~6 bf16 MXU passes).
    flops = int(6 * 2 * (B * U * (K + 1) + B * I * 2 * Nn + B * S_pad * I * (K + 1))
                + 2 * B * S * K + 4 * (U * K + I * K))
    transcendentals = int(2 * B * S)
    bytes_accessed = int(4 * (idx_slab.size + gu_ext.size + gi_ext.size
                              + ii_slab.size + num_blocks))

    partials = pl.pallas_call(
        kernel,
        out_shape=jax.ShapeDtypeStruct((num_blocks, 1, 1), jnp.float32),
        grid=(num_blocks,),
        in_specs=[
            pl.BlockSpec((B_BLK, 2 + N), lambda b: (b, 0)),
            pl.BlockSpec((U, K + 1), lambda b: (0, 0)),
            pl.BlockSpec((I, K + 1), lambda b: (0, 0)),
            pl.BlockSpec((I, 2 * Nn), lambda b: (0, 0)),
        ],
        out_specs=pl.BlockSpec((1, 1, 1), lambda b: (b, 0, 0)),
        compiler_params=pltpu.CompilerParams(
            dimension_semantics=("parallel",),
            vmem_limit_bytes=32 * 1024 * 1024),
        cost_estimate=pl.CostEstimate(flops=flops,
                                      transcendentals=transcendentals,
                                      bytes_accessed=bytes_accessed),
    )(idx_slab, gu_ext, gi_ext, ii_slab)

    return jnp.sum(partials)


def ultragcn_forward_ref(gu, gi, beta_uD, beta_iD, ii_neighbor_mat,
                         ii_constraint_mat, users, pos_items, neg_items):
    """Pure-JAX reference mirroring the PyTorch forward()."""
    u_emb = gu[users]
    p_emb = gi[pos_items]
    n_emb = gi[neg_items]
    pos_weight = W1 + W2 * (beta_uD[users] * beta_iD[pos_items])
    neg_weight = W3 + W4 * (beta_uD[users][:, None] * beta_iD[neg_items])
    pos_scores = jnp.sum(u_emb * p_emb, axis=-1)
    neg_scores = jnp.sum(u_emb[:, None, :] * n_emb, axis=-1)
    neg_loss = jnp.mean(neg_weight * jax.nn.softplus(neg_scores), axis=-1)
    pos_loss = pos_weight * jax.nn.softplus(-pos_scores)
    loss_l = jnp.sum(pos_loss + neg_loss * NEGATIVE_WEIGHT)
    norm = 0.5 * (jnp.sum(gu ** 2) + jnp.sum(gi ** 2))
    nbr_emb = gi[ii_neighbor_mat[pos_items]]
    sim = ii_constraint_mat[pos_items]
    s = jnp.sum(u_emb[:, None, :] * nbr_emb, axis=-1)
    loss_i = jnp.sum(-sim * jnp.log(jax.nn.sigmoid(s)))
    return loss_l + GAMMA * norm + LM * loss_i


if __name__ == "__main__":
    key = jax.random.PRNGKey(0)
    k_gu, k_gi, k_bu, k_bi, k_nbr, k_sim, k_u, k_p, k_n = jax.random.split(key, 9)

    # Deterministic parameter / constraint-matrix init (synthetic, no checkpoint).
    gu = (INITIAL_WEIGHT * jax.random.normal(k_gu, (NUM_USERS, EMBED_K))).astype(jnp.float32)
    gi = (INITIAL_WEIGHT * jax.random.normal(k_gi, (NUM_ITEMS, EMBED_K))).astype(jnp.float32)
    beta_uD = jax.random.uniform(k_bu, (NUM_USERS,), dtype=jnp.float32)
    beta_iD = jax.random.uniform(k_bi, (NUM_ITEMS,), dtype=jnp.float32)
    ii_neighbor_mat = jax.random.randint(k_nbr, (NUM_ITEMS, NBR_NUM), 0, NUM_ITEMS, dtype=jnp.int32)
    ii_constraint_mat = jax.random.uniform(k_sim, (NUM_ITEMS, NBR_NUM), dtype=jnp.float32)

    # Forward inputs.
    users = jax.random.randint(k_u, (BATCH,), 0, NUM_USERS, dtype=jnp.int32)
    pos_items = jax.random.randint(k_p, (BATCH,), 0, NUM_ITEMS, dtype=jnp.int32)
    neg_items = jax.random.randint(k_n, (BATCH, NEG_NUM), 0, NUM_ITEMS, dtype=jnp.int32)

    loss = ultragcn_forward(gu, gi, beta_uD, beta_iD, ii_neighbor_mat,
                            ii_constraint_mat, users, pos_items, neg_items)
    loss = jax.block_until_ready(loss)

    ref = ultragcn_forward_ref(gu, gi, beta_uD, beta_iD, ii_neighbor_mat,
                               ii_constraint_mat, users, pos_items, neg_items)
    assert jnp.allclose(loss, ref, rtol=1e-4, atol=1e-4), (loss, ref)

    print("KERNEL_OK")
</pallas_src>

<mosaic_0001>
module attributes {stable_mosaic.version = 11 : i64} {
  func.func @ultragcn_loss_kernel(%arg0: i32, %arg1: memref<16x6xi32, #tpu.memory_space<vmem>>, %arg2: memref<32x33xf32, #tpu.memory_space<vmem>>, %arg3: memref<64x33xf32, #tpu.memory_space<vmem>>, %arg4: memref<64x16xf32, #tpu.memory_space<vmem>>, %arg5: memref<1x1x1xf32, #tpu.memory_space<vmem>>) attributes {dimension_semantics = [#tpu.dimension_semantics<parallel>], iteration_bounds = array<i64: 2>, scalar_prefetch = 0 : i64, scratch_operands = 0 : i64, tpu.core_type = #tpu.core_type<tc>, window_params = [{transform_indices = @transform_0, window_bounds = array<i64: 16, 6>}, {pipeline_mode = #tpu.pipeline_mode<synchronous>, transform_indices = @transform_1, window_bounds = array<i64: 32, 33>}, {pipeline_mode = #tpu.pipeline_mode<synchronous>, transform_indices = @transform_2, window_bounds = array<i64: 64, 33>}, {pipeline_mode = #tpu.pipeline_mode<synchronous>, transform_indices = @transform_3, window_bounds = array<i64: 64, 16>}, {transform_indices = @transform_4, window_bounds = array<i64: 1, 1, 1>}]} {
    %c0 = arith.constant 0 : index
    %c0_0 = arith.constant 0 : index
    %0 = vector.load %arg1[%c0, %c0_0] : memref<16x6xi32, #tpu.memory_space<vmem>>, vector<16x1xi32>
    %c0_1 = arith.constant 0 : index
    %c1 = arith.constant 1 : index
    %1 = vector.load %arg1[%c0_1, %c1] : memref<16x6xi32, #tpu.memory_space<vmem>>, vector<16x1xi32>
    %c0_2 = arith.constant 0 : index
    %c2 = arith.constant 2 : index
    %2 = vector.load %arg1[%c0_2, %c2] : memref<16x6xi32, #tpu.memory_space<vmem>>, vector<16x4xi32>
    %c0_3 = arith.constant 0 : index
    %c0_4 = arith.constant 0 : index
    %3 = vector.load %arg2[%c0_3, %c0_4] : memref<32x33xf32, #tpu.memory_space<vmem>>, vector<32x33xf32>
    %c0_5 = arith.constant 0 : index
    %c0_6 = arith.constant 0 : index
    %4 = vector.load %arg3[%c0_5, %c0_6] : memref<64x33xf32, #tpu.memory_space<vmem>>, vector<64x33xf32>
    %5 = tpu.iota {dimensions = array<i32: 1>} : vector<16x32xi32>
    %6 = vector.broadcast %0 : vector<16x1xi32> to vector<16x32xi32>
    %7 = arith.cmpi eq, %5, %6 : vector<16x32xi32>
    %8 = arith.extui %7 : vector<16x32xi1> to vector<16x32xi32>
    %9 = arith.sitofp %8 : vector<16x32xi32> to vector<16x32xf32>
    %cst = arith.constant dense<0.000000e+00> : vector<16x33xf32>
    %10 = tpu.matmul %9, %3, %cst {dimension_numbers = #tpu.dot_dimension_numbers<[1], [0], [0], [1], [0, 0, 1, 1], [], []>, precision = #tpu.contract_precision<fp32>} : vector<16x32xf32>, vector<32x33xf32>, vector<16x33xf32> -> vector<16x33xf32>
    %11 = vector.extract_strided_slice %10 {offsets = [0, 0], sizes = [16, 32], strides = [1, 1]} : vector<16x33xf32> to vector<16x32xf32>
    %12 = vector.extract_strided_slice %10 {offsets = [0, 32], sizes = [16, 1], strides = [1, 1]} : vector<16x33xf32> to vector<16x1xf32>
    %13 = tpu.iota {dimensions = array<i32: 1>} : vector<16x64xi32>
    %14 = vector.broadcast %1 : vector<16x1xi32> to vector<16x64xi32>
    %15 = arith.cmpi eq, %13, %14 : vector<16x64xi32>
    %16 = arith.extui %15 : vector<16x64xi1> to vector<16x64xi32>
    %17 = arith.sitofp %16 : vector<16x64xi32> to vector<16x64xf32>
    %c0_7 = arith.constant 0 : index
    %c0_8 = arith.constant 0 : index
    %18 = vector.load %arg4[%c0_7, %c0_8] : memref<64x16xf32, #tpu.memory_space<vmem>>, vector<64x16xf32>
    %cst_9 = arith.constant dense<0.000000e+00> : vector<16x16xf32>
    %19 = tpu.matmul %17, %18, %cst_9 {dimension_numbers = #tpu.dot_dimension_numbers<[1], [0], [0], [1], [0, 0, 1, 1], [], []>, precision = #tpu.contract_precision<fp32>} : vector<16x64xf32>, vector<64x16xf32>, vector<16x16xf32> -> vector<16x16xf32>
    %20 = vector.extract_strided_slice %19 {offsets = [0, 0], sizes = [16, 8], strides = [1, 1]} : vector<16x16xf32> to vector<16x8xf32>
    %21 = vector.extract_strided_slice %19 {offsets = [0, 8], sizes = [16, 8], strides = [1, 1]} : vector<16x16xf32> to vector<16x8xf32>
    %cst_10 = arith.constant 5.000000e-01 : f32
    %22 = vector.broadcast %cst_10 : f32 to vector<16x8xf32>
    %23 = arith.addf %21, %22 : vector<16x8xf32>
    %24 = arith.fptosi %23 : vector<16x8xf32> to vector<16x8xi32>
    %c0_i32 = arith.constant 0 : i32
    %25 = vector.broadcast %c0_i32 : i32 to vector<16x3xi32>
    %26 = tpu.concatenate %1, %2, %24, %25 in 1 : vector<16x1xi32>, vector<16x4xi32>, vector<16x8xi32>, vector<16x3xi32> -> vector<16x16xi32>
    %27 = tpu.iota {dimensions = array<i32: 2>} : vector<16x16x64xi32>
    %28 = vector.shape_cast %26 : vector<16x16xi32> to vector<16x16x1xi32>
    %29 = vector.broadcast %28 : vector<16x16x1xi32> to vector<16x16x64xi32>
    %30 = arith.cmpi eq, %27, %29 : vector<16x16x64xi32>
    %31 = arith.extui %30 : vector<16x16x64xi1> to vector<16x16x64xi32>
    %32 = arith.sitofp %31 : vector<16x16x64xi32> to vector<16x16x64xf32>
    %33 = vector.shape_cast %32 : vector<16x16x64xf32> to vector<256x64xf32>
    %cst_11 = arith.constant dense<0.000000e+00> : vector<256x33xf32>
    %34 = tpu.matmul %33, %4, %cst_11 {dimension_numbers = #tpu.dot_dimension_numbers<[1], [0], [0], [1], [0, 0, 1, 1], [], []>, precision = #tpu.contract_precision<fp32>} : vector<256x64xf32>, vector<64x33xf32>, vector<256x33xf32> -> vector<256x33xf32>
    %35 = vector.shape_cast %34 : vector<256x33xf32> to vector<16x16x33xf32>
    %36 = vector.shape_cast %11 : vector<16x32xf32> to vector<16x1x32xf32>
    %37 = vector.extract_strided_slice %35 {offsets = [0, 0, 0], sizes = [16, 13, 32], strides = [1, 1, 1]} : vector<16x16x33xf32> to vector<16x13x32xf32>
    %38 = vector.broadcast %36 : vector<16x1x32xf32> to vector<16x13x32xf32>
    %39 = arith.mulf %38, %37 : vector<16x13x32xf32>
    %cst_12 = arith.constant dense<0.000000e+00> : vector<16x13xf32>
    %40 = vector.multi_reduction <add>, %39, %cst_12 [2] : vector<16x13x32xf32> to vector<16x13xf32>
    %41 = vector.extract_strided_slice %40 {offsets = [0, 0], sizes = [16, 1], strides = [1, 1]} : vector<16x13xf32> to vector<16x1xf32>
    %42 = vector.extract_strided_slice %40 {offsets = [0, 1], sizes = [16, 4], strides = [1, 1]} : vector<16x13xf32> to vector<16x4xf32>
    %43 = vector.extract_strided_slice %40 {offsets = [0, 5], sizes = [16, 8], strides = [1, 1]} : vector<16x13xf32> to vector<16x8xf32>
    %44 = vector.extract_strided_slice %35 {offsets = [0, 0, 32], sizes = [16, 1, 1], strides = [1, 1, 1]} : vector<16x16x33xf32> to vector<16x1x1xf32>
    %45 = vector.shape_cast %44 : vector<16x1x1xf32> to vector<16x1xf32>
    %46 = vector.extract_strided_slice %35 {offsets = [0, 1, 32], sizes = [16, 4, 1], strides = [1, 1, 1]} : vector<16x16x33xf32> to vector<16x4x1xf32>
    %47 = vector.shape_cast %46 : vector<16x4x1xf32> to vector<16x4xf32>
    %48 = arith.mulf %12, %45 : vector<16x1xf32>
    %cst_13 = arith.constant 1.000000e+00 : f32
    %49 = vector.broadcast %cst_13 : f32 to vector<16x1xf32>
    %50 = arith.mulf %49, %48 : vector<16x1xf32>
    %cst_14 = arith.constant 9.99999997E-7 : f32
    %51 = vector.broadcast %cst_14 : f32 to vector<16x1xf32>
    %52 = arith.addf %51, %50 : vector<16x1xf32>
    %53 = vector.broadcast %12 : vector<16x1xf32> to vector<16x4xf32>
    %54 = arith.mulf %53, %47 : vector<16x4xf32>
    %cst_15 = arith.constant 1.000000e+00 : f32
    %55 = vector.broadcast %cst_15 : f32 to vector<16x4xf32>
    %56 = arith.mulf %55, %54 : vector<16x4xf32>
    %cst_16 = arith.constant 9.99999997E-7 : f32
    %57 = vector.broadcast %cst_16 : f32 to vector<16x4xf32>
    %58 = arith.addf %57, %56 : vector<16x4xf32>
    %cst_17 = arith.constant 0.000000e+00 : f32
    %59 = vector.broadcast %cst_17 : f32 to vector<16x1xf32>
    %60 = arith.subf %59, %41 : vector<16x1xf32>
    %cst_18 = arith.constant 0.000000e+00 : f32
    %61 = vector.broadcast %cst_18 : f32 to vector<16x1xf32>
    %62 = arith.maximumf %60, %61 : vector<16x1xf32>
    %63 = math.absf %60 : vector<16x1xf32>
    %cst_19 = arith.constant 0.000000e+00 : f32
    %64 = vector.broadcast %cst_19 : f32 to vector<16x1xf32>
    %65 = arith.subf %64, %63 : vector<16x1xf32>
    %66 = math.exp %65 : vector<16x1xf32>
    %67 = math.log1p %66 : vector<16x1xf32>
    %68 = arith.addf %62, %67 : vector<16x1xf32>
    %69 = arith.mulf %52, %68 : vector<16x1xf32>
    %cst_20 = arith.constant 0.000000e+00 : f32
    %70 = vector.broadcast %cst_20 : f32 to vector<16x4xf32>
    %71 = arith.maximumf %42, %70 : vector<16x4xf32>
    %72 = math.absf %42 : vector<16x4xf32>
    %cst_21 = arith.constant 0.000000e+00 : f32
    %73 = vector.broadcast %cst_21 : f32 to vector<16x4xf32>
    %74 = arith.subf %73, %72 : vector<16x4xf32>
    %75 = math.exp %74 : vector<16x4xf32>
    %76 = math.log1p %75 : vector<16x4xf32>
    %77 = arith.addf %71, %76 : vector<16x4xf32>
    %78 = arith.mulf %58, %77 : vector<16x4xf32>
    %cst_22 = arith.constant dense<0.000000e+00> : vector<16xf32>
    %79 = vector.multi_reduction <add>, %78, %cst_22 [1] : vector<16x4xf32> to vector<16xf32>
    %80 = vector.shape_cast %79 : vector<16xf32> to vector<16x1xf32>
    %cst_23 = arith.constant 4.000000e+00 : f32
    %81 = vector.broadcast %cst_23 : f32 to vector<16x1xf32>
    %82 = arith.divf %80, %81 : vector<16x1xf32>
    %cst_24 = arith.constant 1.000000e+01 : f32
    %83 = vector.broadcast %cst_24 : f32 to vector<16x1xf32>
    %84 = arith.mulf %82, %83 : vector<16x1xf32>
    %85 = arith.addf %69, %84 : vector<16x1xf32>
    %86 = vector.shape_cast %85 : vector<16x1xf32> to vector<1x16x1xf32>
    %cst_25 = arith.constant dense<0.000000e+00> : vector<1xf32>
    %87 = vector.multi_reduction <add>, %86, %cst_25 [1, 2] : vector<1x16x1xf32> to vector<1xf32>
    %88 = vector.shape_cast %87 : vector<1xf32> to vector<1x1x1xf32>
    %89 = vector.extract %88[0, 0, 0] : f32 from vector<1x1x1xf32>
    %cst_26 = arith.constant 0.000000e+00 : f32
    %90 = vector.broadcast %cst_26 : f32 to vector<16x8xf32>
    %91 = arith.subf %90, %43 : vector<16x8xf32>
    %cst_27 = arith.constant 0.000000e+00 : f32
    %92 = vector.broadcast %cst_27 : f32 to vector<16x8xf32>
    %93 = arith.maximumf %91, %92 : vector<16x8xf32>
    %94 = math.absf %91 : vector<16x8xf32>
    %cst_28 = arith.constant 0.000000e+00 : f32
    %95 = vector.broadcast %cst_28 : f32 to vector<16x8xf32>
    %96 = arith.subf %95, %94 : vector<16x8xf32>
    %97 = math.exp %96 : vector<16x8xf32>
    %98 = math.log1p %97 : vector<16x8xf32>
    %99 = arith.addf %93, %98 : vector<16x8xf32>
    %100 = arith.mulf %20, %99 : vector<16x8xf32>
    %101 = vector.shape_cast %100 : vector<16x8xf32> to vector<1x16x8xf32>
    %cst_29 = arith.constant dense<0.000000e+00> : vector<1xf32>
    %102 = vector.multi_reduction <add>, %101, %cst_29 [1, 2] : vector<1x16x8xf32> to vector<1xf32>
    %103 = vector.shape_cast %102 : vector<1xf32> to vector<1x1x1xf32>
    %104 = vector.extract %103[0, 0, 0] : f32 from vector<1x1x1xf32>
    %cst_30 = arith.constant 2.500000e+00 : f32
    %105 = arith.mulf %cst_30, %104 : f32
    %106 = arith.addf %89, %105 : f32
    %c0_i32_31 = arith.constant 0 : i32
    %107 = arith.cmpi eq, %arg0, %c0_i32_31 : i32
    %108 = arith.extui %107 : i1 to i32
    %c0_i32_32 = arith.constant 0 : i32
    %109 = arith.cmpi ne, %108, %c0_i32_32 : i32
    scf.if %109 {
      %113 = vector.extract_strided_slice %3 {offsets = [0, 0], sizes = [32, 32], strides = [1, 1]} : vector<32x33xf32> to vector<32x32xf32>
      %114 = vector.extract_strided_slice %4 {offsets = [0, 0], sizes = [64, 32], strides = [1, 1]} : vector<64x33xf32> to vector<64x32xf32>
      %115 = arith.mulf %113, %113 : vector<32x32xf32>
      %116 = vector.shape_cast %115 : vector<32x32xf32> to vector<1x32x32xf32>
      %cst_35 = arith.constant dense<0.000000e+00> : vector<1xf32>
      %117 = vector.multi_reduction <add>, %116, %cst_35 [1, 2] : vector<1x32x32xf32> to vector<1xf32>
      %118 = vector.shape_cast %117 : vector<1xf32> to vector<1x1x1xf32>
      %119 = vector.extract %118[0, 0, 0] : f32 from vector<1x1x1xf32>
      %120 = arith.mulf %114, %114 : vector<64x32xf32>
      %121 = vector.shape_cast %120 : vector<64x32xf32> to vector<1x64x32xf32>
      %cst_36 = arith.constant dense<0.000000e+00> : vector<1xf32>
      %122 = vector.multi_reduction <add>, %121, %cst_36 [1, 2] : vector<1x64x32xf32> to vector<1xf32>
      %123 = vector.shape_cast %122 : vector<1xf32> to vector<1x1x1xf32>
      %124 = vector.extract %123[0, 0, 0] : f32 from vector<1x1x1xf32>
      %125 = arith.addf %119, %124 : f32
      %cst_37 = arith.constant 5.000000e-01 : f32
      %126 = arith.mulf %cst_37, %125 : f32
      %cst_38 = arith.constant 9.99999974E-5 : f32
      %127 = arith.mulf %cst_38, %126 : f32
      %128 = arith.addf %106, %127 : f32
      %129 = vector.broadcast %128 : f32 to vector<1x1x1xf32>
      %c0_39 = arith.constant 0 : index
      %c0_40 = arith.constant 0 : index
      %c0_41 = arith.constant 0 : index
      %130 = vector.load %arg5[%c0_39, %c0_40, %c0_41] : memref<1x1x1xf32, #tpu.memory_space<vmem>>, vector<1x1x1xf32>
      tpu.vector_store %arg5[%c0_39, %c0_40, %c0_41], %129 {strides = array<i32>} : memref<1x1x1xf32, #tpu.memory_space<vmem>>, vector<1x1x1xf32>,
    } else {
    }
    %c0_i32_33 = arith.constant 0 : i32
    %110 = arith.cmpi sgt, %arg0, %c0_i32_33 : i32
    %111 = arith.extui %110 : i1 to i32
    %c0_i32_34 = arith.constant 0 : i32
    %112 = arith.cmpi ne, %111, %c0_i32_34 : i32
    scf.if %112 {
      %113 = vector.broadcast %106 : f32 to vector<1x1x1xf32>
      %c0_35 = arith.constant 0 : index
      %c0_36 = arith.constant 0 : index
      %c0_37 = arith.constant 0 : index
      %114 = vector.load %arg5[%c0_35, %c0_36, %c0_37] : memref<1x1x1xf32, #tpu.memory_space<vmem>>, vector<1x1x1xf32>
      tpu.vector_store %arg5[%c0_35, %c0_36, %c0_37], %113 {strides = array<i32>} : memref<1x1x1xf32, #tpu.memory_space<vmem>>, vector<1x1x1xf32>,
    } else {
    }
    return
  }
  func.func @transform_0(%arg0: i32) -> (i32, i32) {
    %c0_i32 = arith.constant 0 : i32
    %c0_i32_0 = arith.constant 0 : i32
    return %arg0, %c0_i32 : i32, i32
  }
  func.func @transform_1(%arg0: i32) -> (i32, i32) {
    %c0_i32 = arith.constant 0 : i32
    %c0_i32_0 = arith.constant 0 : i32
    %c0_i32_1 = arith.constant 0 : i32
    return %c0_i32, %c0_i32_0 : i32, i32
  }
  func.func @transform_2(%arg0: i32) -> (i32, i32) {
    %c0_i32 = arith.constant 0 : i32
    %c0_i32_0 = arith.constant 0 : i32
    %c0_i32_1 = arith.constant 0 : i32
    return %c0_i32, %c0_i32_0 : i32, i32
  }
  func.func @transform_3(%arg0: i32) -> (i32, i32) {
    %c0_i32 = arith.constant 0 : i32
    %c0_i32_0 = arith.constant 0 : i32
    %c0_i32_1 = arith.constant 0 : i32
    return %c0_i32, %c0_i32_0 : i32, i32
  }
  func.func @transform_4(%arg0: i32) -> (i32, i32, i32) {
    %c0_i32 = arith.constant 0 : i32
    %c0_i32_0 = arith.constant 0 : i32
    %c0_i32_1 = arith.constant 0 : i32
    return %arg0, %c0_i32, %c0_i32_0 : i32, i32, i32
  }
}

</mosaic_0001>

<llo_original>
// kernel: ultragcn_forward.1
$region0: #{ultragcn_forward.1}
  #allocation0 [shape = 'u32[]', space=smem, size = 0x4, offset = 0x4, fixed_abs, tag = 'smem constant byte address 0x4 - core index']
  #allocation1 [shape = 'u32[72,128]{1,0:T(1,128)}', space=vmem, size = 0x9000, scoped, tag = 'internal scratch']
  %s0 = inlined_call_operand.vmem [shape: s32[32,6], index: 0, kind: input, shape index: {}]
  %s1 = inlined_call_operand.vmem [shape: f32[32,33], index: 1, kind: input, shape index: {}]
  %s2 = inlined_call_operand.vmem [shape: f32[64,33], index: 2, kind: input, shape index: {}]
  %s3 = inlined_call_operand.vmem [shape: f32[64,16], index: 3, kind: input, shape index: {}]
  %s4 = inlined_call_operand.vmem [shape: f32[2,1,1], index: 4, kind: output, shape index: {}]
  %s5 = sld [smem:[#allocation0]]
  $region57: #{ultragcn_forward.1} parent=0
    _
  %s7 = ssub.s32 1, %s5
  %s8 = scalar_select 0, %s7, %s5
  loop: start=0, step=1, limit=4
  $region2: #{ultragcn_forward.1} parent=0 // loop_pre_header
    _
  $region3: #{ultragcn_forward.1} parent=0 // loop_header
    %s10 = sphi 0, %s14
    %p11 = scmp.ge.s32.totalorder %s10, 4
    %s20 = sphi 0, %s22
    %s23 = sphi 0, %s20
    %s24 = sphi 0, %s23
    %s40 = sphi 0, %s24
    %s44 = sphi 0, %s44
    %s46 = sphi 0, %s44
    %s47 = sphi 0, %s46
    %s61 = sphi 0, %s47
    %s65 = sphi 0, %s65
    %s67 = sphi 0, %s65
    %s68 = sphi 0, %s67
    %s82 = sphi 0, %s68
    %s86 = sphi 0, %s86
    %s88 = sphi 0, %s86
    %s89 = sphi 0, %s88
    %s103 = sphi 0, %s89
    %s109 = sphi 0, %s111
    %s112 = sphi 0, %s109
    %s113 = sphi 0, %s112
    %s129 = sphi 0, %s113
  $region4: #{ultragcn_forward.1} parent=0 // loop_header_branch
    %13 = sbr.rel (%p11) target = $region8
  $region5: #{ultragcn_forward.1} parent=0 // loop_body
    %s15 = ssub.s32 %s10, 1
    %s16 = ssub.s32 %s10, 2
    %s17 = sadd.s32 %s10, 1
    %s18 = ssub.s32 %s10, %s17
    %p19 = scmp.eq.s32.totalorder %s18, 0
    %s21 = sadd.s32 %s20, 1
    %s22 = scalar_select %p19, %s20, %s21
    %p25 = pneg %p19
    %p26 = scmp.eq.s32.totalorder %s10, 1
    %p27 = por %p25, %p26
    %p28 = scmp.ne.s32.totalorder %s20, %s23
    %p29 = scmp.eq.s32.totalorder %s10, 0
    %p30 = por %p28, %p29
    %p31 = scmp.ne.s32.totalorder %s20, %s23
    %p32 = scmp.eq.s32.totalorder %s15, 1
    %p33 = por %p31, %p32
    %p34 = scmp.ne.s32.totalorder %s23, %s24
    %p35 = scmp.eq.s32.totalorder %s15, 0
    %p36 = por %p34, %p35
    %p37 = scmp.ne.s32.totalorder %s23, %s24
    %p38 = scmp.eq.s32.totalorder %s16, 1
    %p39 = por %p37, %p38
    %p41 = scmp.ne.s32.totalorder %s24, %s40
    %p42 = scmp.eq.s32.totalorder %s16, 0
    %p43 = por %p41, %p42
    %s45 = sadd.s32 %s44, 1
    %p48 = scmp.eq.s32.totalorder %s10, 1
    %p49 = scmp.ne.s32.totalorder %s44, %s46
    %p50 = scmp.eq.s32.totalorder %s10, 0
    %p51 = por %p49, %p50
    %p52 = scmp.ne.s32.totalorder %s44, %s46
    %p53 = scmp.eq.s32.totalorder %s15, 1
    %p54 = por %p52, %p53
    %p55 = scmp.ne.s32.totalorder %s46, %s47
    %p56 = scmp.eq.s32.totalorder %s15, 0
    %p57 = por %p55, %p56
    %p58 = scmp.ne.s32.totalorder %s46, %s47
    %p59 = scmp.eq.s32.totalorder %s16, 1
    %p60 = por %p58, %p59
    %p62 = scmp.ne.s32.totalorder %s47, %s61
    %p63 = scmp.eq.s32.totalorder %s16, 0
    %p64 = por %p62, %p63
    %s66 = sadd.s32 %s65, 1
    %p69 = scmp.eq.s32.totalorder %s10, 1
    %p70 = scmp.ne.s32.totalorder %s65, %s67
    %p71 = scmp.eq.s32.totalorder %s10, 0
    %p72 = por %p70, %p71
    %p73 = scmp.ne.s32.totalorder %s65, %s67
    %p74 = scmp.eq.s32.totalorder %s15, 1
    %p75 = por %p73, %p74
    %p76 = scmp.ne.s32.totalorder %s67, %s68
    %p77 = scmp.eq.s32.totalorder %s15, 0
    %p78 = por %p76, %p77
    %p79 = scmp.ne.s32.totalorder %s67, %s68
    %p80 = scmp.eq.s32.totalorder %s16, 1
    %p81 = por %p79, %p80
    %p83 = scmp.ne.s32.totalorder %s68, %s82
    %p84 = scmp.eq.s32.totalorder %s16, 0
    %p85 = por %p83, %p84
    %s87 = sadd.s32 %s86, 1
    %p90 = scmp.eq.s32.totalorder %s10, 1
    %p91 = scmp.ne.s32.totalorder %s86, %s88
    %p92 = scmp.eq.s32.totalorder %s10, 0
    %p93 = por %p91, %p92
    %p94 = scmp.ne.s32.totalorder %s86, %s88
    %p95 = scmp.eq.s32.totalorder %s15, 1
    %p96 = por %p94, %p95
    %p97 = scmp.ne.s32.totalorder %s88, %s89
    %p98 = scmp.eq.s32.totalorder %s15, 0
    %p99 = por %p97, %p98
    %p100 = scmp.ne.s32.totalorder %s88, %s89
    %p101 = scmp.eq.s32.totalorder %s16, 1
    %p102 = por %p100, %p101
    %p104 = scmp.ne.s32.totalorder %s89, %s103
    %p105 = scmp.eq.s32.totalorder %s16, 0
    %p106 = por %p104, %p105
    %s107 = ssub.s32 %s10, %s17
    %p108 = scmp.eq.s32.totalorder %s107, 0
    %s110 = sadd.s32 %s109, 1
    %s111 = scalar_select %p108, %s109, %s110
    %p114 = pneg %p108
    %p115 = scmp.eq.s32.totalorder %s10, 1
    %p116 = por %p114, %p115
    %p117 = scmp.ne.s32.totalorder %s109, %s112
    %p118 = scmp.eq.s32.totalorder %s10, 0
    %p119 = por %p117, %p118
    %p120 = scmp.ne.s32.totalorder %s109, %s112
    %p121 = scmp.eq.s32.totalorder %s15, 1
    %p122 = por %p120, %p121
    %p123 = scmp.ne.s32.totalorder %s112, %s113
    %p124 = scmp.eq.s32.totalorder %s15, 0
    %p125 = por %p123, %p124
    %p126 = scmp.ne.s32.totalorder %s112, %s113
    %p127 = scmp.eq.s32.totalorder %s16, 1
    %p128 = por %p126, %p127
    %p130 = scmp.ne.s32.totalorder %s113, %s129
    %p131 = scmp.eq.s32.totalorder %s16, 0
    %p132 = por %p130, %p131
    %p133 = scmp.le.s32.totalorder 1, %s10
    %p134 = scmp.lt.s32.totalorder %s10, 3
    %p135 = pnand %p133, %p134
    %p136 = pneg %p135
    // Predicated region
    $region9: #{ultragcn_forward.1} parent=5 // pred_check
      _
    $region10: #{ultragcn_forward.1} parent=5 // pred_check_branch
      %138 = sbr.rel (%p135) target = $region12
    $region11: #{ultragcn_forward.1} parent=5 // pred_region
      %s139 = ssub.s32 %s10, 1
      // Predicated region
      $region13: #{ultragcn_forward.1} parent=11 // pred_check
        %p140 = pneg %p57
      $region14: #{ultragcn_forward.1} parent=11 // pred_check_branch
        %142 = sbr.rel (%p140) target = $region16
      $region15: #{ultragcn_forward.1} parent=11 // pred_region
        _
      $region16: #{ultragcn_forward.1} parent=11 // pred_fallthru
        _
      // Predicated region
      $region17: #{ultragcn_forward.1} parent=11 // pred_check
        %p143 = pneg %p78
      $region18: #{ultragcn_forward.1} parent=11 // pred_check_branch
        %145 = sbr.rel (%p143) target = $region20
      $region19: #{ultragcn_forward.1} parent=11 // pred_region
        _
      $region20: #{ultragcn_forward.1} parent=11 // pred_fallthru
        _
      // Predicated region
      $region21: #{ultragcn_forward.1} parent=11 // pred_check
        %p146 = pneg %p99
      $region22: #{ultragcn_forward.1} parent=11 // pred_check_branch
        %148 = sbr.rel (%p146) target = $region24
      $region23: #{ultragcn_forward.1} parent=11 // pred_region
        _
      $region24: #{ultragcn_forward.1} parent=11 // pred_fallthru
        _
    $region12: #{ultragcn_forward.1} parent=5 // pred_fallthru
      _
    %p149 = scmp.lt.s32.totalorder %s10, 2
    // Predicated region
    $region25: #{ultragcn_forward.1} parent=5 // pred_check
      %p150 = pneg %p149
    $region26: #{ultragcn_forward.1} parent=5 // pred_check_branch
      %152 = sbr.rel (%p150) target = $region28
    $region27: #{ultragcn_forward.1} parent=5 // pred_region
      // Predicated region
      $region29: #{ultragcn_forward.1} parent=27 // pred_check
        %p153 = pneg %p30
      $region30: #{ultragcn_forward.1} parent=27 // pred_check_branch
        %155 = sbr.rel (%p153) target = $region32
      $region31: #{ultragcn_forward.1} parent=27 // pred_region
        %s156 = smul.u32 2, %s10
        %p157 = scmp.lt.s32.totalorder %s156, 3
        %s158 = scalar_select %p157, %s156, 3
        %s159 = smul.addr %s158, 8
        %s160 = scalar_lea.vmem %s0, %s159
        %s161 = smul.u32 2, %s10
      $region32: #{ultragcn_forward.1} parent=27 // pred_fallthru
        _
    $region28: #{ultragcn_forward.1} parent=5 // pred_fallthru
      _
    %p162 = scmp.le.s32.totalorder 1, %s10
    %p163 = scmp.lt.s32.totalorder %s10, 3
    %p164 = pnand %p162, %p163
    %p165 = pneg %p164
    // Predicated region
    $region33: #{ultragcn_forward.1} parent=5 // pred_check
      _
    $region34: #{ultragcn_forward.1} parent=5 // pred_check_branch
      %167 = sbr.rel (%p164) target = $region36
    $region35: #{ultragcn_forward.1} parent=5 // pred_region
      %s168 = ssub.s32 %s10, 1
      %s169 = smul.u32 2, %s15
      %p170 = scmp.lt.s32.totalorder %s169, 3
      %s171 = scalar_select %p170, %s169, 3
      %s172 = smul.addr %s171, 8
      %s173 = scalar_lea.vmem %s0, %s172
      %p174 = pneg %p36
      %p175 = pneg %p33
      %p176 = pneg %p57
      %p177 = pneg %p54
      %p178 = pneg %p78
      %p179 = pneg %p75
      %p180 = pneg %p99
      %p181 = pneg %p96
      %p182 = pneg %p125
      %p183 = pneg %p122
      %p184 = scmp.lt.s32.totalorder %s15, 1
      %s185 = scalar_select %p184, %s15, 1
      %s186 = scalar_lea.vmem %s4, %s185
      %s187 = smul.u32 2, %s15
      %p188 = scmp.lt.s32.totalorder %s187, 3
      %s189 = scalar_select %p188, %s187, 3
      %s190 = smul.addr %s189, 8
      %s191 = scalar_lea.vmem %s0, %s190
      %s192 = smul.u32 2, %s15
      %p193 = scmp.lt.s32.totalorder %s15, 1
      %s194 = scalar_select %p193, %s15, 1
      %s195 = scalar_lea.vmem %s4, %s194
      %v196 = vld [vmem:[%s191] sm:$0xff]
      %v197 = vld [vmem:[%s191 + $0x8] sm:$0xff]
      %v198 = vld [vmem:[%s1] sm:$0xff]
      %v199 = vld [vmem:[%s1 + $0x8] sm:$0xff]
      %v200 = vld [vmem:[%s1 + $0x10] sm:$0xff]
      %v201 = vld [vmem:[%s1 + $0x18] sm:$0xff]
      %v202 = vld [vmem:[%s2] sm:$0xff]
      %v203 = vld [vmem:[%s2 + $0x8] sm:$0xff]
      %v204 = vld [vmem:[%s2 + $0x10] sm:$0xff]
      %v205 = vld [vmem:[%s2 + $0x18] sm:$0xff]
      %v206 = vld [vmem:[%s2 + $0x20] sm:$0xff]
      %v207 = vld [vmem:[%s2 + $0x28] sm:$0xff]
      %v208 = vld [vmem:[%s2 + $0x30] sm:$0xff]
      %v209 = vld [vmem:[%s2 + $0x38] sm:$0xff]
      %v210 = vlaneseq
      %v211 = vand.u32 %v210, 127
      %212 = vset.pattern.permute.xlu0 0
      %213 = vperm.xlu0 %212, %v196
      %v214 = vpop.permute.xlu0 %213
      %215 = vset.pattern.permute.xlu0 0
      %216 = vperm.xlu0 %215, %v197
      %v217 = vpop.permute.xlu0 %216
      %vm218 = vcmp.eq.s32.totalorder %v211, %v214
      %vm219 = vcmp.eq.s32.totalorder %v211, %v217
      %v220 = vsel %vm218, 1, 0
      %v221 = vsel %vm219, 1, 0
      %v222 = vcvt.s32.f32 %v220
      %v223 = vcvt.s32.f32 %v221
      %vm224 = vcmask 261120
      %v226 = vsel %vm224, %v222, 0
      %v229 = vsel %vm224, %v223, 0
      %231 = vmatpush.msra.mxu0 0.0
      %232 = vmatpush.msra.mxu0 0.0
      %233 = vmatpush.msra.mxu0 0.0
      %234 = vmatpush.msra.mxu0 0.0
      %235 = vmatpush.msra.mxu0 0.0
      %236 = vmatpush.msra.mxu0 0.0
      %237 = vmatpush.msra.mxu0 0.0
      %238 = vmatpush.msra.mxu0 0.0
      %239 = vmatpush.msra.mxu0 0.0
      %240 = vmatpush.msra.mxu0 0.0
      %241 = vmatpush.msra.mxu0 0.0
      %242 = vmatpush.msra.mxu0 0.0
      %v243 = vand.u32 %v201, 4294901760
      %244 = vmatpush.msra.mxu0 %v243
      %v245 = vand.u32 %v200, 4294901760
      %246 = vmatpush.msra.mxu0 %v245
      %v247 = vand.u32 %v199, 4294901760
      %248 = vmatpush.msra.mxu0 %v247
      %v249 = vand.u32 %v198, 4294901760
      %250 = vmatpush.msra.mxu0 %v249
      %v251 = vand.u32 %v226, 4294901760
      %v252 = vsub.f32 %v226, %v251
      %v253 = vand.u32 %v252, 4294901760
      %v254 = vsub.f32 %v252, %v253
      %v255 = vand.u32 %v254, 4294901760
      %256 = vmatmul.f32.gmra.mxu0 %v255
      %v257 = vpop.f32.mrf.mxu0
      %v258 = vadd.f32 0.0, %v257
      %v259 = vand.u32 %v229, 4294901760
      %v260 = vsub.f32 %v229, %v259
      %v261 = vand.u32 %v260, 4294901760
      %v262 = vsub.f32 %v260, %v261
      %v263 = vand.u32 %v262, 4294901760
      %264 = vmatmul.f32.gmra.mxu0 %v263
      %v265 = vpop.f32.mrf.mxu0
      %v266 = vadd.f32 0.0, %v265
      %267 = vdwg.mxu0
      %268 = vmatpush.msra.mxu0 0.0
      %269 = vmatpush.msra.mxu0 0.0
      %270 = vmatpush.msra.mxu0 0.0
      %271 = vmatpush.msra.mxu0 0.0
      %272 = vmatpush.msra.mxu0 0.0
      %273 = vmatpush.msra.mxu0 0.0
      %274 = vmatpush.msra.mxu0 0.0
      %275 = vmatpush.msra.mxu0 0.0
      %276 = vmatpush.msra.mxu0 0.0
      %277 = vmatpush.msra.mxu0 0.0
      %278 = vmatpush.msra.mxu0 0.0
      %279 = vmatpush.msra.mxu0 0.0
      %v280 = vand.u32 %v201, 4294901760
      %v281 = vsub.f32 %v201, %v280
      %v282 = vand.u32 %v281, 4294901760
      %v283 = vsub.f32 %v281, %v282
      %v284 = vand.u32 %v283, 4294901760
      %285 = vmatpush.msra.mxu0 %v284
      %v286 = vand.u32 %v200, 4294901760
      %v287 = vsub.f32 %v200, %v286
      %v288 = vand.u32 %v287, 4294901760
      %v289 = vsub.f32 %v287, %v288
      %v290 = vand.u32 %v289, 4294901760
      %291 = vmatpush.msra.mxu0 %v290
      %v292 = vand.u32 %v199, 4294901760
      %v293 = vsub.f32 %v199, %v292
      %v294 = vand.u32 %v293, 4294901760
      %v295 = vsub.f32 %v293, %v294
      %v296 = vand.u32 %v295, 4294901760
      %297 = vmatpush.msra.mxu0 %v296
      %v298 = vand.u32 %v198, 4294901760
      %v299 = vsub.f32 %v198, %v298
      %v300 = vand.u32 %v299, 4294901760
      %v301 = vsub.f32 %v299, %v300
      %v302 = vand.u32 %v301, 4294901760
      %303 = vmatpush.msra.mxu0 %v302
      %v304 = vand.u32 %v226, 4294901760
      %305 = vmatmul.f32.gmra.mxu0 %v304
      %v306 = vpop.f32.mrf.mxu0
      %v307 = vadd.f32 %v258, %v306
      %v308 = vand.u32 %v229, 4294901760
      %309 = vmatmul.f32.gmra.mxu0 %v308
      %v310 = vpop.f32.mrf.mxu0
      %v311 = vadd.f32 %v266, %v310
      %312 = vdwg.mxu0
      %313 = vmatpush.msra.mxu0 0.0
      %314 = vmatpush.msra.mxu0 0.0
      %315 = vmatpush.msra.mxu0 0.0
      %316 = vmatpush.msra.mxu0 0.0
      %317 = vmatpush.msra.mxu0 0.0
      %318 = vmatpush.msra.mxu0 0.0
      %319 = vmatpush.msra.mxu0 0.0
      %320 = vmatpush.msra.mxu0 0.0
      %321 = vmatpush.msra.mxu0 0.0
      %322 = vmatpush.msra.mxu0 0.0
      %323 = vmatpush.msra.mxu0 0.0
      %324 = vmatpush.msra.mxu0 0.0
      %v325 = vand.u32 %v201, 4294901760
      %v326 = vsub.f32 %v201, %v325
      %327 = vmatpush.msra.mxu0 %v326
      %v328 = vand.u32 %v200, 4294901760
      %v329 = vsub.f32 %v200, %v328
      %330 = vmatpush.msra.mxu0 %v329
      %v331 = vand.u32 %v199, 4294901760
      %v332 = vsub.f32 %v199, %v331
      %333 = vmatpush.msra.mxu0 %v332
      %v334 = vand.u32 %v198, 4294901760
      %v335 = vsub.f32 %v198, %v334
      %336 = vmatpush.msra.mxu0 %v335
      %v337 = vand.u32 %v226, 4294901760
      %v338 = vsub.f32 %v226, %v337
      %339 = vmatmul.f32.gmra.mxu0 %v338
      %v340 = vpop.f32.mrf.mxu0
      %v341 = vadd.f32 %v307, %v340
      %v342 = vand.u32 %v229, 4294901760
      %v343 = vsub.f32 %v229, %v342
      %344 = vmatmul.f32.gmra.mxu0 %v343
      %v345 = vpop.f32.mrf.mxu0
      %v346 = vadd.f32 %v311, %v345
      %347 = vdwg.mxu0
      %348 = vmatpush.msra.mxu0 0.0
      %349 = vmatpush.msra.mxu0 0.0
      %350 = vmatpush.msra.mxu0 0.0
      %351 = vmatpush.msra.mxu0 0.0
      %352 = vmatpush.msra.mxu0 0.0
      %353 = vmatpush.msra.mxu0 0.0
      %354 = vmatpush.msra.mxu0 0.0
      %355 = vmatpush.msra.mxu0 0.0
      %356 = vmatpush.msra.mxu0 0.0
      %357 = vmatpush.msra.mxu0 0.0
      %358 = vmatpush.msra.mxu0 0.0
      %359 = vmatpush.msra.mxu0 0.0
      %v360 = vand.u32 %v201, 4294901760
      %361 = vmatpush.msra.mxu0 %v360
      %v362 = vand.u32 %v200, 4294901760
      %363 = vmatpush.msra.mxu0 %v362
      %v364 = vand.u32 %v199, 4294901760
      %365 = vmatpush.msra.mxu0 %v364
      %v366 = vand.u32 %v198, 4294901760
      %367 = vmatpush.msra.mxu0 %v366
      %v368 = vand.u32 %v226, 4294901760
      %v369 = vsub.f32 %v226, %v368
      %v370 = vand.u32 %v369, 4294901760
      %371 = vmatmul.f32.gmra.mxu0 %v370
      %v372 = vpop.f32.mrf.mxu0
      %v373 = vadd.f32 %v341, %v372
      %v374 = vand.u32 %v229, 4294901760
      %v375 = vsub.f32 %v229, %v374
      %v376 = vand.u32 %v375, 4294901760
      %377 = vmatmul.f32.gmra.mxu0 %v376
      %v378 = vpop.f32.mrf.mxu0
      %v379 = vadd.f32 %v346, %v378
      %380 = vdwg.mxu0
      %381 = vmatpush.msra.mxu0 0.0
      %382 = vmatpush.msra.mxu0 0.0
      %383 = vmatpush.msra.mxu0 0.0
      %384 = vmatpush.msra.mxu0 0.0
      %385 = vmatpush.msra.mxu0 0.0
      %386 = vmatpush.msra.mxu0 0.0
      %387 = vmatpush.msra.mxu0 0.0
      %388 = vmatpush.msra.mxu0 0.0
      %389 = vmatpush.msra.mxu0 0.0
      %390 = vmatpush.msra.mxu0 0.0
      %391 = vmatpush.msra.mxu0 0.0
      %392 = vmatpush.msra.mxu0 0.0
      %v393 = vand.u32 %v201, 4294901760
      %v394 = vsub.f32 %v201, %v393
      %v395 = vand.u32 %v394, 4294901760
      %396 = vmatpush.msra.mxu0 %v395
      %v397 = vand.u32 %v200, 4294901760
      %v398 = vsub.f32 %v200, %v397
      %v399 = vand.u32 %v398, 4294901760
      %400 = vmatpush.msra.mxu0 %v399
      %v401 = vand.u32 %v199, 4294901760
      %v402 = vsub.f32 %v199, %v401
      %v403 = vand.u32 %v402, 4294901760
      %404 = vmatpush.msra.mxu0 %v403
      %v405 = vand.u32 %v198, 4294901760
      %v406 = vsub.f32 %v198, %v405
      %v407 = vand.u32 %v406, 4294901760
      %408 = vmatpush.msra.mxu0 %v407
      %v409 = vand.u32 %v226, 4294901760
      %410 = vmatmul.f32.gmra.mxu0 %v409
      %v411 = vpop.f32.mrf.mxu0
      %v412 = vadd.f32 %v373, %v411
      %v413 = vand.u32 %v229, 4294901760
      %414 = vmatmul.f32.gmra.mxu0 %v413
      %v415 = vpop.f32.mrf.mxu0
      %v416 = vadd.f32 %v379, %v415
      %417 = vdwg.mxu0
      %418 = vmatpush.msra.mxu0 0.0
      %419 = vmatpush.msra.mxu0 0.0
      %420 = vmatpush.msra.mxu0 0.0
      %421 = vmatpush.msra.mxu0 0.0
      %422 = vmatpush.msra.mxu0 0.0
      %423 = vmatpush.msra.mxu0 0.0
      %424 = vmatpush.msra.mxu0 0.0
      %425 = vmatpush.msra.mxu0 0.0
      %426 = vmatpush.msra.mxu0 0.0
      %427 = vmatpush.msra.mxu0 0.0
      %428 = vmatpush.msra.mxu0 0.0
      %429 = vmatpush.msra.mxu0 0.0
      %v430 = vand.u32 %v201, 4294901760
      %431 = vmatpush.msra.mxu0 %v430
      %v432 = vand.u32 %v200, 4294901760
      %433 = vmatpush.msra.mxu0 %v432
      %v434 = vand.u32 %v199, 4294901760
      %435 = vmatpush.msra.mxu0 %v434
      %v436 = vand.u32 %v198, 4294901760
      %437 = vmatpush.msra.mxu0 %v436
      %v438 = vand.u32 %v226, 4294901760
      %439 = vmatmul.f32.gmra.mxu0 %v438
      %v440 = vpop.f32.mrf.mxu0
      %v441 = vadd.f32 %v412, %v440
      %v442 = vand.u32 %v229, 4294901760
      %443 = vmatmul.f32.gmra.mxu0 %v442
      %v444 = vpop.f32.mrf.mxu0
      %v445 = vadd.f32 %v416, %v444
      %446 = vdwg.mxu0
      %447 = vset.pattern.permute.xlu0 1
      %448 = vperm.xlu0 %447, %v196
      %v449 = vpop.permute.xlu0 %448
      %450 = vset.pattern.permute.xlu0 1
      %451 = vperm.xlu0 %450, %v197
      %v452 = vpop.permute.xlu0 %451
      %vm453 = vcmp.eq.s32.totalorder %v211, %v449
      %vm454 = vcmp.eq.s32.totalorder %v211, %v452
      %v455 = vsel %vm453, 1, 0
      %v456 = vsel %vm454, 1, 0
      %v457 = vcvt.s32.f32 %v455
      %v458 = vcvt.s32.f32 %v456
      %v459 = vld [vmem:[%s3] sm:$0xff]
      %v460 = vld [vmem:[%s3 + $0x8] sm:$0xff]
      %v461 = vld [vmem:[%s3 + $0x10] sm:$0xff]
      %v462 = vld [vmem:[%s3 + $0x18] sm:$0xff]
      %v463 = vld [vmem:[%s3 + $0x20] sm:$0xff]
      %v464 = vld [vmem:[%s3 + $0x28] sm:$0xff]
      %v465 = vld [vmem:[%s3 + $0x30] sm:$0xff]
      %v466 = vld [vmem:[%s3 + $0x38] sm:$0xff]
      %vm467 = vcmask 523264
      %v469 = vsel %vm467, %v457, 0
      %v472 = vsel %vm467, %v458, 0
      %474 = vmatpush.msra.mxu0 0.0
      %475 = vmatpush.msra.mxu0 0.0
      %476 = vmatpush.msra.mxu0 0.0
      %477 = vmatpush.msra.mxu0 0.0
      %478 = vmatpush.msra.mxu0 0.0
      %479 = vmatpush.msra.mxu0 0.0
      %480 = vmatpush.msra.mxu0 0.0
      %481 = vmatpush.msra.mxu0 0.0
      %v482 = vand.u32 %v466, 4294901760
      %483 = vmatpush.msra.mxu0 %v482
      %v484 = vand.u32 %v465, 4294901760
      %485 = vmatpush.msra.mxu0 %v484
      %v486 = vand.u32 %v464, 4294901760
      %487 = vmatpush.msra.mxu0 %v486
      %v488 = vand.u32 %v463, 4294901760
      %489 = vmatpush.msra.mxu0 %v488
      %v490 = vand.u32 %v462, 4294901760
      %491 = vmatpush.msra.mxu0 %v490
      %v492 = vand.u32 %v461, 4294901760
      %493 = vmatpush.msra.mxu0 %v492
      %v494 = vand.u32 %v460, 4294901760
      %495 = vmatpush.msra.mxu0 %v494
      %v496 = vand.u32 %v459, 4294901760
      %497 = vmatpush.msra.mxu0 %v496
      %v498 = vand.u32 %v469, 4294901760
      %v499 = vsub.f32 %v469, %v498
      %v500 = vand.u32 %v499, 4294901760
      %v501 = vsub.f32 %v499, %v500
      %v502 = vand.u32 %v501, 4294901760
      %503 = vmatmul.f32.gmra.mxu0 %v502
      %v504 = vpop.f32.mrf.mxu0
      %v505 = vadd.f32 0.0, %v504
      %v506 = vand.u32 %v472, 4294901760
      %v507 = vsub.f32 %v472, %v506
      %v508 = vand.u32 %v507, 4294901760
      %v509 = vsub.f32 %v507, %v508
      %v510 = vand.u32 %v509, 4294901760
      %511 = vmatmul.f32.gmra.mxu0 %v510
      %v512 = vpop.f32.mrf.mxu0
      %v513 = vadd.f32 0.0, %v512
      %514 = vdwg.mxu0
      %515 = vmatpush.msra.mxu0 0.0
      %516 = vmatpush.msra.mxu0 0.0
      %517 = vmatpush.msra.mxu0 0.0
      %518 = vmatpush.msra.mxu0 0.0
      %519 = vmatpush.msra.mxu0 0.0
      %520 = vmatpush.msra.mxu0 0.0
      %521 = vmatpush.msra.mxu0 0.0
      %522 = vmatpush.msra.mxu0 0.0
      %v523 = vand.u32 %v466, 4294901760
      %v524 = vsub.f32 %v466, %v523
      %v525 = vand.u32 %v524, 4294901760
      %v526 = vsub.f32 %v524, %v525
      %v527 = vand.u32 %v526, 4294901760
      %528 = vmatpush.msra.mxu0 %v527
      %v529 = vand.u32 %v465, 4294901760
      %v530 = vsub.f32 %v465, %v529
      %v531 = vand.u32 %v530, 4294901760
      %v532 = vsub.f32 %v530, %v531
      %v533 = vand.u32 %v532, 4294901760
      %534 = vmatpush.msra.mxu0 %v533
      %v535 = vand.u32 %v464, 4294901760
      %v536 = vsub.f32 %v464, %v535
      %v537 = vand.u32 %v536, 4294901760
      %v538 = vsub.f32 %v536, %v537
      %v539 = vand.u32 %v538, 4294901760
      %540 = vmatpush.msra.mxu0 %v539
      %v541 = vand.u32 %v463, 4294901760
      %v542 = vsub.f32 %v463, %v541
      %v543 = vand.u32 %v542, 4294901760
      %v544 = vsub.f32 %v542, %v543
      %v545 = vand.u32 %v544, 4294901760
      %546 = vmatpush.msra.mxu0 %v545
      %v547 = vand.u32 %v462, 4294901760
      %v548 = vsub.f32 %v462, %v547
      %v549 = vand.u32 %v548, 4294901760
      %v550 = vsub.f32 %v548, %v549
      %v551 = vand.u32 %v550, 4294901760
      %552 = vmatpush.msra.mxu0 %v551
      %v553 = vand.u32 %v461, 4294901760
      %v554 = vsub.f32 %v461, %v553
      %v555 = vand.u32 %v554, 4294901760
      %v556 = vsub.f32 %v554, %v555
      %v557 = vand.u32 %v556, 4294901760
      %558 = vmatpush.msra.mxu0 %v557
      %v559 = vand.u32 %v460, 4294901760
      %v560 = vsub.f32 %v460, %v559
      %v561 = vand.u32 %v560, 4294901760
      %v562 = vsub.f32 %v560, %v561
      %v563 = vand.u32 %v562, 4294901760
      %564 = vmatpush.msra.mxu0 %v563
      %v565 = vand.u32 %v459, 4294901760
      %v566 = vsub.f32 %v459, %v565
      %v567 = vand.u32 %v566, 4294901760
      %v568 = vsub.f32 %v566, %v567
      %v569 = vand.u32 %v568, 4294901760
      %570 = vmatpush.msra.mxu0 %v569
      %v571 = vand.u32 %v469, 4294901760
      %572 = vmatmul.f32.gmra.mxu0 %v571
      %v573 = vpop.f32.mrf.mxu0
      %v574 = vadd.f32 %v505, %v573
      %v575 = vand.u32 %v472, 4294901760
      %576 = vmatmul.f32.gmra.mxu0 %v575
      %v577 = vpop.f32.mrf.mxu0
      %v578 = vadd.f32 %v513, %v577
      %579 = vdwg.mxu0
      %580 = vmatpush.msra.mxu0 0.0
      %581 = vmatpush.msra.mxu0 0.0
      %582 = vmatpush.msra.mxu0 0.0
      %583 = vmatpush.msra.mxu0 0.0
      %584 = vmatpush.msra.mxu0 0.0
      %585 = vmatpush.msra.mxu0 0.0
      %586 = vmatpush.msra.mxu0 0.0
      %587 = vmatpush.msra.mxu0 0.0
      %v588 = vand.u32 %v466, 4294901760
      %v589 = vsub.f32 %v466, %v588
      %590 = vmatpush.msra.mxu0 %v589
      %v591 = vand.u32 %v465, 4294901760
      %v592 = vsub.f32 %v465, %v591
      %593 = vmatpush.msra.mxu0 %v592
      %v594 = vand.u32 %v464, 4294901760
      %v595 = vsub.f32 %v464, %v594
      %596 = vmatpush.msra.mxu0 %v595
      %v597 = vand.u32 %v463, 4294901760
      %v598 = vsub.f32 %v463, %v597
      %599 = vmatpush.msra.mxu0 %v598
      %v600 = vand.u32 %v462, 4294901760
      %v601 = vsub.f32 %v462, %v600
      %602 = vmatpush.msra.mxu0 %v601
      %v603 = vand.u32 %v461, 4294901760
      %v604 = vsub.f32 %v461, %v603
      %605 = vmatpush.msra.mxu0 %v604
      %v606 = vand.u32 %v460, 4294901760
      %v607 = vsub.f32 %v460, %v606
      %608 = vmatpush.msra.mxu0 %v607
      %v609 = vand.u32 %v459, 4294901760
      %v610 = vsub.f32 %v459, %v609
      %611 = vmatpush.msra.mxu0 %v610
      %v612 = vand.u32 %v469, 4294901760
      %v613 = vsub.f32 %v469, %v612
      %614 = vmatmul.f32.gmra.mxu0 %v613
      %v615 = vpop.f32.mrf.mxu0
      %v616 = vadd.f32 %v574, %v615
      %v617 = vand.u32 %v472, 4294901760
      %v618 = vsub.f32 %v472, %v617
      %619 = vmatmul.f32.gmra.mxu0 %v618
      %v620 = vpop.f32.mrf.mxu0
      %v621 = vadd.f32 %v578, %v620
      %622 = vdwg.mxu0
      %623 = vmatpush.msra.mxu0 0.0
      %624 = vmatpush.msra.mxu0 0.0
      %625 = vmatpush.msra.mxu0 0.0
      %626 = vmatpush.msra.mxu0 0.0
      %627 = vmatpush.msra.mxu0 0.0
      %628 = vmatpush.msra.mxu0 0.0
      %629 = vmatpush.msra.mxu0 0.0
      %630 = vmatpush.msra.mxu0 0.0
      %v631 = vand.u32 %v466, 4294901760
      %632 = vmatpush.msra.mxu0 %v631
      %v633 = vand.u32 %v465, 4294901760
      %634 = vmatpush.msra.mxu0 %v633
      %v635 = vand.u32 %v464, 4294901760
      %636 = vmatpush.msra.mxu0 %v635
      %v637 = vand.u32 %v463, 4294901760
      %638 = vmatpush.msra.mxu0 %v637
      %v639 = vand.u32 %v462, 4294901760
      %640 = vmatpush.msra.mxu0 %v639
      %v641 = vand.u32 %v461, 4294901760
      %642 = vmatpush.msra.mxu0 %v641
      %v643 = vand.u32 %v460, 4294901760
      %644 = vmatpush.msra.mxu0 %v643
      %v645 = vand.u32 %v459, 4294901760
      %646 = vmatpush.msra.mxu0 %v645
      %v647 = vand.u32 %v469, 4294901760
      %v648 = vsub.f32 %v469, %v647
      %v649 = vand.u32 %v648, 4294901760
      %650 = vmatmul.f32.gmra.mxu0 %v649
      %v651 = vpop.f32.mrf.mxu0
      %v652 = vadd.f32 %v616, %v651
      %v653 = vand.u32 %v472, 4294901760
      %v654 = vsub.f32 %v472, %v653
      %v655 = vand.u32 %v654, 4294901760
      %656 = vmatmul.f32.gmra.mxu0 %v655
      %v657 = vpop.f32.mrf.mxu0
      %v658 = vadd.f32 %v621, %v657
      %659 = vdwg.mxu0
      %660 = vmatpush.msra.mxu0 0.0
      %661 = vmatpush.msra.mxu0 0.0
      %662 = vmatpush.msra.mxu0 0.0
      %663 = vmatpush.msra.mxu0 0.0
      %664 = vmatpush.msra.mxu0 0.0
      %665 = vmatpush.msra.mxu0 0.0
      %666 = vmatpush.msra.mxu0 0.0
      %667 = vmatpush.msra.mxu0 0.0
      %v668 = vand.u32 %v466, 4294901760
      %v669 = vsub.f32 %v466, %v668
      %v670 = vand.u32 %v669, 4294901760
      %671 = vmatpush.msra.mxu0 %v670
      %v672 = vand.u32 %v465, 4294901760
      %v673 = vsub.f32 %v465, %v672
      %v674 = vand.u32 %v673, 4294901760
      %675 = vmatpush.msra.mxu0 %v674
      %v676 = vand.u32 %v464, 4294901760
      %v677 = vsub.f32 %v464, %v676
      %v678 = vand.u32 %v677, 4294901760
      %679 = vmatpush.msra.mxu0 %v678
      %v680 = vand.u32 %v463, 4294901760
      %v681 = vsub.f32 %v463, %v680
      %v682 = vand.u32 %v681, 4294901760
      %683 = vmatpush.msra.mxu0 %v682
      %v684 = vand.u32 %v462, 4294901760
      %v685 = vsub.f32 %v462, %v684
      %v686 = vand.u32 %v685, 4294901760
      %687 = vmatpush.msra.mxu0 %v686
      %v688 = vand.u32 %v461, 4294901760
      %v689 = vsub.f32 %v461, %v688
      %v690 = vand.u32 %v689, 4294901760
      %691 = vmatpush.msra.mxu0 %v690
      %v692 = vand.u32 %v460, 4294901760
      %v693 = vsub.f32 %v460, %v692
      %v694 = vand.u32 %v693, 4294901760
      %695 = vmatpush.msra.mxu0 %v694
      %v696 = vand.u32 %v459, 4294901760
      %v697 = vsub.f32 %v459, %v696
      %v698 = vand.u32 %v697, 4294901760
      %699 = vmatpush.msra.mxu0 %v698
      %v700 = vand.u32 %v469, 4294901760
      %701 = vmatmul.f32.gmra.mxu0 %v700
      %v702 = vpop.f32.mrf.mxu0
      %v703 = vadd.f32 %v652, %v702
      %v704 = vand.u32 %v472, 4294901760
      %705 = vmatmul.f32.gmra.mxu0 %v704
      %v706 = vpop.f32.mrf.mxu0
      %v707 = vadd.f32 %v658, %v706
      %708 = vdwg.mxu0
      %709 = vmatpush.msra.mxu0 0.0
      %710 = vmatpush.msra.mxu0 0.0
      %711 = vmatpush.msra.mxu0 0.0
      %712 = vmatpush.msra.mxu0 0.0
      %713 = vmatpush.msra.mxu0 0.0
      %714 = vmatpush.msra.mxu0 0.0
      %715 = vmatpush.msra.mxu0 0.0
      %716 = vmatpush.msra.mxu0 0.0
      %v717 = vand.u32 %v466, 4294901760
      %718 = vmatpush.msra.mxu0 %v717
      %v719 = vand.u32 %v465, 4294901760
      %720 = vmatpush.msra.mxu0 %v719
      %v721 = vand.u32 %v464, 4294901760
      %722 = vmatpush.msra.mxu0 %v721
      %v723 = vand.u32 %v463, 4294901760
      %724 = vmatpush.msra.mxu0 %v723
      %v725 = vand.u32 %v462, 4294901760
      %726 = vmatpush.msra.mxu0 %v725
      %v727 = vand.u32 %v461, 4294901760
      %728 = vmatpush.msra.mxu0 %v727
      %v729 = vand.u32 %v460, 4294901760
      %730 = vmatpush.msra.mxu0 %v729
      %v731 = vand.u32 %v459, 4294901760
      %732 = vmatpush.msra.mxu0 %v731
      %v733 = vand.u32 %v469, 4294901760
      %734 = vmatmul.f32.gmra.mxu0 %v733
      %v735 = vpop.f32.mrf.mxu0
      %v736 = vadd.f32 %v703, %v735
      %v737 = vand.u32 %v472, 4294901760
      %738 = vmatmul.f32.gmra.mxu0 %v737
      %v739 = vpop.f32.mrf.mxu0
      %v740 = vadd.f32 %v707, %v739
      %741 = vdwg.mxu0
      %v742 = vadd.f32 %v736, 0.5
      %v743 = vadd.f32 %v740, 0.5
      %v744 = vcvt.f32.s32.to.zero.pseudo %v742
      %v745 = vcvt.f32.s32.to.zero.pseudo %v743
      %746 = vrot.lane.b32.xlu0 %v196, 127
      %v747 = vpop.permute.xlu0 %746
      %748 = vrot.lane.b32.xlu0 %v197, 127
      %v749 = vpop.permute.xlu0 %748
      %750 = vrot.lane.b32.xlu0 %v744, 125
      %v751 = vpop.permute.xlu0 %750
      %752 = vrot.lane.b32.xlu0 %v745, 125
      %v753 = vpop.permute.xlu0 %752
      %vm754 = vcmask 7168
      %vm755 = vcmask 39936
      %v756 = vsel %vm755, %v747, %v751
      %v757 = vsel %vm755, %v749, %v753
      %vm758 = vcmask 105472
      %v759 = vsel %vm758, %v756, 0
      %v760 = vsel %vm758, %v757, 0
      %v761 = vperm.slane %v759, 0
      %v762 = vlaneseq
      %v763 = vshrl.u32 %v762, 7
      %765 = vset.pattern.permute.xlu0 %v763
      %766 = vperm.xlu0 %765, %v761
      %v767 = vpop.permute.xlu0 %766
      %v768 = vlaneseq
      %v769 = vshrl.u32 %v768, 7
      %v770 = vadd.s32 %v769, 8
      %771 = vset.pattern.permute.xlu0 %v770
      %772 = vperm.xlu0 %771, %v761
      %v773 = vpop.permute.xlu0 %772
      %v774 = vperm.slane %v759, 1
      %v775 = vlaneseq
      %v776 = vshrl.u32 %v775, 7
      %778 = vset.pattern.permute.xlu0 %v776
      %779 = vperm.xlu0 %778, %v774
      %v780 = vpop.permute.xlu0 %779
      %v781 = vlaneseq
      %v782 = vshrl.u32 %v781, 7
      %v783 = vadd.s32 %v782, 8
      %784 = vset.pattern.permute.xlu0 %v783
      %785 = vperm.xlu0 %784, %v774
      %v786 = vpop.permute.xlu0 %785
      %v787 = vperm.slane %v759, 2
      %v788 = vlaneseq
      %v789 = vshrl.u32 %v788, 7
      %791 = vset.pattern.permute.xlu0 %v789
      %792 = vperm.xlu0 %791, %v787
      %v793 = vpop.permute.xlu0 %792
      %v794 = vlaneseq
      %v795 = vshrl.u32 %v794, 7
      %v796 = vadd.s32 %v795, 8
      %797 = vset.pattern.permute.xlu0 %v796
      %798 = vperm.xlu0 %797, %v787
      %v799 = vpop.permute.xlu0 %798
      %v800 = vperm.slane %v759, 3
      %v801 = vlaneseq
      %v802 = vshrl.u32 %v801, 7
      %804 = vset.pattern.permute.xlu0 %v802
      %805 = vperm.xlu0 %804, %v800
      %v806 = vpop.permute.xlu0 %805
      %v807 = vlaneseq
      %v808 = vshrl.u32 %v807, 7
      %v809 = vadd.s32 %v808, 8
      %810 = vset.pattern.permute.xlu0 %v809
      %811 = vperm.xlu0 %810, %v800
      %v812 = vpop.permute.xlu0 %811
      %v813 = vperm.slane %v759, 4
      %v814 = vlaneseq
      %v815 = vshrl.u32 %v814, 7
      %817 = vset.pattern.permute.xlu0 %v815
      %818 = vperm.xlu0 %817, %v813
      %v819 = vpop.permute.xlu0 %818
      %v820 = vlaneseq
      %v821 = vshrl.u32 %v820, 7
      %v822 = vadd.s32 %v821, 8
      %823 = vset.pattern.permute.xlu0 %v822
      %824 = vperm.xlu0 %823, %v813
      %v825 = vpop.permute.xlu0 %824
      %v826 = vperm.slane %v759, 5
      %v827 = vlaneseq
      %v828 = vshrl.u32 %v827, 7
      %830 = vset.pattern.permute.xlu0 %v828
      %831 = vperm.xlu0 %830, %v826
      %v832 = vpop.permute.xlu0 %831
      %v833 = vlaneseq
      %v834 = vshrl.u32 %v833, 7
      %v835 = vadd.s32 %v834, 8
      %836 = vset.pattern.permute.xlu0 %v835
      %837 = vperm.xlu0 %836, %v826
      %v838 = vpop.permute.xlu0 %837
      %v839 = vperm.slane %v759, 6
      %v840 = vlaneseq
      %v841 = vshrl.u32 %v840, 7
      %843 = vset.pattern.permute.xlu0 %v841
      %844 = vperm.xlu0 %843, %v839
      %v845 = vpop.permute.xlu0 %844
      %v846 = vlaneseq
      %v847 = vshrl.u32 %v846, 7
      %v848 = vadd.s32 %v847, 8
      %849 = vset.pattern.permute.xlu0 %v848
      %850 = vperm.xlu0 %849, %v839
      %v851 = vpop.permute.xlu0 %850
      %v852 = vperm.slane %v759, 7
      %v853 = vlaneseq
      %v854 = vshrl.u32 %v853, 7
      %856 = vset.pattern.permute.xlu0 %v854
      %857 = vperm.xlu0 %856, %v852
      %v858 = vpop.permute.xlu0 %857
      %v859 = vlaneseq
      %v860 = vshrl.u32 %v859, 7
      %v861 = vadd.s32 %v860, 8
      %862 = vset.pattern.permute.xlu0 %v861
      %863 = vperm.xlu0 %862, %v852
      %v864 = vpop.permute.xlu0 %863
      %v865 = vperm.slane %v760, 0
      %v866 = vlaneseq
      %v867 = vshrl.u32 %v866, 7
      %869 = vset.pattern.permute.xlu0 %v867
      %870 = vperm.xlu0 %869, %v865
      %v871 = vpop.permute.xlu0 %870
      %v872 = vlaneseq
      %v873 = vshrl.u32 %v872, 7
      %v874 = vadd.s32 %v873, 8
      %875 = vset.pattern.permute.xlu0 %v874
      %876 = vperm.xlu0 %875, %v865
      %v877 = vpop.permute.xlu0 %876
      %v878 = vperm.slane %v760, 1
      %v879 = vlaneseq
      %v880 = vshrl.u32 %v879, 7
      %882 = vset.pattern.permute.xlu0 %v880
      %883 = vperm.xlu0 %882, %v878
      %v884 = vpop.permute.xlu0 %883
      %v885 = vlaneseq
      %v886 = vshrl.u32 %v885, 7
      %v887 = vadd.s32 %v886, 8
      %888 = vset.pattern.permute.xlu0 %v887
      %889 = vperm.xlu0 %888, %v878
      %v890 = vpop.permute.xlu0 %889
      %v891 = vperm.slane %v760, 2
      %v892 = vlaneseq
      %v893 = vshrl.u32 %v892, 7
      %895 = vset.pattern.permute.xlu0 %v893
      %896 = vperm.xlu0 %895, %v891
      %v897 = vpop.permute.xlu0 %896
      %v898 = vlaneseq
      %v899 = vshrl.u32 %v898, 7
      %v900 = vadd.s32 %v899, 8
      %901 = vset.pattern.permute.xlu0 %v900
      %902 = vperm.xlu0 %901, %v891
      %v903 = vpop.permute.xlu0 %902
      %v904 = vperm.slane %v760, 3
      %v905 = vlaneseq
      %v906 = vshrl.u32 %v905, 7
      %908 = vset.pattern.permute.xlu0 %v906
      %909 = vperm.xlu0 %908, %v904
      %v910 = vpop.permute.xlu0 %909
      %v911 = vlaneseq
      %v912 = vshrl.u32 %v911, 7
      %v913 = vadd.s32 %v912, 8
      %914 = vset.pattern.permute.xlu0 %v913
      %915 = vperm.xlu0 %914, %v904
      %v916 = vpop.permute.xlu0 %915
      %v917 = vperm.slane %v760, 4
      %v918 = vlaneseq
      %v919 = vshrl.u32 %v918, 7
      %921 = vset.pattern.permute.xlu0 %v919
      %922 = vperm.xlu0 %921, %v917
      %v923 = vpop.permute.xlu0 %922
      %v924 = vlaneseq
      %v925 = vshrl.u32 %v924, 7
      %v926 = vadd.s32 %v925, 8
      %927 = vset.pattern.permute.xlu0 %v926
      %928 = vperm.xlu0 %927, %v917
      %v929 = vpop.permute.xlu0 %928
      %v930 = vperm.slane %v760, 5
      %v931 = vlaneseq
      %v932 = vshrl.u32 %v931, 7
      %934 = vset.pattern.permute.xlu0 %v932
      %935 = vperm.xlu0 %934, %v930
      %v936 = vpop.permute.xlu0 %935
      %v937 = vlaneseq
      %v938 = vshrl.u32 %v937, 7
      %v939 = vadd.s32 %v938, 8
      %940 = vset.pattern.permute.xlu0 %v939
      %941 = vperm.xlu0 %940, %v930
      %v942 = vpop.permute.xlu0 %941
      %v943 = vperm.slane %v760, 6
      %v944 = vlaneseq
      %v945 = vshrl.u32 %v944, 7
      %947 = vset.pattern.permute.xlu0 %v945
      %948 = vperm.xlu0 %947, %v943
      %v949 = vpop.permute.xlu0 %948
      %v950 = vlaneseq
      %v951 = vshrl.u32 %v950, 7
      %v952 = vadd.s32 %v951, 8
      %953 = vset.pattern.permute.xlu0 %v952
      %954 = vperm.xlu0 %953, %v943
      %v955 = vpop.permute.xlu0 %954
      %v956 = vperm.slane %v760, 7
      %v957 = vlaneseq
      %v958 = vshrl.u32 %v957, 7
      %960 = vset.pattern.permute.xlu0 %v958
      %961 = vperm.xlu0 %960, %v956
      %v962 = vpop.permute.xlu0 %961
      %v963 = vlaneseq
      %v964 = vshrl.u32 %v963, 7
      %v965 = vadd.s32 %v964, 8
      %966 = vset.pattern.permute.xlu0 %v965
      %967 = vperm.xlu0 %966, %v956
      %v968 = vpop.permute.xlu0 %967
      %vm969 = vcmp.eq.s32.totalorder %v211, %v767
      %vm970 = vcmp.eq.s32.totalorder %v211, %v773
      %vm971 = vcmp.eq.s32.totalorder %v211, %v780
      %vm972 = vcmp.eq.s32.totalorder %v211, %v786
      %vm973 = vcmp.eq.s32.totalorder %v211, %v793
      %vm974 = vcmp.eq.s32.totalorder %v211, %v799
      %vm975 = vcmp.eq.s32.totalorder %v211, %v806
      %vm976 = vcmp.eq.s32.totalorder %v211, %v812
      %vm977 = vcmp.eq.s32.totalorder %v211, %v819
      %vm978 = vcmp.eq.s32.totalorder %v211, %v825
      %vm979 = vcmp.eq.s32.totalorder %v211, %v832
      %vm980 = vcmp.eq.s32.totalorder %v211, %v838
      %vm981 = vcmp.eq.s32.totalorder %v211, %v845
      %vm982 = vcmp.eq.s32.totalorder %v211, %v851
      %vm983 = vcmp.eq.s32.totalorder %v211, %v858
      %vm984 = vcmp.eq.s32.totalorder %v211, %v864
      %vm985 = vcmp.eq.s32.totalorder %v211, %v871
      %vm986 = vcmp.eq.s32.totalorder %v211, %v877
      %vm987 = vcmp.eq.s32.totalorder %v211, %v884
      %vm988 = vcmp.eq.s32.totalorder %v211, %v890
      %vm989 = vcmp.eq.s32.totalorder %v211, %v897
      %vm990 = vcmp.eq.s32.totalorder %v211, %v903
      %vm991 = vcmp.eq.s32.totalorder %v211, %v910
      %vm992 = vcmp.eq.s32.totalorder %v211, %v916
      %vm993 = vcmp.eq.s32.totalorder %v211, %v923
      %vm994 = vcmp.eq.s32.totalorder %v211, %v929
      %vm995 = vcmp.eq.s32.totalorder %v211, %v936
      %vm996 = vcmp.eq.s32.totalorder %v211, %v942
      %vm997 = vcmp.eq.s32.totalorder %v211, %v949
      %vm998 = vcmp.eq.s32.totalorder %v211, %v955
      %vm999 = vcmp.eq.s32.totalorder %v211, %v962
      %vm1000 = vcmp.eq.s32.totalorder %v211, %v968
      %v1001 = vsel %vm969, 1, 0
      %v1002 = vsel %vm970, 1, 0
      %v1003 = vsel %vm971, 1, 0
      %v1004 = vsel %vm972, 1, 0
      %v1005 = vsel %vm973, 1, 0
      %v1006 = vsel %vm974, 1, 0
      %v1007 = vsel %vm975, 1, 0
      %v1008 = vsel %vm976, 1, 0
      %v1009 = vsel %vm977, 1, 0
      %v1010 = vsel %vm978, 1, 0
      %v1011 = vsel %vm979, 1, 0
      %v1012 = vsel %vm980, 1, 0
      %v1013 = vsel %vm981, 1, 0
      %v1014 = vsel %vm982, 1, 0
      %v1015 = vsel %vm983, 1, 0
      %v1016 = vsel %vm984, 1, 0
      %v1017 = vsel %vm985, 1, 0
      %v1018 = vsel %vm986, 1, 0
      %v1019 = vsel %vm987, 1, 0
      %v1020 = vsel %vm988, 1, 0
      %v1021 = vsel %vm989, 1, 0
      %v1022 = vsel %vm990, 1, 0
      %v1023 = vsel %vm991, 1, 0
      %v1024 = vsel %vm992, 1, 0
      %v1025 = vsel %vm993, 1, 0
      %v1026 = vsel %vm994, 1, 0
      %v1027 = vsel %vm995, 1, 0
      %v1028 = vsel %vm996, 1, 0
      %v1029 = vsel %vm997, 1, 0
      %v1030 = vsel %vm998, 1, 0
      %v1031 = vsel %vm999, 1, 0
      %v1032 = vsel %vm1000, 1, 0
      %v1033 = vcvt.s32.f32 %v1001
      %v1034 = vcvt.s32.f32 %v1002
      %v1035 = vcvt.s32.f32 %v1003
      %v1036 = vcvt.s32.f32 %v1004
      %v1037 = vcvt.s32.f32 %v1005
      %v1038 = vcvt.s32.f32 %v1006
      %v1039 = vcvt.s32.f32 %v1007
      %v1040 = vcvt.s32.f32 %v1008
      %v1041 = vcvt.s32.f32 %v1009
      %v1042 = vcvt.s32.f32 %v1010
      %v1043 = vcvt.s32.f32 %v1011
      %v1044 = vcvt.s32.f32 %v1012
      %v1045 = vcvt.s32.f32 %v1013
      %v1046 = vcvt.s32.f32 %v1014
      %v1047 = vcvt.s32.f32 %v1015
      %v1048 = vcvt.s32.f32 %v1016
      %v1049 = vcvt.s32.f32 %v1017
      %v1050 = vcvt.s32.f32 %v1018
      %v1051 = vcvt.s32.f32 %v1019
      %v1052 = vcvt.s32.f32 %v1020
      %v1053 = vcvt.s32.f32 %v1021
      %v1054 = vcvt.s32.f32 %v1022
      %v1055 = vcvt.s32.f32 %v1023
      %v1056 = vcvt.s32.f32 %v1024
      %v1057 = vcvt.s32.f32 %v1025
      %v1058 = vcvt.s32.f32 %v1026
      %v1059 = vcvt.s32.f32 %v1027
      %v1060 = vcvt.s32.f32 %v1028
      %v1061 = vcvt.s32.f32 %v1029
      %v1062 = vcvt.s32.f32 %v1030
      %v1063 = vcvt.s32.f32 %v1031
      %v1064 = vcvt.s32.f32 %v1032
      %v1066 = vsel %vm467, %v1033, 0
      %v1069 = vsel %vm467, %v1034, 0
      %v1072 = vsel %vm467, %v1035, 0
      %v1075 = vsel %vm467, %v1036, 0
      %v1078 = vsel %vm467, %v1037, 0
      %v1081 = vsel %vm467, %v1038, 0
      %v1084 = vsel %vm467, %v1039, 0
      %v1087 = vsel %vm467, %v1040, 0
      %v1090 = vsel %vm467, %v1041, 0
      %v1093 = vsel %vm467, %v1042, 0
      %v1096 = vsel %vm467, %v1043, 0
      %v1099 = vsel %vm467, %v1044, 0
      %v1102 = vsel %vm467, %v1045, 0
      %v1105 = vsel %vm467, %v1046, 0
      %v1108 = vsel %vm467, %v1047, 0
      %v1111 = vsel %vm467, %v1048, 0
      %v1114 = vsel %vm467, %v1049, 0
      %v1117 = vsel %vm467, %v1050, 0
      %v1120 = vsel %vm467, %v1051, 0
      %v1123 = vsel %vm467, %v1052, 0
      %v1126 = vsel %vm467, %v1053, 0
      %v1129 = vsel %vm467, %v1054, 0
      %v1132 = vsel %vm467, %v1055, 0
      %v1135 = vsel %vm467, %v1056, 0
      %v1138 = vsel %vm467, %v1057, 0
      %v1141 = vsel %vm467, %v1058, 0
      %v1144 = vsel %vm467, %v1059, 0
      %v1147 = vsel %vm467, %v1060, 0
      %v1150 = vsel %vm467, %v1061, 0
      %v1153 = vsel %vm467, %v1062, 0
      %v1156 = vsel %vm467, %v1063, 0
      %v1159 = vsel %vm467, %v1064, 0
      %1161 = vmatpush.msra.mxu0 0.0
      %1162 = vmatpush.msra.mxu0 0.0
      %1163 = vmatpush.msra.mxu0 0.0
      %1164 = vmatpush.msra.mxu0 0.0
      %1165 = vmatpush.msra.mxu0 0.0
      %1166 = vmatpush.msra.mxu0 0.0
      %1167 = vmatpush.msra.mxu0 0.0
      %1168 = vmatpush.msra.mxu0 0.0
      %v1169 = vand.u32 %v209, 4294901760
      %1170 = vmatpush.msra.mxu0 %v1169
      %v1171 = vand.u32 %v208, 4294901760
      %1172 = vmatpush.msra.mxu0 %v1171
      %v1173 = vand.u32 %v207, 4294901760
      %1174 = vmatpush.msra.mxu0 %v1173
      %v1175 = vand.u32 %v206, 4294901760
      %1176 = vmatpush.msra.mxu0 %v1175
      %v1177 = vand.u32 %v205, 4294901760
      %1178 = vmatpush.msra.mxu0 %v1177
      %v1179 = vand.u32 %v204, 4294901760
      %1180 = vmatpush.msra.mxu0 %v1179
      %v1181 = vand.u32 %v203, 4294901760
      %1182 = vmatpush.msra.mxu0 %v1181
      %v1183 = vand.u32 %v202, 4294901760
      %1184 = vmatpush.msra.mxu0 %v1183
      %v1185 = vand.u32 %v1066, 4294901760
      %v1186 = vsub.f32 %v1066, %v1185
      %v1187 = vand.u32 %v1186, 4294901760
      %v1188 = vsub.f32 %v1186, %v1187
      %v1189 = vand.u32 %v1188, 4294901760
      %1190 = vmatmul.f32.gmra.mxu0 %v1189
      %v1191 = vpop.f32.mrf.mxu0
      %v1192 = vadd.f32 0.0, %v1191
      %v1193 = vand.u32 %v1069, 4294901760
      %v1194 = vsub.f32 %v1069, %v1193
      %v1195 = vand.u32 %v1194, 4294901760
      %v1196 = vsub.f32 %v1194, %v1195
      %v1197 = vand.u32 %v1196, 4294901760
      %1198 = vmatmul.f32.gmra.mxu0 %v1197
      %v1199 = vpop.f32.mrf.mxu0
      %v1200 = vadd.f32 0.0, %v1199
      %v1201 = vand.u32 %v1072, 4294901760
      %v1202 = vsub.f32 %v1072, %v1201
      %v1203 = vand.u32 %v1202, 4294901760
      %v1204 = vsub.f32 %v1202, %v1203
      %v1205 = vand.u32 %v1204, 4294901760
      %1206 = vmatmul.f32.gmra.mxu0 %v1205
      %v1207 = vpop.f32.mrf.mxu0
      %v1208 = vadd.f32 0.0, %v1207
      %v1209 = vand.u32 %v1075, 4294901760
      %v1210 = vsub.f32 %v1075, %v1209
      %v1211 = vand.u32 %v1210, 4294901760
      %v1212 = vsub.f32 %v1210, %v1211
      %v1213 = vand.u32 %v1212, 4294901760
      %1214 = vmatmul.f32.gmra.mxu0 %v1213
      %v1215 = vpop.f32.mrf.mxu0
      %v1216 = vadd.f32 0.0, %v1215
      %v1217 = vand.u32 %v1078, 4294901760
      %v1218 = vsub.f32 %v1078, %v1217
      %v1219 = vand.u32 %v1218, 4294901760
      %v1220 = vsub.f32 %v1218, %v1219
      %v1221 = vand.u32 %v1220, 4294901760
      %1222 = vmatmul.f32.gmra.mxu0 %v1221
      %v1223 = vpop.f32.mrf.mxu0
      %v1224 = vadd.f32 0.0, %v1223
      %v1225 = vand.u32 %v1081, 4294901760
      %v1226 = vsub.f32 %v1081, %v1225
      %v1227 = vand.u32 %v1226, 4294901760
      %v1228 = vsub.f32 %v1226, %v1227
      %v1229 = vand.u32 %v1228, 4294901760
      %1230 = vmatmul.f32.gmra.mxu0 %v1229
      %v1231 = vpop.f32.mrf.mxu0
      %v1232 = vadd.f32 0.0, %v1231
      %v1233 = vand.u32 %v1084, 4294901760
      %v1234 = vsub.f32 %v1084, %v1233
      %v1235 = vand.u32 %v1234, 4294901760
      %v1236 = vsub.f32 %v1234, %v1235
      %v1237 = vand.u32 %v1236, 4294901760
      %1238 = vmatmul.f32.gmra.mxu0 %v1237
      %v1239 = vpop.f32.mrf.mxu0
      %v1240 = vadd.f32 0.0, %v1239
      %v1241 = vand.u32 %v1087, 4294901760
      %v1242 = vsub.f32 %v1087, %v1241
      %v1243 = vand.u32 %v1242, 4294901760
      %v1244 = vsub.f32 %v1242, %v1243
      %v1245 = vand.u32 %v1244, 4294901760
      %1246 = vmatmul.f32.gmra.mxu0 %v1245
      %v1247 = vpop.f32.mrf.mxu0
      %v1248 = vadd.f32 0.0, %v1247
      %v1249 = vand.u32 %v1090, 4294901760
      %v1250 = vsub.f32 %v1090, %v1249
      %v1251 = vand.u32 %v1250, 4294901760
      %v1252 = vsub.f32 %v1250, %v1251
      %v1253 = vand.u32 %v1252, 4294901760
      %1254 = vmatmul.f32.gmra.mxu0 %v1253
      %v1255 = vpop.f32.mrf.mxu0
      %v1256 = vadd.f32 0.0, %v1255
      %v1257 = vand.u32 %v1093, 4294901760
      %v1258 = vsub.f32 %v1093, %v1257
      %v1259 = vand.u32 %v1258, 4294901760
      %v1260 = vsub.f32 %v1258, %v1259
      %v1261 = vand.u32 %v1260, 4294901760
      %1262 = vmatmul.f32.gmra.mxu0 %v1261
      %v1263 = vpop.f32.mrf.mxu0
      %v1264 = vadd.f32 0.0, %v1263
      %v1265 = vand.u32 %v1096, 4294901760
      %v1266 = vsub.f32 %v1096, %v1265
      %v1267 = vand.u32 %v1266, 4294901760
      %v1268 = vsub.f32 %v1266, %v1267
      %v1269 = vand.u32 %v1268, 4294901760
      %1270 = vmatmul.f32.gmra.mxu0 %v1269
      %v1271 = vpop.f32.mrf.mxu0
      %v1272 = vadd.f32 0.0, %v1271
      %v1273 = vand.u32 %v1099, 4294901760
      %v1274 = vsub.f32 %v1099, %v1273
      %v1275 = vand.u32 %v1274, 4294901760
      %v1276 = vsub.f32 %v1274, %v1275
      %v1277 = vand.u32 %v1276, 4294901760
      %1278 = vmatmul.f32.gmra.mxu0 %v1277
      %v1279 = vpop.f32.mrf.mxu0
      %v1280 = vadd.f32 0.0, %v1279
      %v1281 = vand.u32 %v1102, 4294901760
      %v1282 = vsub.f32 %v1102, %v1281
      %v1283 = vand.u32 %v1282, 4294901760
      %v1284 = vsub.f32 %v1282, %v1283
      %v1285 = vand.u32 %v1284, 4294901760
      %1286 = vmatmul.f32.gmra.mxu0 %v1285
      %v1287 = vpop.f32.mrf.mxu0
      %v1288 = vadd.f32 0.0, %v1287
      %v1289 = vand.u32 %v1105, 4294901760
      %v1290 = vsub.f32 %v1105, %v1289
      %v1291 = vand.u32 %v1290, 4294901760
      %v1292 = vsub.f32 %v1290, %v1291
      %v1293 = vand.u32 %v1292, 4294901760
      %1294 = vmatmul.f32.gmra.mxu0 %v1293
      %v1295 = vpop.f32.mrf.mxu0
      %v1296 = vadd.f32 0.0, %v1295
      %v1297 = vand.u32 %v1108, 4294901760
      %v1298 = vsub.f32 %v1108, %v1297
      %v1299 = vand.u32 %v1298, 4294901760
      %v1300 = vsub.f32 %v1298, %v1299
      %v1301 = vand.u32 %v1300, 4294901760
      %1302 = vmatmul.f32.gmra.mxu0 %v1301
      %v1303 = vpop.f32.mrf.mxu0
      %v1304 = vadd.f32 0.0, %v1303
      %v1305 = vand.u32 %v1111, 4294901760
      %v1306 = vsub.f32 %v1111, %v1305
      %v1307 = vand.u32 %v1306, 4294901760
      %v1308 = vsub.f32 %v1306, %v1307
      %v1309 = vand.u32 %v1308, 4294901760
      %1310 = vmatmul.f32.gmra.mxu0 %v1309
      %v1311 = vpop.f32.mrf.mxu0
      %v1312 = vadd.f32 0.0, %v1311
      %v1313 = vand.u32 %v1114, 4294901760
      %v1314 = vsub.f32 %v1114, %v1313
      %v1315 = vand.u32 %v1314, 4294901760
      %v1316 = vsub.f32 %v1314, %v1315
      %v1317 = vand.u32 %v1316, 4294901760
      %1318 = vmatmul.f32.gmra.mxu0 %v1317
      %v1319 = vpop.f32.mrf.mxu0
      %v1320 = vadd.f32 0.0, %v1319
      %v1321 = vand.u32 %v1117, 4294901760
      %v1322 = vsub.f32 %v1117, %v1321
      %v1323 = vand.u32 %v1322, 4294901760
      %v1324 = vsub.f32 %v1322, %v1323
      %v1325 = vand.u32 %v1324, 4294901760
      %1326 = vmatmul.f32.gmra.mxu0 %v1325
      %v1327 = vpop.f32.mrf.mxu0
      %v1328 = vadd.f32 0.0, %v1327
      %v1329 = vand.u32 %v1120, 4294901760
      %v1330 = vsub.f32 %v1120, %v1329
      %v1331 = vand.u32 %v1330, 4294901760
      %v1332 = vsub.f32 %v1330, %v1331
      %v1333 = vand.u32 %v1332, 4294901760
      %1334 = vmatmul.f32.gmra.mxu0 %v1333
      %v1335 = vpop.f32.mrf.mxu0
      %v1336 = vadd.f32 0.0, %v1335
      %v1337 = vand.u32 %v1123, 4294901760
      %v1338 = vsub.f32 %v1123, %v1337
      %v1339 = vand.u32 %v1338, 4294901760
      %v1340 = vsub.f32 %v1338, %v1339
      %v1341 = vand.u32 %v1340, 4294901760
      %1342 = vmatmul.f32.gmra.mxu0 %v1341
      %v1343 = vpop.f32.mrf.mxu0
      %v1344 = vadd.f32 0.0, %v1343
      %v1345 = vand.u32 %v1126, 4294901760
      %v1346 = vsub.f32 %v1126, %v1345
      %v1347 = vand.u32 %v1346, 4294901760
      %v1348 = vsub.f32 %v1346, %v1347
      %v1349 = vand.u32 %v1348, 4294901760
      %1350 = vmatmul.f32.gmra.mxu0 %v1349
      %v1351 = vpop.f32.mrf.mxu0
      %v1352 = vadd.f32 0.0, %v1351
      %v1353 = vand.u32 %v1129, 4294901760
      %v1354 = vsub.f32 %v1129, %v1353
      %v1355 = vand.u32 %v1354, 4294901760
      %v1356 = vsub.f32 %v1354, %v1355
      %v1357 = vand.u32 %v1356, 4294901760
      %1358 = vmatmul.f32.gmra.mxu0 %v1357
      %v1359 = vpop.f32.mrf.mxu0
      %v1360 = vadd.f32 0.0, %v1359
      %v1361 = vand.u32 %v1132, 4294901760
      %v1362 = vsub.f32 %v1132, %v1361
      %v1363 = vand.u32 %v1362, 4294901760
      %v1364 = vsub.f32 %v1362, %v1363
      %v1365 = vand.u32 %v1364, 4294901760
      %1366 = vmatmul.f32.gmra.mxu0 %v1365
      %v1367 = vpop.f32.mrf.mxu0
      %v1368 = vadd.f32 0.0, %v1367
      %v1369 = vand.u32 %v1135, 4294901760
      %v1370 = vsub.f32 %v1135, %v1369
      %v1371 = vand.u32 %v1370, 4294901760
      %v1372 = vsub.f32 %v1370, %v1371
      %v1373 = vand.u32 %v1372, 4294901760
      %1374 = vmatmul.f32.gmra.mxu0 %v1373
      %v1375 = vpop.f32.mrf.mxu0
      %v1376 = vadd.f32 0.0, %v1375
      %v1377 = vand.u32 %v1138, 4294901760
      %v1378 = vsub.f32 %v1138, %v1377
      %v1379 = vand.u32 %v1378, 4294901760
      %v1380 = vsub.f32 %v1378, %v1379
      %v1381 = vand.u32 %v1380, 4294901760
      %1382 = vmatmul.f32.gmra.mxu0 %v1381
      %v1383 = vpop.f32.mrf.mxu0
      %v1384 = vadd.f32 0.0, %v1383
      %v1385 = vand.u32 %v1141, 4294901760
      %v1386 = vsub.f32 %v1141, %v1385
      %v1387 = vand.u32 %v1386, 4294901760
      %v1388 = vsub.f32 %v1386, %v1387
      %v1389 = vand.u32 %v1388, 4294901760
      %1390 = vmatmul.f32.gmra.mxu0 %v1389
      %v1391 = vpop.f32.mrf.mxu0
      %v1392 = vadd.f32 0.0, %v1391
      %v1393 = vand.u32 %v1144, 4294901760
      %v1394 = vsub.f32 %v1144, %v1393
      %v1395 = vand.u32 %v1394, 4294901760
      %v1396 = vsub.f32 %v1394, %v1395
      %v1397 = vand.u32 %v1396, 4294901760
      %1398 = vmatmul.f32.gmra.mxu0 %v1397
      %v1399 = vpop.f32.mrf.mxu0
      %v1400 = vadd.f32 0.0, %v1399
      %v1401 = vand.u32 %v1147, 4294901760
      %v1402 = vsub.f32 %v1147, %v1401
      %v1403 = vand.u32 %v1402, 4294901760
      %v1404 = vsub.f32 %v1402, %v1403
      %v1405 = vand.u32 %v1404, 4294901760
      %1406 = vmatmul.f32.gmra.mxu0 %v1405
      %v1407 = vpop.f32.mrf.mxu0
      %v1408 = vadd.f32 0.0, %v1407
      %v1409 = vand.u32 %v1150, 4294901760
      %v1410 = vsub.f32 %v1150, %v1409
      %v1411 = vand.u32 %v1410, 4294901760
      %v1412 = vsub.f32 %v1410, %v1411
      %v1413 = vand.u32 %v1412, 4294901760
      %1414 = vmatmul.f32.gmra.mxu0 %v1413
      %v1415 = vpop.f32.mrf.mxu0
      %v1416 = vadd.f32 0.0, %v1415
      %v1417 = vand.u32 %v1153, 4294901760
      %v1418 = vsub.f32 %v1153, %v1417
      %v1419 = vand.u32 %v1418, 4294901760
      %v1420 = vsub.f32 %v1418, %v1419
      %v1421 = vand.u32 %v1420, 4294901760
      %1422 = vmatmul.f32.gmra.mxu0 %v1421
      %v1423 = vpop.f32.mrf.mxu0
      %v1424 = vadd.f32 0.0, %v1423
      %v1425 = vand.u32 %v1156, 4294901760
      %v1426 = vsub.f32 %v1156, %v1425
      %v1427 = vand.u32 %v1426, 4294901760
      %v1428 = vsub.f32 %v1426, %v1427
      %v1429 = vand.u32 %v1428, 4294901760
      %1430 = vmatmul.f32.gmra.mxu0 %v1429
      %v1431 = vpop.f32.mrf.mxu0
      %v1432 = vadd.f32 0.0, %v1431
      %v1433 = vand.u32 %v1159, 4294901760
      %v1434 = vsub.f32 %v1159, %v1433
      %v1435 = vand.u32 %v1434, 4294901760
      %v1436 = vsub.f32 %v1434, %v1435
      %v1437 = vand.u32 %v1436, 4294901760
      %1438 = vmatmul.f32.gmra.mxu0 %v1437
      %v1439 = vpop.f32.mrf.mxu0
      %v1440 = vadd.f32 0.0, %v1439
      %1441 = vdwg.mxu0
      %1442 = vmatpush.msra.mxu0 0.0
      %1443 = vmatpush.msra.mxu0 0.0
      %1444 = vmatpush.msra.mxu0 0.0
      %1445 = vmatpush.msra.mxu0 0.0
      %1446 = vmatpush.msra.mxu0 0.0
      %1447 = vmatpush.msra.mxu0 0.0
      %1448 = vmatpush.msra.mxu0 0.0
      %1449 = vmatpush.msra.mxu0 0.0
      %v1450 = vand.u32 %v209, 4294901760
      %v1451 = vsub.f32 %v209, %v1450
      %v1452 = vand.u32 %v1451, 4294901760
      %v1453 = vsub.f32 %v1451, %v1452
      %v1454 = vand.u32 %v1453, 4294901760
      %1455 = vmatpush.msra.mxu0 %v1454
      %v1456 = vand.u32 %v208, 4294901760
      %v1457 = vsub.f32 %v208, %v1456
      %v1458 = vand.u32 %v1457, 4294901760
      %v1459 = vsub.f32 %v1457, %v1458
      %v1460 = vand.u32 %v1459, 4294901760
      %1461 = vmatpush.msra.mxu0 %v1460
      %v1462 = vand.u32 %v207, 4294901760
      %v1463 = vsub.f32 %v207, %v1462
      %v1464 = vand.u32 %v1463, 4294901760
      %v1465 = vsub.f32 %v1463, %v1464
      %v1466 = vand.u32 %v1465, 4294901760
      %1467 = vmatpush.msra.mxu0 %v1466
      %v1468 = vand.u32 %v206, 4294901760
      %v1469 = vsub.f32 %v206, %v1468
      %v1470 = vand.u32 %v1469, 4294901760
      %v1471 = vsub.f32 %v1469, %v1470
      %v1472 = vand.u32 %v1471, 4294901760
      %1473 = vmatpush.msra.mxu0 %v1472
      %v1474 = vand.u32 %v205, 4294901760
      %v1475 = vsub.f32 %v205, %v1474
      %v1476 = vand.u32 %v1475, 4294901760
      %v1477 = vsub.f32 %v1475, %v1476
      %v1478 = vand.u32 %v1477, 4294901760
      %1479 = vmatpush.msra.mxu0 %v1478
      %v1480 = vand.u32 %v204, 4294901760
      %v1481 = vsub.f32 %v204, %v1480
      %v1482 = vand.u32 %v1481, 4294901760
      %v1483 = vsub.f32 %v1481, %v1482
      %v1484 = vand.u32 %v1483, 4294901760
      %1485 = vmatpush.msra.mxu0 %v1484
      %v1486 = vand.u32 %v203, 4294901760
      %v1487 = vsub.f32 %v203, %v1486
      %v1488 = vand.u32 %v1487, 4294901760
      %v1489 = vsub.f32 %v1487, %v1488
      %v1490 = vand.u32 %v1489, 4294901760
      %1491 = vmatpush.msra.mxu0 %v1490
      %v1492 = vand.u32 %v202, 4294901760
      %v1493 = vsub.f32 %v202, %v1492
      %v1494 = vand.u32 %v1493, 4294901760
      %v1495 = vsub.f32 %v1493, %v1494
      %v1496 = vand.u32 %v1495, 4294901760
      %1497 = vmatpush.msra.mxu0 %v1496
      %v1498 = vand.u32 %v1066, 4294901760
      %1499 = vmatmul.f32.gmra.mxu0 %v1498
      %v1500 = vpop.f32.mrf.mxu0
      %v1501 = vadd.f32 %v1192, %v1500
      %v1502 = vand.u32 %v1069, 4294901760
      %1503 = vmatmul.f32.gmra.mxu0 %v1502
      %v1504 = vpop.f32.mrf.mxu0
      %v1505 = vadd.f32 %v1200, %v1504
      %v1506 = vand.u32 %v1072, 4294901760
      %1507 = vmatmul.f32.gmra.mxu0 %v1506
      %v1508 = vpop.f32.mrf.mxu0
      %v1509 = vadd.f32 %v1208, %v1508
      %v1510 = vand.u32 %v1075, 4294901760
      %1511 = vmatmul.f32.gmra.mxu0 %v1510
      %v1512 = vpop.f32.mrf.mxu0
      %v1513 = vadd.f32 %v1216, %v1512
      %v1514 = vand.u32 %v1078, 4294901760
      %1515 = vmatmul.f32.gmra.mxu0 %v1514
      %v1516 = vpop.f32.mrf.mxu0
      %v1517 = vadd.f32 %v1224, %v1516
      %v1518 = vand.u32 %v1081, 4294901760
      %1519 = vmatmul.f32.gmra.mxu0 %v1518
      %v1520 = vpop.f32.mrf.mxu0
      %v1521 = vadd.f32 %v1232, %v1520
      %v1522 = vand.u32 %v1084, 4294901760
      %1523 = vmatmul.f32.gmra.mxu0 %v1522
      %v1524 = vpop.f32.mrf.mxu0
      %v1525 = vadd.f32 %v1240, %v1524
      %v1526 = vand.u32 %v1087, 4294901760
      %1527 = vmatmul.f32.gmra.mxu0 %v1526
      %v1528 = vpop.f32.mrf.mxu0
      %v1529 = vadd.f32 %v1248, %v1528
      %v1530 = vand.u32 %v1090, 4294901760
      %1531 = vmatmul.f32.gmra.mxu0 %v1530
      %v1532 = vpop.f32.mrf.mxu0
      %v1533 = vadd.f32 %v1256, %v1532
      %v1534 = vand.u32 %v1093, 4294901760
      %1535 = vmatmul.f32.gmra.mxu0 %v1534
      %v1536 = vpop.f32.mrf.mxu0
      %v1537 = vadd.f32 %v1264, %v1536
      %v1538 = vand.u32 %v1096, 4294901760
      %1539 = vmatmul.f32.gmra.mxu0 %v1538
      %v1540 = vpop.f32.mrf.mxu0
      %v1541 = vadd.f32 %v1272, %v1540
      %v1542 = vand.u32 %v1099, 4294901760
      %1543 = vmatmul.f32.gmra.mxu0 %v1542
      %v1544 = vpop.f32.mrf.mxu0
      %v1545 = vadd.f32 %v1280, %v1544
      %v1546 = vand.u32 %v1102, 4294901760
      %1547 = vmatmul.f32.gmra.mxu0 %v1546
      %v1548 = vpop.f32.mrf.mxu0
      %v1549 = vadd.f32 %v1288, %v1548
      %v1550 = vand.u32 %v1105, 4294901760
      %1551 = vmatmul.f32.gmra.mxu0 %v1550
      %v1552 = vpop.f32.mrf.mxu0
      %v1553 = vadd.f32 %v1296, %v1552
      %v1554 = vand.u32 %v1108, 4294901760
      %1555 = vmatmul.f32.gmra.mxu0 %v1554
      %v1556 = vpop.f32.mrf.mxu0
      %v1557 = vadd.f32 %v1304, %v1556
      %v1558 = vand.u32 %v1111, 4294901760
      %1559 = vmatmul.f32.gmra.mxu0 %v1558
      %v1560 = vpop.f32.mrf.mxu0
      %v1561 = vadd.f32 %v1312, %v1560
      %v1562 = vand.u32 %v1114, 4294901760
      %1563 = vmatmul.f32.gmra.mxu0 %v1562
      %v1564 = vpop.f32.mrf.mxu0
      %v1565 = vadd.f32 %v1320, %v1564
      %v1566 = vand.u32 %v1117, 4294901760
      %1567 = vmatmul.f32.gmra.mxu0 %v1566
      %v1568 = vpop.f32.mrf.mxu0
      %v1569 = vadd.f32 %v1328, %v1568
      %v1570 = vand.u32 %v1120, 4294901760
      %1571 = vmatmul.f32.gmra.mxu0 %v1570
      %v1572 = vpop.f32.mrf.mxu0
      %v1573 = vadd.f32 %v1336, %v1572
      %v1574 = vand.u32 %v1123, 4294901760
      %1575 = vmatmul.f32.gmra.mxu0 %v1574
      %v1576 = vpop.f32.mrf.mxu0
      %v1577 = vadd.f32 %v1344, %v1576
      %v1578 = vand.u32 %v1126, 4294901760
      %1579 = vmatmul.f32.gmra.mxu0 %v1578
      %v1580 = vpop.f32.mrf.mxu0
      %v1581 = vadd.f32 %v1352, %v1580
      %v1582 = vand.u32 %v1129, 4294901760
      %1583 = vmatmul.f32.gmra.mxu0 %v1582
      %v1584 = vpop.f32.mrf.mxu0
      %v1585 = vadd.f32 %v1360, %v1584
      %v1586 = vand.u32 %v1132, 4294901760
      %1587 = vmatmul.f32.gmra.mxu0 %v1586
      %v1588 = vpop.f32.mrf.mxu0
      %v1589 = vadd.f32 %v1368, %v1588
      %v1590 = vand.u32 %v1135, 4294901760
      %1591 = vmatmul.f32.gmra.mxu0 %v1590
      %v1592 = vpop.f32.mrf.mxu0
      %v1593 = vadd.f32 %v1376, %v1592
      %v1594 = vand.u32 %v1138, 4294901760
      %1595 = vmatmul.f32.gmra.mxu0 %v1594
      %v1596 = vpop.f32.mrf.mxu0
      %v1597 = vadd.f32 %v1384, %v1596
      %v1598 = vand.u32 %v1141, 4294901760
      %1599 = vmatmul.f32.gmra.mxu0 %v1598
      %v1600 = vpop.f32.mrf.mxu0
      %v1601 = vadd.f32 %v1392, %v1600
      %v1602 = vand.u32 %v1144, 4294901760
      %1603 = vmatmul.f32.gmra.mxu0 %v1602
      %v1604 = vpop.f32.mrf.mxu0
      %v1605 = vadd.f32 %v1400, %v1604
      %v1606 = vand.u32 %v1147, 4294901760
      %1607 = vmatmul.f32.gmra.mxu0 %v1606
      %v1608 = vpop.f32.mrf.mxu0
      %v1609 = vadd.f32 %v1408, %v1608
      %v1610 = vand.u32 %v1150, 4294901760
      %1611 = vmatmul.f32.gmra.mxu0 %v1610
      %v1612 = vpop.f32.mrf.mxu0
      %v1613 = vadd.f32 %v1416, %v1612
      %v1614 = vand.u32 %v1153, 4294901760
      %1615 = vmatmul.f32.gmra.mxu0 %v1614
      %v1616 = vpop.f32.mrf.mxu0
      %v1617 = vadd.f32 %v1424, %v1616
      %v1618 = vand.u32 %v1156, 4294901760
      %1619 = vmatmul.f32.gmra.mxu0 %v1618
      %v1620 = vpop.f32.mrf.mxu0
      %v1621 = vadd.f32 %v1432, %v1620
      %v1622 = vand.u32 %v1159, 4294901760
      %1623 = vmatmul.f32.gmra.mxu0 %v1622
      %v1624 = vpop.f32.mrf.mxu0
      %v1625 = vadd.f32 %v1440, %v1624
      %1626 = vdwg.mxu0
      %1627 = vmatpush.msra.mxu0 0.0
      %1628 = vmatpush.msra.mxu0 0.0
      %1629 = vmatpush.msra.mxu0 0.0
      %1630 = vmatpush.msra.mxu0 0.0
      %1631 = vmatpush.msra.mxu0 0.0
      %1632 = vmatpush.msra.mxu0 0.0
      %1633 = vmatpush.msra.mxu0 0.0
      %1634 = vmatpush.msra.mxu0 0.0
      %v1635 = vand.u32 %v209, 4294901760
      %v1636 = vsub.f32 %v209, %v1635
      %1637 = vmatpush.msra.mxu0 %v1636
      %v1638 = vand.u32 %v208, 4294901760
      %v1639 = vsub.f32 %v208, %v1638
      %1640 = vmatpush.msra.mxu0 %v1639
      %v1641 = vand.u32 %v207, 4294901760
      %v1642 = vsub.f32 %v207, %v1641
      %1643 = vmatpush.msra.mxu0 %v1642
      %v1644 = vand.u32 %v206, 4294901760
      %v1645 = vsub.f32 %v206, %v1644
      %1646 = vmatpush.msra.mxu0 %v1645
      %v1647 = vand.u32 %v205, 4294901760
      %v1648 = vsub.f32 %v205, %v1647
      %1649 = vmatpush.msra.mxu0 %v1648
      %v1650 = vand.u32 %v204, 4294901760
      %v1651 = vsub.f32 %v204, %v1650
      %1652 = vmatpush.msra.mxu0 %v1651
      %v1653 = vand.u32 %v203, 4294901760
      %v1654 = vsub.f32 %v203, %v1653
      %1655 = vmatpush.msra.mxu0 %v1654
      %v1656 = vand.u32 %v202, 4294901760
      %v1657 = vsub.f32 %v202, %v1656
      %1658 = vmatpush.msra.mxu0 %v1657
      %v1659 = vand.u32 %v1066, 4294901760
      %v1660 = vsub.f32 %v1066, %v1659
      %1661 = vmatmul.f32.gmra.mxu0 %v1660
      %v1662 = vpop.f32.mrf.mxu0
      %v1663 = vadd.f32 %v1501, %v1662
      %v1664 = vand.u32 %v1069, 4294901760
      %v1665 = vsub.f32 %v1069, %v1664
      %1666 = vmatmul.f32.gmra.mxu0 %v1665
      %v1667 = vpop.f32.mrf.mxu0
      %v1668 = vadd.f32 %v1505, %v1667
      %v1669 = vand.u32 %v1072, 4294901760
      %v1670 = vsub.f32 %v1072, %v1669
      %1671 = vmatmul.f32.gmra.mxu0 %v1670
      %v1672 = vpop.f32.mrf.mxu0
      %v1673 = vadd.f32 %v1509, %v1672
      %v1674 = vand.u32 %v1075, 4294901760
      %v1675 = vsub.f32 %v1075, %v1674
      %1676 = vmatmul.f32.gmra.mxu0 %v1675
      %v1677 = vpop.f32.mrf.mxu0
      %v1678 = vadd.f32 %v1513, %v1677
      %v1679 = vand.u32 %v1078, 4294901760
      %v1680 = vsub.f32 %v1078, %v1679
      %1681 = vmatmul.f32.gmra.mxu0 %v1680
      %v1682 = vpop.f32.mrf.mxu0
      %v1683 = vadd.f32 %v1517, %v1682
      %v1684 = vand.u32 %v1081, 4294901760
      %v1685 = vsub.f32 %v1081, %v1684
      %1686 = vmatmul.f32.gmra.mxu0 %v1685
      %v1687 = vpop.f32.mrf.mxu0
      %v1688 = vadd.f32 %v1521, %v1687
      %v1689 = vand.u32 %v1084, 4294901760
      %v1690 = vsub.f32 %v1084, %v1689
      %1691 = vmatmul.f32.gmra.mxu0 %v1690
      %v1692 = vpop.f32.mrf.mxu0
      %v1693 = vadd.f32 %v1525, %v1692
      %v1694 = vand.u32 %v1087, 4294901760
      %v1695 = vsub.f32 %v1087, %v1694
      %1696 = vmatmul.f32.gmra.mxu0 %v1695
      %v1697 = vpop.f32.mrf.mxu0
      %v1698 = vadd.f32 %v1529, %v1697
      %v1699 = vand.u32 %v1090, 4294901760
      %v1700 = vsub.f32 %v1090, %v1699
      %1701 = vmatmul.f32.gmra.mxu0 %v1700
      %v1702 = vpop.f32.mrf.mxu0
      %v1703 = vadd.f32 %v1533, %v1702
      %v1704 = vand.u32 %v1093, 4294901760
      %v1705 = vsub.f32 %v1093, %v1704
      %1706 = vmatmul.f32.gmra.mxu0 %v1705
      %v1707 = vpop.f32.mrf.mxu0
      %v1708 = vadd.f32 %v1537, %v1707
      %v1709 = vand.u32 %v1096, 4294901760
      %v1710 = vsub.f32 %v1096, %v1709
      %1711 = vmatmul.f32.gmra.mxu0 %v1710
      %v1712 = vpop.f32.mrf.mxu0
      %v1713 = vadd.f32 %v1541, %v1712
      %v1714 = vand.u32 %v1099, 4294901760
      %v1715 = vsub.f32 %v1099, %v1714
      %1716 = vmatmul.f32.gmra.mxu0 %v1715
      %v1717 = vpop.f32.mrf.mxu0
      %v1718 = vadd.f32 %v1545, %v1717
      %v1719 = vand.u32 %v1102, 4294901760
      %v1720 = vsub.f32 %v1102, %v1719
      %1721 = vmatmul.f32.gmra.mxu0 %v1720
      %v1722 = vpop.f32.mrf.mxu0
      %v1723 = vadd.f32 %v1549, %v1722
      %v1724 = vand.u32 %v1105, 4294901760
      %v1725 = vsub.f32 %v1105, %v1724
      %1726 = vmatmul.f32.gmra.mxu0 %v1725
      %v1727 = vpop.f32.mrf.mxu0
      %v1728 = vadd.f32 %v1553, %v1727
      %v1729 = vand.u32 %v1108, 4294901760
      %v1730 = vsub.f32 %v1108, %v1729
      %1731 = vmatmul.f32.gmra.mxu0 %v1730
      %v1732 = vpop.f32.mrf.mxu0
      %v1733 = vadd.f32 %v1557, %v1732
      %v1734 = vand.u32 %v1111, 4294901760
      %v1735 = vsub.f32 %v1111, %v1734
      %1736 = vmatmul.f32.gmra.mxu0 %v1735
      %v1737 = vpop.f32.mrf.mxu0
      %v1738 = vadd.f32 %v1561, %v1737
      %v1739 = vand.u32 %v1114, 4294901760
      %v1740 = vsub.f32 %v1114, %v1739
      %1741 = vmatmul.f32.gmra.mxu0 %v1740
      %v1742 = vpop.f32.mrf.mxu0
      %v1743 = vadd.f32 %v1565, %v1742
      %v1744 = vand.u32 %v1117, 4294901760
      %v1745 = vsub.f32 %v1117, %v1744
      %1746 = vmatmul.f32.gmra.mxu0 %v1745
      %v1747 = vpop.f32.mrf.mxu0
      %v1748 = vadd.f32 %v1569, %v1747
      %v1749 = vand.u32 %v1120, 4294901760
      %v1750 = vsub.f32 %v1120, %v1749
      %1751 = vmatmul.f32.gmra.mxu0 %v1750
      %v1752 = vpop.f32.mrf.mxu0
      %v1753 = vadd.f32 %v1573, %v1752
      %v1754 = vand.u32 %v1123, 4294901760
      %v1755 = vsub.f32 %v1123, %v1754
      %1756 = vmatmul.f32.gmra.mxu0 %v1755
      %v1757 = vpop.f32.mrf.mxu0
      %v1758 = vadd.f32 %v1577, %v1757
      %v1759 = vand.u32 %v1126, 4294901760
      %v1760 = vsub.f32 %v1126, %v1759
      %1761 = vmatmul.f32.gmra.mxu0 %v1760
      %v1762 = vpop.f32.mrf.mxu0
      %v1763 = vadd.f32 %v1581, %v1762
      %v1764 = vand.u32 %v1129, 4294901760
      %v1765 = vsub.f32 %v1129, %v1764
      %1766 = vmatmul.f32.gmra.mxu0 %v1765
      %v1767 = vpop.f32.mrf.mxu0
      %v1768 = vadd.f32 %v1585, %v1767
      %v1769 = vand.u32 %v1132, 4294901760
      %v1770 = vsub.f32 %v1132, %v1769
      %1771 = vmatmul.f32.gmra.mxu0 %v1770
      %v1772 = vpop.f32.mrf.mxu0
      %v1773 = vadd.f32 %v1589, %v1772
      %v1774 = vand.u32 %v1135, 4294901760
      %v1775 = vsub.f32 %v1135, %v1774
      %1776 = vmatmul.f32.gmra.mxu0 %v1775
      %v1777 = vpop.f32.mrf.mxu0
      %v1778 = vadd.f32 %v1593, %v1777
      %v1779 = vand.u32 %v1138, 4294901760
      %v1780 = vsub.f32 %v1138, %v1779
      %1781 = vmatmul.f32.gmra.mxu0 %v1780
      %v1782 = vpop.f32.mrf.mxu0
      %v1783 = vadd.f32 %v1597, %v1782
      %v1784 = vand.u32 %v1141, 4294901760
      %v1785 = vsub.f32 %v1141, %v1784
      %1786 = vmatmul.f32.gmra.mxu0 %v1785
      %v1787 = vpop.f32.mrf.mxu0
      %v1788 = vadd.f32 %v1601, %v1787
      %v1789 = vand.u32 %v1144, 4294901760
      %v1790 = vsub.f32 %v1144, %v1789
      %1791 = vmatmul.f32.gmra.mxu0 %v1790
      %v1792 = vpop.f32.mrf.mxu0
      %v1793 = vadd.f32 %v1605, %v1792
      %v1794 = vand.u32 %v1147, 4294901760
      %v1795 = vsub.f32 %v1147, %v1794
      %1796 = vmatmul.f32.gmra.mxu0 %v1795
      %v1797 = vpop.f32.mrf.mxu0
      %v1798 = vadd.f32 %v1609, %v1797
      %v1799 = vand.u32 %v1150, 4294901760
      %v1800 = vsub.f32 %v1150, %v1799
      %1801 = vmatmul.f32.gmra.mxu0 %v1800
      %v1802 = vpop.f32.mrf.mxu0
      %v1803 = vadd.f32 %v1613, %v1802
      %v1804 = vand.u32 %v1153, 4294901760
      %v1805 = vsub.f32 %v1153, %v1804
      %1806 = vmatmul.f32.gmra.mxu0 %v1805
      %v1807 = vpop.f32.mrf.mxu0
      %v1808 = vadd.f32 %v1617, %v1807
      %v1809 = vand.u32 %v1156, 4294901760
      %v1810 = vsub.f32 %v1156, %v1809
      %1811 = vmatmul.f32.gmra.mxu0 %v1810
      %v1812 = vpop.f32.mrf.mxu0
      %v1813 = vadd.f32 %v1621, %v1812
      %v1814 = vand.u32 %v1159, 4294901760
      %v1815 = vsub.f32 %v1159, %v1814
      %1816 = vmatmul.f32.gmra.mxu0 %v1815
      %v1817 = vpop.f32.mrf.mxu0
      %v1818 = vadd.f32 %v1625, %v1817
      %1819 = vdwg.mxu0
      %1820 = vmatpush.msra.mxu0 0.0
      %1821 = vmatpush.msra.mxu0 0.0
      %1822 = vmatpush.msra.mxu0 0.0
      %1823 = vmatpush.msra.mxu0 0.0
      %1824 = vmatpush.msra.mxu0 0.0
      %1825 = vmatpush.msra.mxu0 0.0
      %1826 = vmatpush.msra.mxu0 0.0
      %1827 = vmatpush.msra.mxu0 0.0
      %v1828 = vand.u32 %v209, 4294901760
      %1829 = vmatpush.msra.mxu0 %v1828
      %v1830 = vand.u32 %v208, 4294901760
      %1831 = vmatpush.msra.mxu0 %v1830
      %v1832 = vand.u32 %v207, 4294901760
      %1833 = vmatpush.msra.mxu0 %v1832
      %v1834 = vand.u32 %v206, 4294901760
      %1835 = vmatpush.msra.mxu0 %v1834
      %v1836 = vand.u32 %v205, 4294901760
      %1837 = vmatpush.msra.mxu0 %v1836
      %v1838 = vand.u32 %v204, 4294901760
      %1839 = vmatpush.msra.mxu0 %v1838
      %v1840 = vand.u32 %v203, 4294901760
      %1841 = vmatpush.msra.mxu0 %v1840
      %v1842 = vand.u32 %v202, 4294901760
      %1843 = vmatpush.msra.mxu0 %v1842
      %v1844 = vand.u32 %v1066, 4294901760
      %v1845 = vsub.f32 %v1066, %v1844
      %v1846 = vand.u32 %v1845, 4294901760
      %1847 = vmatmul.f32.gmra.mxu0 %v1846
      %v1848 = vpop.f32.mrf.mxu0
      %v1849 = vadd.f32 %v1663, %v1848
      %v1850 = vand.u32 %v1069, 4294901760
      %v1851 = vsub.f32 %v1069, %v1850
      %v1852 = vand.u32 %v1851, 4294901760
      %1853 = vmatmul.f32.gmra.mxu0 %v1852
      %v1854 = vpop.f32.mrf.mxu0
      %v1855 = vadd.f32 %v1668, %v1854
      %v1856 = vand.u32 %v1072, 4294901760
      %v1857 = vsub.f32 %v1072, %v1856
      %v1858 = vand.u32 %v1857, 4294901760
      %1859 = vmatmul.f32.gmra.mxu0 %v1858
      %v1860 = vpop.f32.mrf.mxu0
      %v1861 = vadd.f32 %v1673, %v1860
      %v1862 = vand.u32 %v1075, 4294901760
      %v1863 = vsub.f32 %v1075, %v1862
      %v1864 = vand.u32 %v1863, 4294901760
      %1865 = vmatmul.f32.gmra.mxu0 %v1864
      %v1866 = vpop.f32.mrf.mxu0
      %v1867 = vadd.f32 %v1678, %v1866
      %v1868 = vand.u32 %v1078, 4294901760
      %v1869 = vsub.f32 %v1078, %v1868
      %v1870 = vand.u32 %v1869, 4294901760
      %1871 = vmatmul.f32.gmra.mxu0 %v1870
      %v1872 = vpop.f32.mrf.mxu0
      %v1873 = vadd.f32 %v1683, %v1872
      %v1874 = vand.u32 %v1081, 4294901760
      %v1875 = vsub.f32 %v1081, %v1874
      %v1876 = vand.u32 %v1875, 4294901760
      %1877 = vmatmul.f32.gmra.mxu0 %v1876
      %v1878 = vpop.f32.mrf.mxu0
      %v1879 = vadd.f32 %v1688, %v1878
      %v1880 = vand.u32 %v1084, 4294901760
      %v1881 = vsub.f32 %v1084, %v1880
      %v1882 = vand.u32 %v1881, 4294901760
      %1883 = vmatmul.f32.gmra.mxu0 %v1882
      %v1884 = vpop.f32.mrf.mxu0
      %v1885 = vadd.f32 %v1693, %v1884
      %v1886 = vand.u32 %v1087, 4294901760
      %v1887 = vsub.f32 %v1087, %v1886
      %v1888 = vand.u32 %v1887, 4294901760
      %1889 = vmatmul.f32.gmra.mxu0 %v1888
      %v1890 = vpop.f32.mrf.mxu0
      %v1891 = vadd.f32 %v1698, %v1890
      %v1892 = vand.u32 %v1090, 4294901760
      %v1893 = vsub.f32 %v1090, %v1892
      %v1894 = vand.u32 %v1893, 4294901760
      %1895 = vmatmul.f32.gmra.mxu0 %v1894
      %v1896 = vpop.f32.mrf.mxu0
      %v1897 = vadd.f32 %v1703, %v1896
      %v1898 = vand.u32 %v1093, 4294901760
      %v1899 = vsub.f32 %v1093, %v1898
      %v1900 = vand.u32 %v1899, 4294901760
      %1901 = vmatmul.f32.gmra.mxu0 %v1900
      %v1902 = vpop.f32.mrf.mxu0
      %v1903 = vadd.f32 %v1708, %v1902
      %v1904 = vand.u32 %v1096, 4294901760
      %v1905 = vsub.f32 %v1096, %v1904
      %v1906 = vand.u32 %v1905, 4294901760
      %1907 = vmatmul.f32.gmra.mxu0 %v1906
      %v1908 = vpop.f32.mrf.mxu0
      %v1909 = vadd.f32 %v1713, %v1908
      %v1910 = vand.u32 %v1099, 4294901760
      %v1911 = vsub.f32 %v1099, %v1910
      %v1912 = vand.u32 %v1911, 4294901760
      %1913 = vmatmul.f32.gmra.mxu0 %v1912
      %v1914 = vpop.f32.mrf.mxu0
      %v1915 = vadd.f32 %v1718, %v1914
      %v1916 = vand.u32 %v1102, 4294901760
      %v1917 = vsub.f32 %v1102, %v1916
      %v1918 = vand.u32 %v1917, 4294901760
      %1919 = vmatmul.f32.gmra.mxu0 %v1918
      %v1920 = vpop.f32.mrf.mxu0
      %v1921 = vadd.f32 %v1723, %v1920
      %v1922 = vand.u32 %v1105, 4294901760
      %v1923 = vsub.f32 %v1105, %v1922
      %v1924 = vand.u32 %v1923, 4294901760
      %1925 = vmatmul.f32.gmra.mxu0 %v1924
      %v1926 = vpop.f32.mrf.mxu0
      %v1927 = vadd.f32 %v1728, %v1926
      %v1928 = vand.u32 %v1108, 4294901760
      %v1929 = vsub.f32 %v1108, %v1928
      %v1930 = vand.u32 %v1929, 4294901760
      %1931 = vmatmul.f32.gmra.mxu0 %v1930
      %v1932 = vpop.f32.mrf.mxu0
      %v1933 = vadd.f32 %v1733, %v1932
      %v1934 = vand.u32 %v1111, 4294901760
      %v1935 = vsub.f32 %v1111, %v1934
      %v1936 = vand.u32 %v1935, 4294901760
      %1937 = vmatmul.f32.gmra.mxu0 %v1936
      %v1938 = vpop.f32.mrf.mxu0
      %v1939 = vadd.f32 %v1738, %v1938
      %v1940 = vand.u32 %v1114, 4294901760
      %v1941 = vsub.f32 %v1114, %v1940
      %v1942 = vand.u32 %v1941, 4294901760
      %1943 = vmatmul.f32.gmra.mxu0 %v1942
      %v1944 = vpop.f32.mrf.mxu0
      %v1945 = vadd.f32 %v1743, %v1944
      %v1946 = vand.u32 %v1117, 4294901760
      %v1947 = vsub.f32 %v1117, %v1946
      %v1948 = vand.u32 %v1947, 4294901760
      %1949 = vmatmul.f32.gmra.mxu0 %v1948
      %v1950 = vpop.f32.mrf.mxu0
      %v1951 = vadd.f32 %v1748, %v1950
      %v1952 = vand.u32 %v1120, 4294901760
      %v1953 = vsub.f32 %v1120, %v1952
      %v1954 = vand.u32 %v1953, 4294901760
      %1955 = vmatmul.f32.gmra.mxu0 %v1954
      %v1956 = vpop.f32.mrf.mxu0
      %v1957 = vadd.f32 %v1753, %v1956
      %v1958 = vand.u32 %v1123, 4294901760
      %v1959 = vsub.f32 %v1123, %v1958
      %v1960 = vand.u32 %v1959, 4294901760
      %1961 = vmatmul.f32.gmra.mxu0 %v1960
      %v1962 = vpop.f32.mrf.mxu0
      %v1963 = vadd.f32 %v1758, %v1962
      %v1964 = vand.u32 %v1126, 4294901760
      %v1965 = vsub.f32 %v1126, %v1964
      %v1966 = vand.u32 %v1965, 4294901760
      %1967 = vmatmul.f32.gmra.mxu0 %v1966
      %v1968 = vpop.f32.mrf.mxu0
      %v1969 = vadd.f32 %v1763, %v1968
      %v1970 = vand.u32 %v1129, 4294901760
      %v1971 = vsub.f32 %v1129, %v1970
      %v1972 = vand.u32 %v1971, 4294901760
      %1973 = vmatmul.f32.gmra.mxu0 %v1972
      %v1974 = vpop.f32.mrf.mxu0
      %v1975 = vadd.f32 %v1768, %v1974
      %v1976 = vand.u32 %v1132, 4294901760
      %v1977 = vsub.f32 %v1132, %v1976
      %v1978 = vand.u32 %v1977, 4294901760
      %1979 = vmatmul.f32.gmra.mxu0 %v1978
      %v1980 = vpop.f32.mrf.mxu0
      %v1981 = vadd.f32 %v1773, %v1980
      %v1982 = vand.u32 %v1135, 4294901760
      %v1983 = vsub.f32 %v1135, %v1982
      %v1984 = vand.u32 %v1983, 4294901760
      %1985 = vmatmul.f32.gmra.mxu0 %v1984
      %v1986 = vpop.f32.mrf.mxu0
      %v1987 = vadd.f32 %v1778, %v1986
      %v1988 = vand.u32 %v1138, 4294901760
      %v1989 = vsub.f32 %v1138, %v1988
      %v1990 = vand.u32 %v1989, 4294901760
      %1991 = vmatmul.f32.gmra.mxu0 %v1990
      %v1992 = vpop.f32.mrf.mxu0
      %v1993 = vadd.f32 %v1783, %v1992
      %v1994 = vand.u32 %v1141, 4294901760
      %v1995 = vsub.f32 %v1141, %v1994
      %v1996 = vand.u32 %v1995, 4294901760
      %1997 = vmatmul.f32.gmra.mxu0 %v1996
      %v1998 = vpop.f32.mrf.mxu0
      %v1999 = vadd.f32 %v1788, %v1998
      %v2000 = vand.u32 %v1144, 4294901760
      %v2001 = vsub.f32 %v1144, %v2000
      %v2002 = vand.u32 %v2001, 4294901760
      %2003 = vmatmul.f32.gmra.mxu0 %v2002
      %v2004 = vpop.f32.mrf.mxu0
      %v2005 = vadd.f32 %v1793, %v2004
      %v2006 = vand.u32 %v1147, 4294901760
      %v2007 = vsub.f32 %v1147, %v2006
      %v2008 = vand.u32 %v2007, 4294901760
      %2009 = vmatmul.f32.gmra.mxu0 %v2008
      %v2010 = vpop.f32.mrf.mxu0
      %v2011 = vadd.f32 %v1798, %v2010
      %v2012 = vand.u32 %v1150, 4294901760
      %v2013 = vsub.f32 %v1150, %v2012
      %v2014 = vand.u32 %v2013, 4294901760
      %2015 = vmatmul.f32.gmra.mxu0 %v2014
      %v2016 = vpop.f32.mrf.mxu0
      %v2017 = vadd.f32 %v1803, %v2016
      %v2018 = vand.u32 %v1153, 4294901760
      %v2019 = vsub.f32 %v1153, %v2018
      %v2020 = vand.u32 %v2019, 4294901760
      %2021 = vmatmul.f32.gmra.mxu0 %v2020
      %v2022 = vpop.f32.mrf.mxu0
      %v2023 = vadd.f32 %v1808, %v2022
      %v2024 = vand.u32 %v1156, 4294901760
      %v2025 = vsub.f32 %v1156, %v2024
      %v2026 = vand.u32 %v2025, 4294901760
      %2027 = vmatmul.f32.gmra.mxu0 %v2026
      %v2028 = vpop.f32.mrf.mxu0
      %v2029 = vadd.f32 %v1813, %v2028
      %v2030 = vand.u32 %v1159, 4294901760
      %v2031 = vsub.f32 %v1159, %v2030
      %v2032 = vand.u32 %v2031, 4294901760
      %2033 = vmatmul.f32.gmra.mxu0 %v2032
      %v2034 = vpop.f32.mrf.mxu0
      %v2035 = vadd.f32 %v1818, %v2034
      %2036 = vdwg.mxu0
      %2037 = vmatpush.msra.mxu0 0.0
      %2038 = vmatpush.msra.mxu0 0.0
      %2039 = vmatpush.msra.mxu0 0.0
      %2040 = vmatpush.msra.mxu0 0.0
      %2041 = vmatpush.msra.mxu0 0.0
      %2042 = vmatpush.msra.mxu0 0.0
      %2043 = vmatpush.msra.mxu0 0.0
      %2044 = vmatpush.msra.mxu0 0.0
      %v2045 = vand.u32 %v209, 4294901760
      %v2046 = vsub.f32 %v209, %v2045
      %v2047 = vand.u32 %v2046, 4294901760
      %2048 = vmatpush.msra.mxu0 %v2047
      %v2049 = vand.u32 %v208, 4294901760
      %v2050 = vsub.f32 %v208, %v2049
      %v2051 = vand.u32 %v2050, 4294901760
      %2052 = vmatpush.msra.mxu0 %v2051
      %v2053 = vand.u32 %v207, 4294901760
      %v2054 = vsub.f32 %v207, %v2053
      %v2055 = vand.u32 %v2054, 4294901760
      %2056 = vmatpush.msra.mxu0 %v2055
      %v2057 = vand.u32 %v206, 4294901760
      %v2058 = vsub.f32 %v206, %v2057
      %v2059 = vand.u32 %v2058, 4294901760
      %2060 = vmatpush.msra.mxu0 %v2059
      %v2061 = vand.u32 %v205, 4294901760
      %v2062 = vsub.f32 %v205, %v2061
      %v2063 = vand.u32 %v2062, 4294901760
      %2064 = vmatpush.msra.mxu0 %v2063
      %v2065 = vand.u32 %v204, 4294901760
      %v2066 = vsub.f32 %v204, %v2065
      %v2067 = vand.u32 %v2066, 4294901760
      %2068 = vmatpush.msra.mxu0 %v2067
      %v2069 = vand.u32 %v203, 4294901760
      %v2070 = vsub.f32 %v203, %v2069
      %v2071 = vand.u32 %v2070, 4294901760
      %2072 = vmatpush.msra.mxu0 %v2071
      %v2073 = vand.u32 %v202, 4294901760
      %v2074 = vsub.f32 %v202, %v2073
      %v2075 = vand.u32 %v2074, 4294901760
      %2076 = vmatpush.msra.mxu0 %v2075
      %v2077 = vand.u32 %v1066, 4294901760
      %2078 = vmatmul.f32.gmra.mxu0 %v2077
      %v2079 = vpop.f32.mrf.mxu0
      %v2080 = vadd.f32 %v1849, %v2079
      %v2081 = vand.u32 %v1069, 4294901760
      %2082 = vmatmul.f32.gmra.mxu0 %v2081
      %v2083 = vpop.f32.mrf.mxu0
      %v2084 = vadd.f32 %v1855, %v2083
      %v2085 = vand.u32 %v1072, 4294901760
      %2086 = vmatmul.f32.gmra.mxu0 %v2085
      %v2087 = vpop.f32.mrf.mxu0
      %v2088 = vadd.f32 %v1861, %v2087
      %v2089 = vand.u32 %v1075, 4294901760
      %2090 = vmatmul.f32.gmra.mxu0 %v2089
      %v2091 = vpop.f32.mrf.mxu0
      %v2092 = vadd.f32 %v1867, %v2091
      %v2093 = vand.u32 %v1078, 4294901760
      %2094 = vmatmul.f32.gmra.mxu0 %v2093
      %v2095 = vpop.f32.mrf.mxu0
      %v2096 = vadd.f32 %v1873, %v2095
      %v2097 = vand.u32 %v1081, 4294901760
      %2098 = vmatmul.f32.gmra.mxu0 %v2097
      %v2099 = vpop.f32.mrf.mxu0
      %v2100 = vadd.f32 %v1879, %v2099
      %v2101 = vand.u32 %v1084, 4294901760
      %2102 = vmatmul.f32.gmra.mxu0 %v2101
      %v2103 = vpop.f32.mrf.mxu0
      %v2104 = vadd.f32 %v1885, %v2103
      %v2105 = vand.u32 %v1087, 4294901760
      %2106 = vmatmul.f32.gmra.mxu0 %v2105
      %v2107 = vpop.f32.mrf.mxu0
      %v2108 = vadd.f32 %v1891, %v2107
      %v2109 = vand.u32 %v1090, 4294901760
      %2110 = vmatmul.f32.gmra.mxu0 %v2109
      %v2111 = vpop.f32.mrf.mxu0
      %v2112 = vadd.f32 %v1897, %v2111
      %v2113 = vand.u32 %v1093, 4294901760
      %2114 = vmatmul.f32.gmra.mxu0 %v2113
      %v2115 = vpop.f32.mrf.mxu0
      %v2116 = vadd.f32 %v1903, %v2115
      %v2117 = vand.u32 %v1096, 4294901760
      %2118 = vmatmul.f32.gmra.mxu0 %v2117
      %v2119 = vpop.f32.mrf.mxu0
      %v2120 = vadd.f32 %v1909, %v2119
      %v2121 = vand.u32 %v1099, 4294901760
      %2122 = vmatmul.f32.gmra.mxu0 %v2121
      %v2123 = vpop.f32.mrf.mxu0
      %v2124 = vadd.f32 %v1915, %v2123
      %v2125 = vand.u32 %v1102, 4294901760
      %2126 = vmatmul.f32.gmra.mxu0 %v2125
      %v2127 = vpop.f32.mrf.mxu0
      %v2128 = vadd.f32 %v1921, %v2127
      %v2129 = vand.u32 %v1105, 4294901760
      %2130 = vmatmul.f32.gmra.mxu0 %v2129
      %v2131 = vpop.f32.mrf.mxu0
      %v2132 = vadd.f32 %v1927, %v2131
      %v2133 = vand.u32 %v1108, 4294901760
      %2134 = vmatmul.f32.gmra.mxu0 %v2133
      %v2135 = vpop.f32.mrf.mxu0
      %v2136 = vadd.f32 %v1933, %v2135
      %v2137 = vand.u32 %v1111, 4294901760
      %2138 = vmatmul.f32.gmra.mxu0 %v2137
      %v2139 = vpop.f32.mrf.mxu0
      %v2140 = vadd.f32 %v1939, %v2139
      %v2141 = vand.u32 %v1114, 4294901760
      %2142 = vmatmul.f32.gmra.mxu0 %v2141
      %v2143 = vpop.f32.mrf.mxu0
      %v2144 = vadd.f32 %v1945, %v2143
      %v2145 = vand.u32 %v1117, 4294901760
      %2146 = vmatmul.f32.gmra.mxu0 %v2145
      %v2147 = vpop.f32.mrf.mxu0
      %v2148 = vadd.f32 %v1951, %v2147
      %v2149 = vand.u32 %v1120, 4294901760
      %2150 = vmatmul.f32.gmra.mxu0 %v2149
      %v2151 = vpop.f32.mrf.mxu0
      %v2152 = vadd.f32 %v1957, %v2151
      %v2153 = vand.u32 %v1123, 4294901760
      %2154 = vmatmul.f32.gmra.mxu0 %v2153
      %v2155 = vpop.f32.mrf.mxu0
      %v2156 = vadd.f32 %v1963, %v2155
      %v2157 = vand.u32 %v1126, 4294901760
      %2158 = vmatmul.f32.gmra.mxu0 %v2157
      %v2159 = vpop.f32.mrf.mxu0
      %v2160 = vadd.f32 %v1969, %v2159
      %v2161 = vand.u32 %v1129, 4294901760
      %2162 = vmatmul.f32.gmra.mxu0 %v2161
      %v2163 = vpop.f32.mrf.mxu0
      %v2164 = vadd.f32 %v1975, %v2163
      %v2165 = vand.u32 %v1132, 4294901760
      %2166 = vmatmul.f32.gmra.mxu0 %v2165
      %v2167 = vpop.f32.mrf.mxu0
      %v2168 = vadd.f32 %v1981, %v2167
      %v2169 = vand.u32 %v1135, 4294901760
      %2170 = vmatmul.f32.gmra.mxu0 %v2169
      %v2171 = vpop.f32.mrf.mxu0
      %v2172 = vadd.f32 %v1987, %v2171
      %v2173 = vand.u32 %v1138, 4294901760
      %2174 = vmatmul.f32.gmra.mxu0 %v2173
      %v2175 = vpop.f32.mrf.mxu0
      %v2176 = vadd.f32 %v1993, %v2175
      %v2177 = vand.u32 %v1141, 4294901760
      %2178 = vmatmul.f32.gmra.mxu0 %v2177
      %v2179 = vpop.f32.mrf.mxu0
      %v2180 = vadd.f32 %v1999, %v2179
      %v2181 = vand.u32 %v1144, 4294901760
      %2182 = vmatmul.f32.gmra.mxu0 %v2181
      %v2183 = vpop.f32.mrf.mxu0
      %v2184 = vadd.f32 %v2005, %v2183
      %v2185 = vand.u32 %v1147, 4294901760
      %2186 = vmatmul.f32.gmra.mxu0 %v2185
      %v2187 = vpop.f32.mrf.mxu0
      %v2188 = vadd.f32 %v2011, %v2187
      %v2189 = vand.u32 %v1150, 4294901760
      %2190 = vmatmul.f32.gmra.mxu0 %v2189
      %v2191 = vpop.f32.mrf.mxu0
      %v2192 = vadd.f32 %v2017, %v2191
      %v2193 = vand.u32 %v1153, 4294901760
      %2194 = vmatmul.f32.gmra.mxu0 %v2193
      %v2195 = vpop.f32.mrf.mxu0
      %v2196 = vadd.f32 %v2023, %v2195
      %v2197 = vand.u32 %v1156, 4294901760
      %2198 = vmatmul.f32.gmra.mxu0 %v2197
      %v2199 = vpop.f32.mrf.mxu0
      %v2200 = vadd.f32 %v2029, %v2199
      %v2201 = vand.u32 %v1159, 4294901760
      %2202 = vmatmul.f32.gmra.mxu0 %v2201
      %v2203 = vpop.f32.mrf.mxu0
      %v2204 = vadd.f32 %v2035, %v2203
      %2205 = vdwg.mxu0
      %2206 = vmatpush.msra.mxu0 0.0
      %2207 = vmatpush.msra.mxu0 0.0
      %2208 = vmatpush.msra.mxu0 0.0
      %2209 = vmatpush.msra.mxu0 0.0
      %2210 = vmatpush.msra.mxu0 0.0
      %2211 = vmatpush.msra.mxu0 0.0
      %2212 = vmatpush.msra.mxu0 0.0
      %2213 = vmatpush.msra.mxu0 0.0
      %v2214 = vand.u32 %v209, 4294901760
      %2215 = vmatpush.msra.mxu0 %v2214
      %v2216 = vand.u32 %v208, 4294901760
      %2217 = vmatpush.msra.mxu0 %v2216
      %v2218 = vand.u32 %v207, 4294901760
      %2219 = vmatpush.msra.mxu0 %v2218
      %v2220 = vand.u32 %v206, 4294901760
      %2221 = vmatpush.msra.mxu0 %v2220
      %v2222 = vand.u32 %v205, 4294901760
      %2223 = vmatpush.msra.mxu0 %v2222
      %v2224 = vand.u32 %v204, 4294901760
      %2225 = vmatpush.msra.mxu0 %v2224
      %v2226 = vand.u32 %v203, 4294901760
      %2227 = vmatpush.msra.mxu0 %v2226
      %v2228 = vand.u32 %v202, 4294901760
      %2229 = vmatpush.msra.mxu0 %v2228
      %v2230 = vand.u32 %v1066, 4294901760
      %2231 = vmatmul.f32.gmra.mxu0 %v2230
      %v2232 = vpop.f32.mrf.mxu0
      %v2233 = vadd.f32 %v2080, %v2232
      %v2234 = vand.u32 %v1069, 4294901760
      %2235 = vmatmul.f32.gmra.mxu0 %v2234
      %v2236 = vpop.f32.mrf.mxu0
      %v2237 = vadd.f32 %v2084, %v2236
      %v2238 = vand.u32 %v1072, 4294901760
      %2239 = vmatmul.f32.gmra.mxu0 %v2238
      %v2240 = vpop.f32.mrf.mxu0
      %v2241 = vadd.f32 %v2088, %v2240
      %v2242 = vand.u32 %v1075, 4294901760
      %2243 = vmatmul.f32.gmra.mxu0 %v2242
      %v2244 = vpop.f32.mrf.mxu0
      %v2245 = vadd.f32 %v2092, %v2244
      %v2246 = vand.u32 %v1078, 4294901760
      %2247 = vmatmul.f32.gmra.mxu0 %v2246
      %v2248 = vpop.f32.mrf.mxu0
      %v2249 = vadd.f32 %v2096, %v2248
      %v2250 = vand.u32 %v1081, 4294901760
      %2251 = vmatmul.f32.gmra.mxu0 %v2250
      %v2252 = vpop.f32.mrf.mxu0
      %v2253 = vadd.f32 %v2100, %v2252
      %v2254 = vand.u32 %v1084, 4294901760
      %2255 = vmatmul.f32.gmra.mxu0 %v2254
      %v2256 = vpop.f32.mrf.mxu0
      %v2257 = vadd.f32 %v2104, %v2256
      %v2258 = vand.u32 %v1087, 4294901760
      %2259 = vmatmul.f32.gmra.mxu0 %v2258
      %v2260 = vpop.f32.mrf.mxu0
      %v2261 = vadd.f32 %v2108, %v2260
      %v2262 = vand.u32 %v1090, 4294901760
      %2263 = vmatmul.f32.gmra.mxu0 %v2262
      %v2264 = vpop.f32.mrf.mxu0
      %v2265 = vadd.f32 %v2112, %v2264
      %v2266 = vand.u32 %v1093, 4294901760
      %2267 = vmatmul.f32.gmra.mxu0 %v2266
      %v2268 = vpop.f32.mrf.mxu0
      %v2269 = vadd.f32 %v2116, %v2268
      %v2270 = vand.u32 %v1096, 4294901760
      %2271 = vmatmul.f32.gmra.mxu0 %v2270
      %v2272 = vpop.f32.mrf.mxu0
      %v2273 = vadd.f32 %v2120, %v2272
      %v2274 = vand.u32 %v1099, 4294901760
      %2275 = vmatmul.f32.gmra.mxu0 %v2274
      %v2276 = vpop.f32.mrf.mxu0
      %v2277 = vadd.f32 %v2124, %v2276
      %v2278 = vand.u32 %v1102, 4294901760
      %2279 = vmatmul.f32.gmra.mxu0 %v2278
      %v2280 = vpop.f32.mrf.mxu0
      %v2281 = vadd.f32 %v2128, %v2280
      %v2282 = vand.u32 %v1105, 4294901760
      %2283 = vmatmul.f32.gmra.mxu0 %v2282
      %v2284 = vpop.f32.mrf.mxu0
      %v2285 = vadd.f32 %v2132, %v2284
      %v2286 = vand.u32 %v1108, 4294901760
      %2287 = vmatmul.f32.gmra.mxu0 %v2286
      %v2288 = vpop.f32.mrf.mxu0
      %v2289 = vadd.f32 %v2136, %v2288
      %v2290 = vand.u32 %v1111, 4294901760
      %2291 = vmatmul.f32.gmra.mxu0 %v2290
      %v2292 = vpop.f32.mrf.mxu0
      %v2293 = vadd.f32 %v2140, %v2292
      %v2294 = vand.u32 %v1114, 4294901760
      %2295 = vmatmul.f32.gmra.mxu0 %v2294
      %v2296 = vpop.f32.mrf.mxu0
      %v2297 = vadd.f32 %v2144, %v2296
      %v2298 = vand.u32 %v1117, 4294901760
      %2299 = vmatmul.f32.gmra.mxu0 %v2298
      %v2300 = vpop.f32.mrf.mxu0
      %v2301 = vadd.f32 %v2148, %v2300
      %v2302 = vand.u32 %v1120, 4294901760
      %2303 = vmatmul.f32.gmra.mxu0 %v2302
      %v2304 = vpop.f32.mrf.mxu0
      %v2305 = vadd.f32 %v2152, %v2304
      %v2306 = vand.u32 %v1123, 4294901760
      %2307 = vmatmul.f32.gmra.mxu0 %v2306
      %v2308 = vpop.f32.mrf.mxu0
      %v2309 = vadd.f32 %v2156, %v2308
      %v2310 = vand.u32 %v1126, 4294901760
      %2311 = vmatmul.f32.gmra.mxu0 %v2310
      %v2312 = vpop.f32.mrf.mxu0
      %v2313 = vadd.f32 %v2160, %v2312
      %v2314 = vand.u32 %v1129, 4294901760
      %2315 = vmatmul.f32.gmra.mxu0 %v2314
      %v2316 = vpop.f32.mrf.mxu0
      %v2317 = vadd.f32 %v2164, %v2316
      %v2318 = vand.u32 %v1132, 4294901760
      %2319 = vmatmul.f32.gmra.mxu0 %v2318
      %v2320 = vpop.f32.mrf.mxu0
      %v2321 = vadd.f32 %v2168, %v2320
      %v2322 = vand.u32 %v1135, 4294901760
      %2323 = vmatmul.f32.gmra.mxu0 %v2322
      %v2324 = vpop.f32.mrf.mxu0
      %v2325 = vadd.f32 %v2172, %v2324
      %v2326 = vand.u32 %v1138, 4294901760
      %2327 = vmatmul.f32.gmra.mxu0 %v2326
      %v2328 = vpop.f32.mrf.mxu0
      %v2329 = vadd.f32 %v2176, %v2328
      %v2330 = vand.u32 %v1141, 4294901760
      %2331 = vmatmul.f32.gmra.mxu0 %v2330
      %v2332 = vpop.f32.mrf.mxu0
      %v2333 = vadd.f32 %v2180, %v2332
      %v2334 = vand.u32 %v1144, 4294901760
      %2335 = vmatmul.f32.gmra.mxu0 %v2334
      %v2336 = vpop.f32.mrf.mxu0
      %v2337 = vadd.f32 %v2184, %v2336
      %v2338 = vand.u32 %v1147, 4294901760
      %2339 = vmatmul.f32.gmra.mxu0 %v2338
      %v2340 = vpop.f32.mrf.mxu0
      %v2341 = vadd.f32 %v2188, %v2340
      %v2342 = vand.u32 %v1150, 4294901760
      %2343 = vmatmul.f32.gmra.mxu0 %v2342
      %v2344 = vpop.f32.mrf.mxu0
      %v2345 = vadd.f32 %v2192, %v2344
      %v2346 = vand.u32 %v1153, 4294901760
      %2347 = vmatmul.f32.gmra.mxu0 %v2346
      %v2348 = vpop.f32.mrf.mxu0
      %v2349 = vadd.f32 %v2196, %v2348
      %v2350 = vand.u32 %v1156, 4294901760
      %2351 = vmatmul.f32.gmra.mxu0 %v2350
      %v2352 = vpop.f32.mrf.mxu0
      %v2353 = vadd.f32 %v2200, %v2352
      %v2354 = vand.u32 %v1159, 4294901760
      %2355 = vmatmul.f32.gmra.mxu0 %v2354
      %v2356 = vpop.f32.mrf.mxu0
      %v2357 = vadd.f32 %v2204, %v2356
      %2358 = vdwg.mxu0
      %v2361 = vrot.slane %v441, 1
      %v2362 = vrot.slane %v441, 2
      %v2363 = vrot.slane %v441, 3
      %v2364 = vrot.slane %v441, 4
      %v2365 = vrot.slane %v441, 5
      %v2366 = vrot.slane %v441, 6
      %v2367 = vrot.slane %v441, 7
      %v2368 = vrot.slane %v445, 1
      %v2369 = vrot.slane %v445, 2
      %v2370 = vrot.slane %v445, 3
      %v2371 = vrot.slane %v445, 4
      %v2372 = vrot.slane %v445, 5
      %v2373 = vrot.slane %v445, 6
      %v2374 = vrot.slane %v445, 7
      %v2375 = vperm.slane %v441, 0
      %v2376 = vperm.slane %v2361, 0
      %v2377 = vperm.slane %v2362, 0
      %v2378 = vperm.slane %v2363, 0
      %v2379 = vperm.slane %v2364, 0
      %v2380 = vperm.slane %v2365, 0
      %v2381 = vperm.slane %v2366, 0
      %v2382 = vperm.slane %v2367, 0
      %v2383 = vperm.slane %v445, 0
      %v2384 = vperm.slane %v2368, 0
      %v2385 = vperm.slane %v2369, 0
      %v2386 = vperm.slane %v2370, 0
      %v2387 = vperm.slane %v2371, 0
      %v2388 = vperm.slane %v2372, 0
      %v2389 = vperm.slane %v2373, 0
      %v2390 = vperm.slane %v2374, 0
      %v2407 = vmul.f32 %v2375, %v2233
      %v2408 = vmul.f32 %v2375, %v2237
      %v2409 = vmul.f32 %v2376, %v2241
      %v2410 = vmul.f32 %v2376, %v2245
      %v2411 = vmul.f32 %v2377, %v2249
      %v2412 = vmul.f32 %v2377, %v2253
      %v2413 = vmul.f32 %v2378, %v2257
      %v2414 = vmul.f32 %v2378, %v2261
      %v2415 = vmul.f32 %v2379, %v2265
      %v2416 = vmul.f32 %v2379, %v2269
      %v2417 = vmul.f32 %v2380, %v2273
      %v2418 = vmul.f32 %v2380, %v2277
      %v2419 = vmul.f32 %v2381, %v2281
      %v2420 = vmul.f32 %v2381, %v2285
      %v2421 = vmul.f32 %v2382, %v2289
      %v2422 = vmul.f32 %v2382, %v2293
      %v2423 = vmul.f32 %v2383, %v2297
      %v2424 = vmul.f32 %v2383, %v2301
      %v2425 = vmul.f32 %v2384, %v2305
      %v2426 = vmul.f32 %v2384, %v2309
      %v2427 = vmul.f32 %v2385, %v2313
      %v2428 = vmul.f32 %v2385, %v2317
      %v2429 = vmul.f32 %v2386, %v2321
      %v2430 = vmul.f32 %v2386, %v2325
      %v2431 = vmul.f32 %v2387, %v2329
      %v2432 = vmul.f32 %v2387, %v2333
      %v2433 = vmul.f32 %v2388, %v2337
      %v2434 = vmul.f32 %v2388, %v2341
      %v2435 = vmul.f32 %v2389, %v2345
      %v2436 = vmul.f32 %v2389, %v2349
      %v2437 = vmul.f32 %v2390, %v2353
      %v2438 = vmul.f32 %v2390, %v2357
      %v2439 = vsel %vm224, %v2407, 0.0
      %2440 = vadd.xlane.f32.xlu0 %v2439
      %v2441 = vpop.xlane.xlu0 %2440
      %vm2442 = vcmask 258048
      %v2443 = vsel %vm2442, %v2408, 0.0
      %2444 = vadd.xlane.f32.xlu0 %v2443
      %v2445 = vpop.xlane.xlu0 %2444
      %v2446 = vsel %vm224, %v2409, 0.0
      %2447 = vadd.xlane.f32.xlu0 %v2446
      %v2448 = vpop.xlane.xlu0 %2447
      %v2449 = vsel %vm2442, %v2410, 0.0
      %2450 = vadd.xlane.f32.xlu0 %v2449
      %v2451 = vpop.xlane.xlu0 %2450
      %v2452 = vsel %vm224, %v2411, 0.0
      %2453 = vadd.xlane.f32.xlu0 %v2452
      %v2454 = vpop.xlane.xlu0 %2453
      %v2455 = vsel %vm2442, %v2412, 0.0
      %2456 = vadd.xlane.f32.xlu0 %v2455
      %v2457 = vpop.xlane.xlu0 %2456
      %v2458 = vsel %vm224, %v2413, 0.0
      %2459 = vadd.xlane.f32.xlu0 %v2458
      %v2460 = vpop.xlane.xlu0 %2459
      %v2461 = vsel %vm2442, %v2414, 0.0
      %2462 = vadd.xlane.f32.xlu0 %v2461
      %v2463 = vpop.xlane.xlu0 %2462
      %v2464 = vsel %vm224, %v2415, 0.0
      %2465 = vadd.xlane.f32.xlu0 %v2464
      %v2466 = vpop.xlane.xlu0 %2465
      %v2467 = vsel %vm2442, %v2416, 0.0
      %2468 = vadd.xlane.f32.xlu0 %v2467
      %v2469 = vpop.xlane.xlu0 %2468
      %v2470 = vsel %vm224, %v2417, 0.0
      %2471 = vadd.xlane.f32.xlu0 %v2470
      %v2472 = vpop.xlane.xlu0 %2471
      %v2473 = vsel %vm2442, %v2418, 0.0
      %2474 = vadd.xlane.f32.xlu0 %v2473
      %v2475 = vpop.xlane.xlu0 %2474
      %v2476 = vsel %vm224, %v2419, 0.0
      %2477 = vadd.xlane.f32.xlu0 %v2476
      %v2478 = vpop.xlane.xlu0 %2477
      %v2479 = vsel %vm2442, %v2420, 0.0
      %2480 = vadd.xlane.f32.xlu0 %v2479
      %v2481 = vpop.xlane.xlu0 %2480
      %v2482 = vsel %vm224, %v2421, 0.0
      %2483 = vadd.xlane.f32.xlu0 %v2482
      %v2484 = vpop.xlane.xlu0 %2483
      %v2485 = vsel %vm2442, %v2422, 0.0
      %2486 = vadd.xlane.f32.xlu0 %v2485
      %v2487 = vpop.xlane.xlu0 %2486
      %v2488 = vsel %vm224, %v2423, 0.0
      %2489 = vadd.xlane.f32.xlu0 %v2488
      %v2490 = vpop.xlane.xlu0 %2489
      %v2491 = vsel %vm2442, %v2424, 0.0
      %2492 = vadd.xlane.f32.xlu0 %v2491
      %v2493 = vpop.xlane.xlu0 %2492
      %v2494 = vsel %vm224, %v2425, 0.0
      %2495 = vadd.xlane.f32.xlu0 %v2494
      %v2496 = vpop.xlane.xlu0 %2495
      %v2497 = vsel %vm2442, %v2426, 0.0
      %2498 = vadd.xlane.f32.xlu0 %v2497
      %v2499 = vpop.xlane.xlu0 %2498
      %v2500 = vsel %vm224, %v2427, 0.0
      %2501 = vadd.xlane.f32.xlu0 %v2500
      %v2502 = vpop.xlane.xlu0 %2501
      %v2503 = vsel %vm2442, %v2428, 0.0
      %2504 = vadd.xlane.f32.xlu0 %v2503
      %v2505 = vpop.xlane.xlu0 %2504
      %v2506 = vsel %vm224, %v2429, 0.0
      %2507 = vadd.xlane.f32.xlu0 %v2506
      %v2508 = vpop.xlane.xlu0 %2507
      %v2509 = vsel %vm2442, %v2430, 0.0
      %2510 = vadd.xlane.f32.xlu0 %v2509
      %v2511 = vpop.xlane.xlu0 %2510
      %v2512 = vsel %vm224, %v2431, 0.0
      %2513 = vadd.xlane.f32.xlu0 %v2512
      %v2514 = vpop.xlane.xlu0 %2513
      %v2515 = vsel %vm2442, %v2432, 0.0
      %2516 = vadd.xlane.f32.xlu0 %v2515
      %v2517 = vpop.xlane.xlu0 %2516
      %v2518 = vsel %vm224, %v2433, 0.0
      %2519 = vadd.xlane.f32.xlu0 %v2518
      %v2520 = vpop.xlane.xlu0 %2519
      %v2521 = vsel %vm2442, %v2434, 0.0
      %2522 = vadd.xlane.f32.xlu0 %v2521
      %v2523 = vpop.xlane.xlu0 %2522
      %v2524 = vsel %vm224, %v2435, 0.0
      %2525 = vadd.xlane.f32.xlu0 %v2524
      %v2526 = vpop.xlane.xlu0 %2525
      %v2527 = vsel %vm2442, %v2436, 0.0
      %2528 = vadd.xlane.f32.xlu0 %v2527
      %v2529 = vpop.xlane.xlu0 %2528
      %v2530 = vsel %vm224, %v2437, 0.0
      %2531 = vadd.xlane.f32.xlu0 %v2530
      %v2532 = vpop.xlane.xlu0 %2531
      %v2533 = vsel %vm2442, %v2438, 0.0
      %2534 = vadd.xlane.f32.xlu0 %v2533
      %v2535 = vpop.xlane.xlu0 %2534
      %v2552 = vrot.slane %v2241, 7
      %vm2553 = vcmask 1041409
      %v2554 = vsel %vm2553, %v2552, %v2233
      %v2555 = vrot.slane %v2249, 6
      %vm2556 = vcmask 1042434
      %v2557 = vsel %vm2556, %v2555, %v2554
      %v2558 = vrot.slane %v2257, 5
      %vm2559 = vcmask 1043459
      %v2560 = vsel %vm2559, %v2558, %v2557
      %v2561 = vrot.slane %v2265, 4
      %vm2562 = vcmask 1044484
      %v2563 = vsel %vm2562, %v2561, %v2560
      %v2564 = vrot.slane %v2273, 3
      %vm2565 = vcmask 1045509
      %v2566 = vsel %vm2565, %v2564, %v2563
      %v2567 = vrot.slane %v2281, 2
      %vm2568 = vcmask 1046534
      %v2569 = vsel %vm2568, %v2567, %v2566
      %v2570 = vrot.slane %v2289, 1
      %vm2571 = vcmask 1047559
      %v2572 = vsel %vm2571, %v2570, %v2569
      %v2573 = vrot.slane %v2305, 7
      %v2574 = vsel %vm2553, %v2573, %v2297
      %v2575 = vrot.slane %v2313, 6
      %v2576 = vsel %vm2556, %v2575, %v2574
      %v2577 = vrot.slane %v2321, 5
      %v2578 = vsel %vm2559, %v2577, %v2576
      %v2579 = vrot.slane %v2329, 4
      %v2580 = vsel %vm2562, %v2579, %v2578
      %v2581 = vrot.slane %v2337, 3
      %v2582 = vsel %vm2565, %v2581, %v2580
      %v2583 = vrot.slane %v2345, 2
      %v2584 = vsel %vm2568, %v2583, %v2582
      %v2585 = vrot.slane %v2353, 1
      %v2586 = vsel %vm2571, %v2585, %v2584
      %v2589 = vmul.f32 %v441, %v2572
      %v2590 = vmul.f32 %v445, %v2586
      %v2591 = vadd.f32 %v2589, 1e-06
      %v2592 = vadd.f32 %v2590, 1e-06
      %2593 = vset.pattern.permute.xlu0 32
      %2594 = vperm.xlu0 %2593, %v441
      %v2595 = vpop.permute.xlu0 %2594
      %2597 = vset.pattern.permute.xlu0 32
      %2598 = vperm.xlu0 %2597, %v445
      %v2599 = vpop.permute.xlu0 %2598
      %2601 = vset.pattern.permute.xlu0 32
      %2602 = vperm.xlu0 %2601, %v2233
      %v2603 = vpop.permute.xlu0 %2602
      %2604 = vset.pattern.permute.xlu0 32
      %2605 = vperm.xlu0 %2604, %v2241
      %v2606 = vpop.permute.xlu0 %2605
      %2607 = vset.pattern.permute.xlu0 32
      %2608 = vperm.xlu0 %2607, %v2249
      %v2609 = vpop.permute.xlu0 %2608
      %2610 = vset.pattern.permute.xlu0 32
      %2611 = vperm.xlu0 %2610, %v2257
      %v2612 = vpop.permute.xlu0 %2611
      %2613 = vset.pattern.permute.xlu0 32
      %2614 = vperm.xlu0 %2613, %v2265
      %v2615 = vpop.permute.xlu0 %2614
      %2616 = vset.pattern.permute.xlu0 32
      %2617 = vperm.xlu0 %2616, %v2273
      %v2618 = vpop.permute.xlu0 %2617
      %2619 = vset.pattern.permute.xlu0 32
      %2620 = vperm.xlu0 %2619, %v2281
      %v2621 = vpop.permute.xlu0 %2620
      %2622 = vset.pattern.permute.xlu0 32
      %2623 = vperm.xlu0 %2622, %v2289
      %v2624 = vpop.permute.xlu0 %2623
      %2625 = vset.pattern.permute.xlu0 32
      %2626 = vperm.xlu0 %2625, %v2297
      %v2627 = vpop.permute.xlu0 %2626
      %2628 = vset.pattern.permute.xlu0 32
      %2629 = vperm.xlu0 %2628, %v2305
      %v2630 = vpop.permute.xlu0 %2629
      %2631 = vset.pattern.permute.xlu0 32
      %2632 = vperm.xlu0 %2631, %v2313
      %v2633 = vpop.permute.xlu0 %2632
      %2634 = vset.pattern.permute.xlu0 32
      %2635 = vperm.xlu0 %2634, %v2321
      %v2636 = vpop.permute.xlu0 %2635
      %2637 = vset.pattern.permute.xlu0 32
      %2638 = vperm.xlu0 %2637, %v2329
      %v2639 = vpop.permute.xlu0 %2638
      %2640 = vset.pattern.permute.xlu0 32
      %2641 = vperm.xlu0 %2640, %v2337
      %v2642 = vpop.permute.xlu0 %2641
      %2643 = vset.pattern.permute.xlu0 32
      %2644 = vperm.xlu0 %2643, %v2345
      %v2645 = vpop.permute.xlu0 %2644
      %2646 = vset.pattern.permute.xlu0 32
      %2647 = vperm.xlu0 %2646, %v2353
      %v2648 = vpop.permute.xlu0 %2647
      %v2649 = vadd.s32 %v211, 1
      %v2650 = vperm.slane %v2603, %v2649
      %v2651 = vperm.slane %v2606, %v2649
      %v2652 = vperm.slane %v2609, %v2649
      %v2653 = vperm.slane %v2612, %v2649
      %v2654 = vperm.slane %v2615, %v2649
      %v2655 = vperm.slane %v2618, %v2649
      %v2656 = vperm.slane %v2621, %v2649
      %v2657 = vperm.slane %v2624, %v2649
      %v2658 = vperm.slane %v2627, %v2649
      %v2659 = vperm.slane %v2630, %v2649
      %v2660 = vperm.slane %v2633, %v2649
      %v2661 = vperm.slane %v2636, %v2649
      %v2662 = vperm.slane %v2639, %v2649
      %v2663 = vperm.slane %v2642, %v2649
      %v2664 = vperm.slane %v2645, %v2649
      %v2665 = vperm.slane %v2648, %v2649
      %v2666 = vsel %vm2553, %v2651, %v2650
      %v2667 = vsel %vm2556, %v2652, %v2666
      %v2668 = vsel %vm2559, %v2653, %v2667
      %v2669 = vsel %vm2562, %v2654, %v2668
      %v2670 = vsel %vm2565, %v2655, %v2669
      %v2671 = vsel %vm2568, %v2656, %v2670
      %v2672 = vsel %vm2571, %v2657, %v2671
      %v2673 = vsel %vm2553, %v2659, %v2658
      %v2674 = vsel %vm2556, %v2660, %v2673
      %v2675 = vsel %vm2559, %v2661, %v2674
      %v2676 = vsel %vm2562, %v2662, %v2675
      %v2677 = vsel %vm2565, %v2663, %v2676
      %v2678 = vsel %vm2568, %v2664, %v2677
      %v2679 = vsel %vm2571, %v2665, %v2678
      %v2682 = vmul.f32 %v2595, %v2672
      %v2683 = vmul.f32 %v2599, %v2679
      %v2684 = vadd.f32 %v2682, 1e-06
      %v2685 = vadd.f32 %v2683, 1e-06
      %v2686 = vsub.f32 0.0, %v2441
      %v2687 = vsub.f32 0.0, %v2448
      %v2688 = vsub.f32 0.0, %v2454
      %v2689 = vsub.f32 0.0, %v2460
      %v2690 = vsub.f32 0.0, %v2466
      %v2691 = vsub.f32 0.0, %v2472
      %v2692 = vsub.f32 0.0, %v2478
      %v2693 = vsub.f32 0.0, %v2484
      %v2694 = vsub.f32 0.0, %v2490
      %v2695 = vsub.f32 0.0, %v2496
      %v2696 = vsub.f32 0.0, %v2502
      %v2697 = vsub.f32 0.0, %v2508
      %v2698 = vsub.f32 0.0, %v2514
      %v2699 = vsub.f32 0.0, %v2520
      %v2700 = vsub.f32 0.0, %v2526
      %v2701 = vsub.f32 0.0, %v2532
      %v2702 = vmax.f32 %v2686, 0.0
      %v2703 = vmax.f32 %v2687, 0.0
      %v2704 = vmax.f32 %v2688, 0.0
      %v2705 = vmax.f32 %v2689, 0.0
      %v2706 = vmax.f32 %v2690, 0.0
      %v2707 = vmax.f32 %v2691, 0.0
      %v2708 = vmax.f32 %v2692, 0.0
      %v2709 = vmax.f32 %v2693, 0.0
      %v2710 = vmax.f32 %v2694, 0.0
      %v2711 = vmax.f32 %v2695, 0.0
      %v2712 = vmax.f32 %v2696, 0.0
      %v2713 = vmax.f32 %v2697, 0.0
      %v2714 = vmax.f32 %v2698, 0.0
      %v2715 = vmax.f32 %v2699, 0.0
      %v2716 = vmax.f32 %v2700, 0.0
      %v2717 = vmax.f32 %v2701, 0.0
      %v2718 = vand.u32 2147483647, %v2686
      %v2719 = vand.u32 2147483647, %v2687
      %v2720 = vand.u32 2147483647, %v2688
      %v2721 = vand.u32 2147483647, %v2689
      %v2722 = vand.u32 2147483647, %v2690
      %v2723 = vand.u32 2147483647, %v2691
      %v2724 = vand.u32 2147483647, %v2692
      %v2725 = vand.u32 2147483647, %v2693
      %v2726 = vand.u32 2147483647, %v2694
      %v2727 = vand.u32 2147483647, %v2695
      %v2728 = vand.u32 2147483647, %v2696
      %v2729 = vand.u32 2147483647, %v2697
      %v2730 = vand.u32 2147483647, %v2698
      %v2731 = vand.u32 2147483647, %v2699
      %v2732 = vand.u32 2147483647, %v2700
      %v2733 = vand.u32 2147483647, %v2701
      %v2734 = vsub.f32 0.0, %v2718
      %v2735 = vsub.f32 0.0, %v2719
      %v2736 = vsub.f32 0.0, %v2720
      %v2737 = vsub.f32 0.0, %v2721
      %v2738 = vsub.f32 0.0, %v2722
      %v2739 = vsub.f32 0.0, %v2723
      %v2740 = vsub.f32 0.0, %v2724
      %v2741 = vsub.f32 0.0, %v2725
      %v2742 = vsub.f32 0.0, %v2726
      %v2743 = vsub.f32 0.0, %v2727
      %v2744 = vsub.f32 0.0, %v2728
      %v2745 = vsub.f32 0.0, %v2729
      %v2746 = vsub.f32 0.0, %v2730
      %v2747 = vsub.f32 0.0, %v2731
      %v2748 = vsub.f32 0.0, %v2732
      %v2749 = vsub.f32 0.0, %v2733
      %v2750 = vmul.f32 %v2734, 1.442695
      %v2751 = vpow.pop %v2750
      %v2752 = vmul.f32 %v2735, 1.442695
      %v2753 = vpow.pop %v2752
      %v2754 = vmul.f32 %v2736, 1.442695
      %v2755 = vpow.pop %v2754
      %v2756 = vmul.f32 %v2737, 1.442695
      %v2757 = vpow.pop %v2756
      %v2758 = vmul.f32 %v2738, 1.442695
      %v2759 = vpow.pop %v2758
      %v2760 = vmul.f32 %v2739, 1.442695
      %v2761 = vpow.pop %v2760
      %v2762 = vmul.f32 %v2740, 1.442695
      %v2763 = vpow.pop %v2762
      %v2764 = vmul.f32 %v2741, 1.442695
      %v2765 = vpow.pop %v2764
      %v2766 = vmul.f32 %v2742, 1.442695
      %v2767 = vpow.pop %v2766
      %v2768 = vmul.f32 %v2743, 1.442695
      %v2769 = vpow.pop %v2768
      %v2770 = vmul.f32 %v2744, 1.442695
      %v2771 = vpow.pop %v2770
      %v2772 = vmul.f32 %v2745, 1.442695
      %v2773 = vpow.pop %v2772
      %v2774 = vmul.f32 %v2746, 1.442695
      %v2775 = vpow.pop %v2774
      %v2776 = vmul.f32 %v2747, 1.442695
      %v2777 = vpow.pop %v2776
      %v2778 = vmul.f32 %v2748, 1.442695
      %v2779 = vpow.pop %v2778
      %v2780 = vmul.f32 %v2749, 1.442695
      %v2781 = vpow.pop %v2780
      %v2782 = vadd.f32 %v2751, 1.0
      %v2783 = vlog2.pop %v2782
      %v2784 = vmul.f32 %v2783, 0.6931472
      %v2785 = vmul.f32 -0.5, %v2751
      %v2786 = vadd.f32 %v2785, 1.0
      %v2787 = vmul.f32 %v2786, %v2751
      %v2788 = vand.u32 2147483647, %v2751
      %vm2789 = vcmp.lt.f32.partialorder %v2788, 0.0004427343
      %v2790 = vsel %vm2789, %v2787, %v2784
      %v2791 = vadd.f32 %v2753, 1.0
      %v2792 = vlog2.pop %v2791
      %v2793 = vmul.f32 %v2792, 0.6931472
      %v2794 = vmul.f32 -0.5, %v2753
      %v2795 = vadd.f32 %v2794, 1.0
      %v2796 = vmul.f32 %v2795, %v2753
      %v2797 = vand.u32 2147483647, %v2753
      %vm2798 = vcmp.lt.f32.partialorder %v2797, 0.0004427343
      %v2799 = vsel %vm2798, %v2796, %v2793
      %v2800 = vadd.f32 %v2755, 1.0
      %v2801 = vlog2.pop %v2800
      %v2802 = vmul.f32 %v2801, 0.6931472
      %v2803 = vmul.f32 -0.5, %v2755
      %v2804 = vadd.f32 %v2803, 1.0
      %v2805 = vmul.f32 %v2804, %v2755
      %v2806 = vand.u32 2147483647, %v2755
      %vm2807 = vcmp.lt.f32.partialorder %v2806, 0.0004427343
      %v2808 = vsel %vm2807, %v2805, %v2802
      %v2809 = vadd.f32 %v2757, 1.0
      %v2810 = vlog2.pop %v2809
      %v2811 = vmul.f32 %v2810, 0.6931472
      %v2812 = vmul.f32 -0.5, %v2757
      %v2813 = vadd.f32 %v2812, 1.0
      %v2814 = vmul.f32 %v2813, %v2757
      %v2815 = vand.u32 2147483647, %v2757
      %vm2816 = vcmp.lt.f32.partialorder %v2815, 0.0004427343
      %v2817 = vsel %vm2816, %v2814, %v2811
      %v2818 = vadd.f32 %v2759, 1.0
      %v2819 = vlog2.pop %v2818
      %v2820 = vmul.f32 %v2819, 0.6931472
      %v2821 = vmul.f32 -0.5, %v2759
      %v2822 = vadd.f32 %v2821, 1.0
      %v2823 = vmul.f32 %v2822, %v2759
      %v2824 = vand.u32 2147483647, %v2759
      %vm2825 = vcmp.lt.f32.partialorder %v2824, 0.0004427343
      %v2826 = vsel %vm2825, %v2823, %v2820
      %v2827 = vadd.f32 %v2761, 1.0
      %v2828 = vlog2.pop %v2827
      %v2829 = vmul.f32 %v2828, 0.6931472
      %v2830 = vmul.f32 -0.5, %v2761
      %v2831 = vadd.f32 %v2830, 1.0
      %v2832 = vmul.f32 %v2831, %v2761
      %v2833 = vand.u32 2147483647, %v2761
      %vm2834 = vcmp.lt.f32.partialorder %v2833, 0.0004427343
      %v2835 = vsel %vm2834, %v2832, %v2829
      %v2836 = vadd.f32 %v2763, 1.0
      %v2837 = vlog2.pop %v2836
      %v2838 = vmul.f32 %v2837, 0.6931472
      %v2839 = vmul.f32 -0.5, %v2763
      %v2840 = vadd.f32 %v2839, 1.0
      %v2841 = vmul.f32 %v2840, %v2763
      %v2842 = vand.u32 2147483647, %v2763
      %vm2843 = vcmp.lt.f32.partialorder %v2842, 0.0004427343
      %v2844 = vsel %vm2843, %v2841, %v2838
      %v2845 = vadd.f32 %v2765, 1.0
      %v2846 = vlog2.pop %v2845
      %v2847 = vmul.f32 %v2846, 0.6931472
      %v2848 = vmul.f32 -0.5, %v2765
      %v2849 = vadd.f32 %v2848, 1.0
      %v2850 = vmul.f32 %v2849, %v2765
      %v2851 = vand.u32 2147483647, %v2765
      %vm2852 = vcmp.lt.f32.partialorder %v2851, 0.0004427343
      %v2853 = vsel %vm2852, %v2850, %v2847
      %v2854 = vadd.f32 %v2767, 1.0
      %v2855 = vlog2.pop %v2854
      %v2856 = vmul.f32 %v2855, 0.6931472
      %v2857 = vmul.f32 -0.5, %v2767
      %v2858 = vadd.f32 %v2857, 1.0
      %v2859 = vmul.f32 %v2858, %v2767
      %v2860 = vand.u32 2147483647, %v2767
      %vm2861 = vcmp.lt.f32.partialorder %v2860, 0.0004427343
      %v2862 = vsel %vm2861, %v2859, %v2856
      %v2863 = vadd.f32 %v2769, 1.0
      %v2864 = vlog2.pop %v2863
      %v2865 = vmul.f32 %v2864, 0.6931472
      %v2866 = vmul.f32 -0.5, %v2769
      %v2867 = vadd.f32 %v2866, 1.0
      %v2868 = vmul.f32 %v2867, %v2769
      %v2869 = vand.u32 2147483647, %v2769
      %vm2870 = vcmp.lt.f32.partialorder %v2869, 0.0004427343
      %v2871 = vsel %vm2870, %v2868, %v2865
      %v2872 = vadd.f32 %v2771, 1.0
      %v2873 = vlog2.pop %v2872
      %v2874 = vmul.f32 %v2873, 0.6931472
      %v2875 = vmul.f32 -0.5, %v2771
      %v2876 = vadd.f32 %v2875, 1.0
      %v2877 = vmul.f32 %v2876, %v2771
      %v2878 = vand.u32 2147483647, %v2771
      %vm2879 = vcmp.lt.f32.partialorder %v2878, 0.0004427343
      %v2880 = vsel %vm2879, %v2877, %v2874
      %v2881 = vadd.f32 %v2773, 1.0
      %v2882 = vlog2.pop %v2881
      %v2883 = vmul.f32 %v2882, 0.6931472
      %v2884 = vmul.f32 -0.5, %v2773
      %v2885 = vadd.f32 %v2884, 1.0
      %v2886 = vmul.f32 %v2885, %v2773
      %v2887 = vand.u32 2147483647, %v2773
      %vm2888 = vcmp.lt.f32.partialorder %v2887, 0.0004427343
      %v2889 = vsel %vm2888, %v2886, %v2883
      %v2890 = vadd.f32 %v2775, 1.0
      %v2891 = vlog2.pop %v2890
      %v2892 = vmul.f32 %v2891, 0.6931472
      %v2893 = vmul.f32 -0.5, %v2775
      %v2894 = vadd.f32 %v2893, 1.0
      %v2895 = vmul.f32 %v2894, %v2775
      %v2896 = vand.u32 2147483647, %v2775
      %vm2897 = vcmp.lt.f32.partialorder %v2896, 0.0004427343
      %v2898 = vsel %vm2897, %v2895, %v2892
      %v2899 = vadd.f32 %v2777, 1.0
      %v2900 = vlog2.pop %v2899
      %v2901 = vmul.f32 %v2900, 0.6931472
      %v2902 = vmul.f32 -0.5, %v2777
      %v2903 = vadd.f32 %v2902, 1.0
      %v2904 = vmul.f32 %v2903, %v2777
      %v2905 = vand.u32 2147483647, %v2777
      %vm2906 = vcmp.lt.f32.partialorder %v2905, 0.0004427343
      %v2907 = vsel %vm2906, %v2904, %v2901
      %v2908 = vadd.f32 %v2779, 1.0
      %v2909 = vlog2.pop %v2908
      %v2910 = vmul.f32 %v2909, 0.6931472
      %v2911 = vmul.f32 -0.5, %v2779
      %v2912 = vadd.f32 %v2911, 1.0
      %v2913 = vmul.f32 %v2912, %v2779
      %v2914 = vand.u32 2147483647, %v2779
      %vm2915 = vcmp.lt.f32.partialorder %v2914, 0.0004427343
      %v2916 = vsel %vm2915, %v2913, %v2910
      %v2917 = vadd.f32 %v2781, 1.0
      %v2918 = vlog2.pop %v2917
      %v2919 = vmul.f32 %v2918, 0.6931472
      %v2920 = vmul.f32 -0.5, %v2781
      %v2921 = vadd.f32 %v2920, 1.0
      %v2922 = vmul.f32 %v2921, %v2781
      %v2923 = vand.u32 2147483647, %v2781
      %vm2924 = vcmp.lt.f32.partialorder %v2923, 0.0004427343
      %v2925 = vsel %vm2924, %v2922, %v2919
      %v2926 = vadd.f32 %v2702, %v2790
      %v2927 = vadd.f32 %v2703, %v2799
      %v2928 = vadd.f32 %v2704, %v2808
      %v2929 = vadd.f32 %v2705, %v2817
      %v2930 = vadd.f32 %v2706, %v2826
      %v2931 = vadd.f32 %v2707, %v2835
      %v2932 = vadd.f32 %v2708, %v2844
      %v2933 = vadd.f32 %v2709, %v2853
      %v2934 = vadd.f32 %v2710, %v2862
      %v2935 = vadd.f32 %v2711, %v2871
      %v2936 = vadd.f32 %v2712, %v2880
      %v2937 = vadd.f32 %v2713, %v2889
      %v2938 = vadd.f32 %v2714, %v2898
      %v2939 = vadd.f32 %v2715, %v2907
      %v2940 = vadd.f32 %v2716, %v2916
      %v2941 = vadd.f32 %v2717, %v2925
      %v2958 = vrot.slane %v2927, 7
      %v2959 = vsel %vm2553, %v2958, %v2926
      %v2960 = vrot.slane %v2928, 6
      %v2961 = vsel %vm2556, %v2960, %v2959
      %v2962 = vrot.slane %v2929, 5
      %v2963 = vsel %vm2559, %v2962, %v2961
      %v2964 = vrot.slane %v2930, 4
      %v2965 = vsel %vm2562, %v2964, %v2963
      %v2966 = vrot.slane %v2931, 3
      %v2967 = vsel %vm2565, %v2966, %v2965
      %v2968 = vrot.slane %v2932, 2
      %v2969 = vsel %vm2568, %v2968, %v2967
      %v2970 = vrot.slane %v2933, 1
      %v2971 = vsel %vm2571, %v2970, %v2969
      %v2972 = vrot.slane %v2935, 7
      %v2973 = vsel %vm2553, %v2972, %v2934
      %v2974 = vrot.slane %v2936, 6
      %v2975 = vsel %vm2556, %v2974, %v2973
      %v2976 = vrot.slane %v2937, 5
      %v2977 = vsel %vm2559, %v2976, %v2975
      %v2978 = vrot.slane %v2938, 4
      %v2979 = vsel %vm2562, %v2978, %v2977
      %v2980 = vrot.slane %v2939, 3
      %v2981 = vsel %vm2565, %v2980, %v2979
      %v2982 = vrot.slane %v2940, 2
      %v2983 = vsel %vm2568, %v2982, %v2981
      %v2984 = vrot.slane %v2941, 1
      %v2985 = vsel %vm2571, %v2984, %v2983
      %v2988 = vmul.f32 %v2591, %v2971
      %v2989 = vmul.f32 %v2592, %v2985
      %v2990 = vmax.f32 %v2441, 0.0
      %v2991 = vmax.f32 %v2448, 0.0
      %v2992 = vmax.f32 %v2454, 0.0
      %v2993 = vmax.f32 %v2460, 0.0
      %v2994 = vmax.f32 %v2466, 0.0
      %v2995 = vmax.f32 %v2472, 0.0
      %v2996 = vmax.f32 %v2478, 0.0
      %v2997 = vmax.f32 %v2484, 0.0
      %v2998 = vmax.f32 %v2490, 0.0
      %v2999 = vmax.f32 %v2496, 0.0
      %v3000 = vmax.f32 %v2502, 0.0
      %v3001 = vmax.f32 %v2508, 0.0
      %v3002 = vmax.f32 %v2514, 0.0
      %v3003 = vmax.f32 %v2520, 0.0
      %v3004 = vmax.f32 %v2526, 0.0
      %v3005 = vmax.f32 %v2532, 0.0
      %v3006 = vand.u32 2147483647, %v2441
      %v3007 = vand.u32 2147483647, %v2448
      %v3008 = vand.u32 2147483647, %v2454
      %v3009 = vand.u32 2147483647, %v2460
      %v3010 = vand.u32 2147483647, %v2466
      %v3011 = vand.u32 2147483647, %v2472
      %v3012 = vand.u32 2147483647, %v2478
      %v3013 = vand.u32 2147483647, %v2484
      %v3014 = vand.u32 2147483647, %v2490
      %v3015 = vand.u32 2147483647, %v2496
      %v3016 = vand.u32 2147483647, %v2502
      %v3017 = vand.u32 2147483647, %v2508
      %v3018 = vand.u32 2147483647, %v2514
      %v3019 = vand.u32 2147483647, %v2520
      %v3020 = vand.u32 2147483647, %v2526
      %v3021 = vand.u32 2147483647, %v2532
      %v3022 = vsub.f32 0.0, %v3006
      %v3023 = vsub.f32 0.0, %v3007
      %v3024 = vsub.f32 0.0, %v3008
      %v3025 = vsub.f32 0.0, %v3009
      %v3026 = vsub.f32 0.0, %v3010
      %v3027 = vsub.f32 0.0, %v3011
      %v3028 = vsub.f32 0.0, %v3012
      %v3029 = vsub.f32 0.0, %v3013
      %v3030 = vsub.f32 0.0, %v3014
      %v3031 = vsub.f32 0.0, %v3015
      %v3032 = vsub.f32 0.0, %v3016
      %v3033 = vsub.f32 0.0, %v3017
      %v3034 = vsub.f32 0.0, %v3018
      %v3035 = vsub.f32 0.0, %v3019
      %v3036 = vsub.f32 0.0, %v3020
      %v3037 = vsub.f32 0.0, %v3021
      %v3038 = vmul.f32 %v3022, 1.442695
      %v3039 = vpow.pop %v3038
      %v3040 = vmul.f32 %v3023, 1.442695
      %v3041 = vpow.pop %v3040
      %v3042 = vmul.f32 %v3024, 1.442695
      %v3043 = vpow.pop %v3042
      %v3044 = vmul.f32 %v3025, 1.442695
      %v3045 = vpow.pop %v3044
      %v3046 = vmul.f32 %v3026, 1.442695
      %v3047 = vpow.pop %v3046
      %v3048 = vmul.f32 %v3027, 1.442695
      %v3049 = vpow.pop %v3048
      %v3050 = vmul.f32 %v3028, 1.442695
      %v3051 = vpow.pop %v3050
      %v3052 = vmul.f32 %v3029, 1.442695
      %v3053 = vpow.pop %v3052
      %v3054 = vmul.f32 %v3030, 1.442695
      %v3055 = vpow.pop %v3054
      %v3056 = vmul.f32 %v3031, 1.442695
      %v3057 = vpow.pop %v3056
      %v3058 = vmul.f32 %v3032, 1.442695
      %v3059 = vpow.pop %v3058
      %v3060 = vmul.f32 %v3033, 1.442695
      %v3061 = vpow.pop %v3060
      %v3062 = vmul.f32 %v3034, 1.442695
      %v3063 = vpow.pop %v3062
      %v3064 = vmul.f32 %v3035, 1.442695
      %v3065 = vpow.pop %v3064
      %v3066 = vmul.f32 %v3036, 1.442695
      %v3067 = vpow.pop %v3066
      %v3068 = vmul.f32 %v3037, 1.442695
      %v3069 = vpow.pop %v3068
      %v3070 = vadd.f32 %v3039, 1.0
      %v3071 = vlog2.pop %v3070
      %v3072 = vmul.f32 %v3071, 0.6931472
      %v3073 = vmul.f32 -0.5, %v3039
      %v3074 = vadd.f32 %v3073, 1.0
      %v3075 = vmul.f32 %v3074, %v3039
      %v3076 = vand.u32 2147483647, %v3039
      %vm3077 = vcmp.lt.f32.partialorder %v3076, 0.0004427343
      %v3078 = vsel %vm3077, %v3075, %v3072
      %v3079 = vadd.f32 %v3041, 1.0
      %v3080 = vlog2.pop %v3079
      %v3081 = vmul.f32 %v3080, 0.6931472
      %v3082 = vmul.f32 -0.5, %v3041
      %v3083 = vadd.f32 %v3082, 1.0
      %v3084 = vmul.f32 %v3083, %v3041
      %v3085 = vand.u32 2147483647, %v3041
      %vm3086 = vcmp.lt.f32.partialorder %v3085, 0.0004427343
      %v3087 = vsel %vm3086, %v3084, %v3081
      %v3088 = vadd.f32 %v3043, 1.0
      %v3089 = vlog2.pop %v3088
      %v3090 = vmul.f32 %v3089, 0.6931472
      %v3091 = vmul.f32 -0.5, %v3043
      %v3092 = vadd.f32 %v3091, 1.0
      %v3093 = vmul.f32 %v3092, %v3043
      %v3094 = vand.u32 2147483647, %v3043
      %vm3095 = vcmp.lt.f32.partialorder %v3094, 0.0004427343
      %v3096 = vsel %vm3095, %v3093, %v3090
      %v3097 = vadd.f32 %v3045, 1.0
      %v3098 = vlog2.pop %v3097
      %v3099 = vmul.f32 %v3098, 0.6931472
      %v3100 = vmul.f32 -0.5, %v3045
      %v3101 = vadd.f32 %v3100, 1.0
      %v3102 = vmul.f32 %v3101, %v3045
      %v3103 = vand.u32 2147483647, %v3045
      %vm3104 = vcmp.lt.f32.partialorder %v3103, 0.0004427343
      %v3105 = vsel %vm3104, %v3102, %v3099
      %v3106 = vadd.f32 %v3047, 1.0
      %v3107 = vlog2.pop %v3106
      %v3108 = vmul.f32 %v3107, 0.6931472
      %v3109 = vmul.f32 -0.5, %v3047
      %v3110 = vadd.f32 %v3109, 1.0
      %v3111 = vmul.f32 %v3110, %v3047
      %v3112 = vand.u32 2147483647, %v3047
      %vm3113 = vcmp.lt.f32.partialorder %v3112, 0.0004427343
      %v3114 = vsel %vm3113, %v3111, %v3108
      %v3115 = vadd.f32 %v3049, 1.0
      %v3116 = vlog2.pop %v3115
      %v3117 = vmul.f32 %v3116, 0.6931472
      %v3118 = vmul.f32 -0.5, %v3049
      %v3119 = vadd.f32 %v3118, 1.0
      %v3120 = vmul.f32 %v3119, %v3049
      %v3121 = vand.u32 2147483647, %v3049
      %vm3122 = vcmp.lt.f32.partialorder %v3121, 0.0004427343
      %v3123 = vsel %vm3122, %v3120, %v3117
      %v3124 = vadd.f32 %v3051, 1.0
      %v3125 = vlog2.pop %v3124
      %v3126 = vmul.f32 %v3125, 0.6931472
      %v3127 = vmul.f32 -0.5, %v3051
      %v3128 = vadd.f32 %v3127, 1.0
      %v3129 = vmul.f32 %v3128, %v3051
      %v3130 = vand.u32 2147483647, %v3051
      %vm3131 = vcmp.lt.f32.partialorder %v3130, 0.0004427343
      %v3132 = vsel %vm3131, %v3129, %v3126
      %v3133 = vadd.f32 %v3053, 1.0
      %v3134 = vlog2.pop %v3133
      %v3135 = vmul.f32 %v3134, 0.6931472
      %v3136 = vmul.f32 -0.5, %v3053
      %v3137 = vadd.f32 %v3136, 1.0
      %v3138 = vmul.f32 %v3137, %v3053
      %v3139 = vand.u32 2147483647, %v3053
      %vm3140 = vcmp.lt.f32.partialorder %v3139, 0.0004427343
      %v3141 = vsel %vm3140, %v3138, %v3135
      %v3142 = vadd.f32 %v3055, 1.0
      %v3143 = vlog2.pop %v3142
      %v3144 = vmul.f32 %v3143, 0.6931472
      %v3145 = vmul.f32 -0.5, %v3055
      %v3146 = vadd.f32 %v3145, 1.0
      %v3147 = vmul.f32 %v3146, %v3055
      %v3148 = vand.u32 2147483647, %v3055
      %vm3149 = vcmp.lt.f32.partialorder %v3148, 0.0004427343
      %v3150 = vsel %vm3149, %v3147, %v3144
      %v3151 = vadd.f32 %v3057, 1.0
      %v3152 = vlog2.pop %v3151
      %v3153 = vmul.f32 %v3152, 0.6931472
      %v3154 = vmul.f32 -0.5, %v3057
      %v3155 = vadd.f32 %v3154, 1.0
      %v3156 = vmul.f32 %v3155, %v3057
      %v3157 = vand.u32 2147483647, %v3057
      %vm3158 = vcmp.lt.f32.partialorder %v3157, 0.0004427343
      %v3159 = vsel %vm3158, %v3156, %v3153
      %v3160 = vadd.f32 %v3059, 1.0
      %v3161 = vlog2.pop %v3160
      %v3162 = vmul.f32 %v3161, 0.6931472
      %v3163 = vmul.f32 -0.5, %v3059
      %v3164 = vadd.f32 %v3163, 1.0
      %v3165 = vmul.f32 %v3164, %v3059
      %v3166 = vand.u32 2147483647, %v3059
      %vm3167 = vcmp.lt.f32.partialorder %v3166, 0.0004427343
      %v3168 = vsel %vm3167, %v3165, %v3162
      %v3169 = vadd.f32 %v3061, 1.0
      %v3170 = vlog2.pop %v3169
      %v3171 = vmul.f32 %v3170, 0.6931472
      %v3172 = vmul.f32 -0.5, %v3061
      %v3173 = vadd.f32 %v3172, 1.0
      %v3174 = vmul.f32 %v3173, %v3061
      %v3175 = vand.u32 2147483647, %v3061
      %vm3176 = vcmp.lt.f32.partialorder %v3175, 0.0004427343
      %v3177 = vsel %vm3176, %v3174, %v3171
      %v3178 = vadd.f32 %v3063, 1.0
      %v3179 = vlog2.pop %v3178
      %v3180 = vmul.f32 %v3179, 0.6931472
      %v3181 = vmul.f32 -0.5, %v3063
      %v3182 = vadd.f32 %v3181, 1.0
      %v3183 = vmul.f32 %v3182, %v3063
      %v3184 = vand.u32 2147483647, %v3063
      %vm3185 = vcmp.lt.f32.partialorder %v3184, 0.0004427343
      %v3186 = vsel %vm3185, %v3183, %v3180
      %v3187 = vadd.f32 %v3065, 1.0
      %v3188 = vlog2.pop %v3187
      %v3189 = vmul.f32 %v3188, 0.6931472
      %v3190 = vmul.f32 -0.5, %v3065
      %v3191 = vadd.f32 %v3190, 1.0
      %v3192 = vmul.f32 %v3191, %v3065
      %v3193 = vand.u32 2147483647, %v3065
      %vm3194 = vcmp.lt.f32.partialorder %v3193, 0.0004427343
      %v3195 = vsel %vm3194, %v3192, %v3189
      %v3196 = vadd.f32 %v3067, 1.0
      %v3197 = vlog2.pop %v3196
      %v3198 = vmul.f32 %v3197, 0.6931472
      %v3199 = vmul.f32 -0.5, %v3067
      %v3200 = vadd.f32 %v3199, 1.0
      %v3201 = vmul.f32 %v3200, %v3067
      %v3202 = vand.u32 2147483647, %v3067
      %vm3203 = vcmp.lt.f32.partialorder %v3202, 0.0004427343
      %v3204 = vsel %vm3203, %v3201, %v3198
      %v3205 = vadd.f32 %v3069, 1.0
      %v3206 = vlog2.pop %v3205
      %v3207 = vmul.f32 %v3206, 0.6931472
      %v3208 = vmul.f32 -0.5, %v3069
      %v3209 = vadd.f32 %v3208, 1.0
      %v3210 = vmul.f32 %v3209, %v3069
      %v3211 = vand.u32 2147483647, %v3069
      %vm3212 = vcmp.lt.f32.partialorder %v3211, 0.0004427343
      %v3213 = vsel %vm3212, %v3210, %v3207
      %v3214 = vadd.f32 %v2990, %v3078
      %v3215 = vadd.f32 %v2991, %v3087
      %v3216 = vadd.f32 %v2992, %v3096
      %v3217 = vadd.f32 %v2993, %v3105
      %v3218 = vadd.f32 %v2994, %v3114
      %v3219 = vadd.f32 %v2995, %v3123
      %v3220 = vadd.f32 %v2996, %v3132
      %v3221 = vadd.f32 %v2997, %v3141
      %v3222 = vadd.f32 %v2998, %v3150
      %v3223 = vadd.f32 %v2999, %v3159
      %v3224 = vadd.f32 %v3000, %v3168
      %v3225 = vadd.f32 %v3001, %v3177
      %v3226 = vadd.f32 %v3002, %v3186
      %v3227 = vadd.f32 %v3003, %v3195
      %v3228 = vadd.f32 %v3004, %v3204
      %v3229 = vadd.f32 %v3005, %v3213
      %v3246 = vperm.slane %v3214, %v2649
      %v3247 = vperm.slane %v3215, %v2649
      %v3248 = vperm.slane %v3216, %v2649
      %v3249 = vperm.slane %v3217, %v2649
      %v3250 = vperm.slane %v3218, %v2649
      %v3251 = vperm.slane %v3219, %v2649
      %v3252 = vperm.slane %v3220, %v2649
      %v3253 = vperm.slane %v3221, %v2649
      %v3254 = vperm.slane %v3222, %v2649
      %v3255 = vperm.slane %v3223, %v2649
      %v3256 = vperm.slane %v3224, %v2649
      %v3257 = vperm.slane %v3225, %v2649
      %v3258 = vperm.slane %v3226, %v2649
      %v3259 = vperm.slane %v3227, %v2649
      %v3260 = vperm.slane %v3228, %v2649
      %v3261 = vperm.slane %v3229, %v2649
      %v3262 = vsel %vm2553, %v3247, %v3246
      %v3263 = vsel %vm2556, %v3248, %v3262
      %v3264 = vsel %vm2559, %v3249, %v3263
      %v3265 = vsel %vm2562, %v3250, %v3264
      %v3266 = vsel %vm2565, %v3251, %v3265
      %v3267 = vsel %vm2568, %v3252, %v3266
      %v3268 = vsel %vm2571, %v3253, %v3267
      %v3269 = vsel %vm2553, %v3255, %v3254
      %v3270 = vsel %vm2556, %v3256, %v3269
      %v3271 = vsel %vm2559, %v3257, %v3270
      %v3272 = vsel %vm2562, %v3258, %v3271
      %v3273 = vsel %vm2565, %v3259, %v3272
      %v3274 = vsel %vm2568, %v3260, %v3273
      %v3275 = vsel %vm2571, %v3261, %v3274
      %v3278 = vmul.f32 %v2684, %v3268
      %v3279 = vmul.f32 %v2685, %v3275
      %vm3280 = vcmask 31744
      %v3281 = vsel %vm3280, %v3278, 0.0
      %3282 = vadd.xlane.f32.xlu0 %v3281
      %v3283 = vpop.xlane.xlu0 %3282
      %v3284 = vsel %vm3280, %v3279, 0.0
      %3285 = vadd.xlane.f32.xlu0 %v3284
      %v3286 = vpop.xlane.xlu0 %3285
      %v3287 = vrcp.pop 4.0
      %v3288 = vmul.f32 4.0, %v3287
      %v3289 = vsub.f32 1.0, %v3288
      %v3290 = vmul.f32 %v3287, %v3289
      %v3291 = vadd.f32 %v3287, %v3290
      %vm3292 = vweird.f32 %v3287
      %v3293 = vsel %vm3292, %v3287, %v3291
      %v3294 = vmul.f32 %v3283, %v3293
      %v3295 = vmul.f32 %v3286, %v3293
      %v3296 = vmul.f32 %v3294, 10.0
      %v3297 = vmul.f32 %v3295, 10.0
      %v3298 = vadd.f32 %v2988, %v3296
      %v3299 = vadd.f32 %v2989, %v3297
      %3302 = vrot.lane.b32.xlu0 %v3298, 96
      %v3303 = vpop.permute.xlu0 %3302
      %3304 = vrot.lane.b32.xlu0 %v3299, 96
      %v3305 = vpop.permute.xlu0 %3304
      %v3308 = vsel %vm754, %v3303, 0.0
      %v3309 = vsel %vm754, %v3305, 0.0
      %v3310 = vadd.f32 %v3308, %v3309
      %3311 = vadd.xlane.f32.xlu0 %v3310
      %v3312 = vpop.xlane.xlu0 %3311
      %v3313 = vrot.slane %v3312, 4
      %v3314 = vadd.f32 %v3312, %v3313
      %v3315 = vrot.slane %v3314, 2
      %v3316 = vadd.f32 %v3314, %v3315
      %v3317 = vrot.slane %v3316, 1
      %v3318 = vadd.f32 %v3316, %v3317
      %s3319 = vtos %v3318
      %v3320 = vsub.f32 0.0, %v2445
      %v3321 = vsub.f32 0.0, %v2451
      %v3322 = vsub.f32 0.0, %v2457
      %v3323 = vsub.f32 0.0, %v2463
      %v3324 = vsub.f32 0.0, %v2469
      %v3325 = vsub.f32 0.0, %v2475
      %v3326 = vsub.f32 0.0, %v2481
      %v3327 = vsub.f32 0.0, %v2487
      %v3328 = vsub.f32 0.0, %v2493
      %v3329 = vsub.f32 0.0, %v2499
      %v3330 = vsub.f32 0.0, %v2505
      %v3331 = vsub.f32 0.0, %v2511
      %v3332 = vsub.f32 0.0, %v2517
      %v3333 = vsub.f32 0.0, %v2523
      %v3334 = vsub.f32 0.0, %v2529
      %v3335 = vsub.f32 0.0, %v2535
      %v3336 = vmax.f32 %v3320, 0.0
      %v3337 = vmax.f32 %v3321, 0.0
      %v3338 = vmax.f32 %v3322, 0.0
      %v3339 = vmax.f32 %v3323, 0.0
      %v3340 = vmax.f32 %v3324, 0.0
      %v3341 = vmax.f32 %v3325, 0.0
      %v3342 = vmax.f32 %v3326, 0.0
      %v3343 = vmax.f32 %v3327, 0.0
      %v3344 = vmax.f32 %v3328, 0.0
      %v3345 = vmax.f32 %v3329, 0.0
      %v3346 = vmax.f32 %v3330, 0.0
      %v3347 = vmax.f32 %v3331, 0.0
      %v3348 = vmax.f32 %v3332, 0.0
      %v3349 = vmax.f32 %v3333, 0.0
      %v3350 = vmax.f32 %v3334, 0.0
      %v3351 = vmax.f32 %v3335, 0.0
      %v3352 = vand.u32 2147483647, %v3320
      %v3353 = vand.u32 2147483647, %v3321
      %v3354 = vand.u32 2147483647, %v3322
      %v3355 = vand.u32 2147483647, %v3323
      %v3356 = vand.u32 2147483647, %v3324
      %v3357 = vand.u32 2147483647, %v3325
      %v3358 = vand.u32 2147483647, %v3326
      %v3359 = vand.u32 2147483647, %v3327
      %v3360 = vand.u32 2147483647, %v3328
      %v3361 = vand.u32 2147483647, %v3329
      %v3362 = vand.u32 2147483647, %v3330
      %v3363 = vand.u32 2147483647, %v3331
      %v3364 = vand.u32 2147483647, %v3332
      %v3365 = vand.u32 2147483647, %v3333
      %v3366 = vand.u32 2147483647, %v3334
      %v3367 = vand.u32 2147483647, %v3335
      %v3368 = vsub.f32 0.0, %v3352
      %v3369 = vsub.f32 0.0, %v3353
      %v3370 = vsub.f32 0.0, %v3354
      %v3371 = vsub.f32 0.0, %v3355
      %v3372 = vsub.f32 0.0, %v3356
      %v3373 = vsub.f32 0.0, %v3357
      %v3374 = vsub.f32 0.0, %v3358
      %v3375 = vsub.f32 0.0, %v3359
      %v3376 = vsub.f32 0.0, %v3360
      %v3377 = vsub.f32 0.0, %v3361
      %v3378 = vsub.f32 0.0, %v3362
      %v3379 = vsub.f32 0.0, %v3363
      %v3380 = vsub.f32 0.0, %v3364
      %v3381 = vsub.f32 0.0, %v3365
      %v3382 = vsub.f32 0.0, %v3366
      %v3383 = vsub.f32 0.0, %v3367
      %v3384 = vmul.f32 %v3368, 1.442695
      %v3385 = vpow.pop %v3384
      %v3386 = vmul.f32 %v3369, 1.442695
      %v3387 = vpow.pop %v3386
      %v3388 = vmul.f32 %v3370, 1.442695
      %v3389 = vpow.pop %v3388
      %v3390 = vmul.f32 %v3371, 1.442695
      %v3391 = vpow.pop %v3390
      %v3392 = vmul.f32 %v3372, 1.442695
      %v3393 = vpow.pop %v3392
      %v3394 = vmul.f32 %v3373, 1.442695
      %v3395 = vpow.pop %v3394
      %v3396 = vmul.f32 %v3374, 1.442695
      %v3397 = vpow.pop %v3396
      %v3398 = vmul.f32 %v3375, 1.442695
      %v3399 = vpow.pop %v3398
      %v3400 = vmul.f32 %v3376, 1.442695
      %v3401 = vpow.pop %v3400
      %v3402 = vmul.f32 %v3377, 1.442695
      %v3403 = vpow.pop %v3402
      %v3404 = vmul.f32 %v3378, 1.442695
      %v3405 = vpow.pop %v3404
      %v3406 = vmul.f32 %v3379, 1.442695
      %v3407 = vpow.pop %v3406
      %v3408 = vmul.f32 %v3380, 1.442695
      %v3409 = vpow.pop %v3408
      %v3410 = vmul.f32 %v3381, 1.442695
      %v3411 = vpow.pop %v3410
      %v3412 = vmul.f32 %v3382, 1.442695
      %v3413 = vpow.pop %v3412
      %v3414 = vmul.f32 %v3383, 1.442695
      %v3415 = vpow.pop %v3414
      %v3416 = vadd.f32 %v3385, 1.0
      %v3417 = vlog2.pop %v3416
      %v3418 = vmul.f32 %v3417, 0.6931472
      %v3419 = vmul.f32 -0.5, %v3385
      %v3420 = vadd.f32 %v3419, 1.0
      %v3421 = vmul.f32 %v3420, %v3385
      %v3422 = vand.u32 2147483647, %v3385
      %vm3423 = vcmp.lt.f32.partialorder %v3422, 0.0004427343
      %v3424 = vsel %vm3423, %v3421, %v3418
      %v3425 = vadd.f32 %v3387, 1.0
      %v3426 = vlog2.pop %v3425
      %v3427 = vmul.f32 %v3426, 0.6931472
      %v3428 = vmul.f32 -0.5, %v3387
      %v3429 = vadd.f32 %v3428, 1.0
      %v3430 = vmul.f32 %v3429, %v3387
      %v3431 = vand.u32 2147483647, %v3387
      %vm3432 = vcmp.lt.f32.partialorder %v3431, 0.0004427343
      %v3433 = vsel %vm3432, %v3430, %v3427
      %v3434 = vadd.f32 %v3389, 1.0
      %v3435 = vlog2.pop %v3434
      %v3436 = vmul.f32 %v3435, 0.6931472
      %v3437 = vmul.f32 -0.5, %v3389
      %v3438 = vadd.f32 %v3437, 1.0
      %v3439 = vmul.f32 %v3438, %v3389
      %v3440 = vand.u32 2147483647, %v3389
      %vm3441 = vcmp.lt.f32.partialorder %v3440, 0.0004427343
      %v3442 = vsel %vm3441, %v3439, %v3436
      %v3443 = vadd.f32 %v3391, 1.0
      %v3444 = vlog2.pop %v3443
      %v3445 = vmul.f32 %v3444, 0.6931472
      %v3446 = vmul.f32 -0.5, %v3391
      %v3447 = vadd.f32 %v3446, 1.0
      %v3448 = vmul.f32 %v3447, %v3391
      %v3449 = vand.u32 2147483647, %v3391
      %vm3450 = vcmp.lt.f32.partialorder %v3449, 0.0004427343
      %v3451 = vsel %vm3450, %v3448, %v3445
      %v3452 = vadd.f32 %v3393, 1.0
      %v3453 = vlog2.pop %v3452
      %v3454 = vmul.f32 %v3453, 0.6931472
      %v3455 = vmul.f32 -0.5, %v3393
      %v3456 = vadd.f32 %v3455, 1.0
      %v3457 = vmul.f32 %v3456, %v3393
      %v3458 = vand.u32 2147483647, %v3393
      %vm3459 = vcmp.lt.f32.partialorder %v3458, 0.0004427343
      %v3460 = vsel %vm3459, %v3457, %v3454
      %v3461 = vadd.f32 %v3395, 1.0
      %v3462 = vlog2.pop %v3461
      %v3463 = vmul.f32 %v3462, 0.6931472
      %v3464 = vmul.f32 -0.5, %v3395
      %v3465 = vadd.f32 %v3464, 1.0
      %v3466 = vmul.f32 %v3465, %v3395
      %v3467 = vand.u32 2147483647, %v3395
      %vm3468 = vcmp.lt.f32.partialorder %v3467, 0.0004427343
      %v3469 = vsel %vm3468, %v3466, %v3463
      %v3470 = vadd.f32 %v3397, 1.0
      %v3471 = vlog2.pop %v3470
      %v3472 = vmul.f32 %v3471, 0.6931472
      %v3473 = vmul.f32 -0.5, %v3397
      %v3474 = vadd.f32 %v3473, 1.0
      %v3475 = vmul.f32 %v3474, %v3397
      %v3476 = vand.u32 2147483647, %v3397
      %vm3477 = vcmp.lt.f32.partialorder %v3476, 0.0004427343
      %v3478 = vsel %vm3477, %v3475, %v3472
      %v3479 = vadd.f32 %v3399, 1.0
      %v3480 = vlog2.pop %v3479
      %v3481 = vmul.f32 %v3480, 0.6931472
      %v3482 = vmul.f32 -0.5, %v3399
      %v3483 = vadd.f32 %v3482, 1.0
      %v3484 = vmul.f32 %v3483, %v3399
      %v3485 = vand.u32 2147483647, %v3399
      %vm3486 = vcmp.lt.f32.partialorder %v3485, 0.0004427343
      %v3487 = vsel %vm3486, %v3484, %v3481
      %v3488 = vadd.f32 %v3401, 1.0
      %v3489 = vlog2.pop %v3488
      %v3490 = vmul.f32 %v3489, 0.6931472
      %v3491 = vmul.f32 -0.5, %v3401
      %v3492 = vadd.f32 %v3491, 1.0
      %v3493 = vmul.f32 %v3492, %v3401
      %v3494 = vand.u32 2147483647, %v3401
      %vm3495 = vcmp.lt.f32.partialorder %v3494, 0.0004427343
      %v3496 = vsel %vm3495, %v3493, %v3490
      %v3497 = vadd.f32 %v3403, 1.0
      %v3498 = vlog2.pop %v3497
      %v3499 = vmul.f32 %v3498, 0.6931472
      %v3500 = vmul.f32 -0.5, %v3403
      %v3501 = vadd.f32 %v3500, 1.0
      %v3502 = vmul.f32 %v3501, %v3403
      %v3503 = vand.u32 2147483647, %v3403
      %vm3504 = vcmp.lt.f32.partialorder %v3503, 0.0004427343
      %v3505 = vsel %vm3504, %v3502, %v3499
      %v3506 = vadd.f32 %v3405, 1.0
      %v3507 = vlog2.pop %v3506
      %v3508 = vmul.f32 %v3507, 0.6931472
      %v3509 = vmul.f32 -0.5, %v3405
      %v3510 = vadd.f32 %v3509, 1.0
      %v3511 = vmul.f32 %v3510, %v3405
      %v3512 = vand.u32 2147483647, %v3405
      %vm3513 = vcmp.lt.f32.partialorder %v3512, 0.0004427343
      %v3514 = vsel %vm3513, %v3511, %v3508
      %v3515 = vadd.f32 %v3407, 1.0
      %v3516 = vlog2.pop %v3515
      %v3517 = vmul.f32 %v3516, 0.6931472
      %v3518 = vmul.f32 -0.5, %v3407
      %v3519 = vadd.f32 %v3518, 1.0
      %v3520 = vmul.f32 %v3519, %v3407
      %v3521 = vand.u32 2147483647, %v3407
      %vm3522 = vcmp.lt.f32.partialorder %v3521, 0.0004427343
      %v3523 = vsel %vm3522, %v3520, %v3517
      %v3524 = vadd.f32 %v3409, 1.0
      %v3525 = vlog2.pop %v3524
      %v3526 = vmul.f32 %v3525, 0.6931472
      %v3527 = vmul.f32 -0.5, %v3409
      %v3528 = vadd.f32 %v3527, 1.0
      %v3529 = vmul.f32 %v3528, %v3409
      %v3530 = vand.u32 2147483647, %v3409
      %vm3531 = vcmp.lt.f32.partialorder %v3530, 0.0004427343
      %v3532 = vsel %vm3531, %v3529, %v3526
      %v3533 = vadd.f32 %v3411, 1.0
      %v3534 = vlog2.pop %v3533
      %v3535 = vmul.f32 %v3534, 0.6931472
      %v3536 = vmul.f32 -0.5, %v3411
      %v3537 = vadd.f32 %v3536, 1.0
      %v3538 = vmul.f32 %v3537, %v3411
      %v3539 = vand.u32 2147483647, %v3411
      %vm3540 = vcmp.lt.f32.partialorder %v3539, 0.0004427343
      %v3541 = vsel %vm3540, %v3538, %v3535
      %v3542 = vadd.f32 %v3413, 1.0
      %v3543 = vlog2.pop %v3542
      %v3544 = vmul.f32 %v3543, 0.6931472
      %v3545 = vmul.f32 -0.5, %v3413
      %v3546 = vadd.f32 %v3545, 1.0
      %v3547 = vmul.f32 %v3546, %v3413
      %v3548 = vand.u32 2147483647, %v3413
      %vm3549 = vcmp.lt.f32.partialorder %v3548, 0.0004427343
      %v3550 = vsel %vm3549, %v3547, %v3544
      %v3551 = vadd.f32 %v3415, 1.0
      %v3552 = vlog2.pop %v3551
      %v3553 = vmul.f32 %v3552, 0.6931472
      %v3554 = vmul.f32 -0.5, %v3415
      %v3555 = vadd.f32 %v3554, 1.0
      %v3556 = vmul.f32 %v3555, %v3415
      %v3557 = vand.u32 2147483647, %v3415
      %vm3558 = vcmp.lt.f32.partialorder %v3557, 0.0004427343
      %v3559 = vsel %vm3558, %v3556, %v3553
      %v3560 = vadd.f32 %v3336, %v3424
      %v3561 = vadd.f32 %v3337, %v3433
      %v3562 = vadd.f32 %v3338, %v3442
      %v3563 = vadd.f32 %v3339, %v3451
      %v3564 = vadd.f32 %v3340, %v3460
      %v3565 = vadd.f32 %v3341, %v3469
      %v3566 = vadd.f32 %v3342, %v3478
      %v3567 = vadd.f32 %v3343, %v3487
      %v3568 = vadd.f32 %v3344, %v3496
      %v3569 = vadd.f32 %v3345, %v3505
      %v3570 = vadd.f32 %v3346, %v3514
      %v3571 = vadd.f32 %v3347, %v3523
      %v3572 = vadd.f32 %v3348, %v3532
      %v3573 = vadd.f32 %v3349, %v3541
      %v3574 = vadd.f32 %v3350, %v3550
      %v3575 = vadd.f32 %v3351, %v3559
      %v3592 = vadd.s32 %v211, 5
      %v3593 = vperm.slane %v2926, %v3592
      %v3594 = vadd.s32 %v211, 4294967293
      %v3595 = vperm.slane %v3560, %v3594
      %vm3596 = vcmask 89112
      %v3597 = vsel %vm3596, %v3595, %v3593
      %v3598 = vperm.slane %v2927, %v3592
      %v3599 = vperm.slane %v3561, %v3594
      %v3600 = vsel %vm3596, %v3599, %v3598
      %v3601 = vperm.slane %v2928, %v3592
      %v3602 = vperm.slane %v3562, %v3594
      %v3603 = vsel %vm3596, %v3602, %v3601
      %v3604 = vperm.slane %v2929, %v3592
      %v3605 = vperm.slane %v3563, %v3594
      %v3606 = vsel %vm3596, %v3605, %v3604
      %v3607 = vperm.slane %v2930, %v3592
      %v3608 = vperm.slane %v3564, %v3594
      %v3609 = vsel %vm3596, %v3608, %v3607
      %v3610 = vperm.slane %v2931, %v3592
      %v3611 = vperm.slane %v3565, %v3594
      %v3612 = vsel %vm3596, %v3611, %v3610
      %v3613 = vperm.slane %v2932, %v3592
      %v3614 = vperm.slane %v3566, %v3594
      %v3615 = vsel %vm3596, %v3614, %v3613
      %v3616 = vperm.slane %v2933, %v3592
      %v3617 = vperm.slane %v3567, %v3594
      %v3618 = vsel %vm3596, %v3617, %v3616
      %v3619 = vperm.slane %v2934, %v3592
      %v3620 = vperm.slane %v3568, %v3594
      %v3621 = vsel %vm3596, %v3620, %v3619
      %v3622 = vperm.slane %v2935, %v3592
      %v3623 = vperm.slane %v3569, %v3594
      %v3624 = vsel %vm3596, %v3623, %v3622
      %v3625 = vperm.slane %v2936, %v3592
      %v3626 = vperm.slane %v3570, %v3594
      %v3627 = vsel %vm3596, %v3626, %v3625
      %v3628 = vperm.slane %v2937, %v3592
      %v3629 = vperm.slane %v3571, %v3594
      %v3630 = vsel %vm3596, %v3629, %v3628
      %v3631 = vperm.slane %v2938, %v3592
      %v3632 = vperm.slane %v3572, %v3594
      %v3633 = vsel %vm3596, %v3632, %v3631
      %v3634 = vperm.slane %v2939, %v3592
      %v3635 = vperm.slane %v3573, %v3594
      %v3636 = vsel %vm3596, %v3635, %v3634
      %v3637 = vperm.slane %v2940, %v3592
      %v3638 = vperm.slane %v3574, %v3594
      %v3639 = vsel %vm3596, %v3638, %v3637
      %v3640 = vperm.slane %v2941, %v3592
      %v3641 = vperm.slane %v3575, %v3594
      %v3642 = vsel %vm3596, %v3641, %v3640
      %v3643 = vsel %vm2553, %v3600, %v3597
      %v3644 = vsel %vm2556, %v3603, %v3643
      %v3645 = vsel %vm2559, %v3606, %v3644
      %v3646 = vsel %vm2562, %v3609, %v3645
      %v3647 = vsel %vm2565, %v3612, %v3646
      %v3648 = vsel %vm2568, %v3615, %v3647
      %v3649 = vsel %vm2571, %v3618, %v3648
      %v3650 = vsel %vm2553, %v3624, %v3621
      %v3651 = vsel %vm2556, %v3627, %v3650
      %v3652 = vsel %vm2559, %v3630, %v3651
      %v3653 = vsel %vm2562, %v3633, %v3652
      %v3654 = vsel %vm2565, %v3636, %v3653
      %v3655 = vsel %vm2568, %v3639, %v3654
      %v3656 = vsel %vm2571, %v3642, %v3655
      %v3659 = vmul.f32 %v736, %v3649
      %v3660 = vmul.f32 %v740, %v3656
      %vm3661 = vcmask 64512
      %v3662 = vsel %vm3661, %v3659, 0.0
      %v3663 = vsel %vm3661, %v3660, 0.0
      %v3664 = vadd.f32 %v3662, %v3663
      %3665 = vadd.xlane.f32.xlu0 %v3664
      %v3666 = vpop.xlane.xlu0 %3665
      %v3667 = vrot.slane %v3666, 4
      %v3668 = vadd.f32 %v3666, %v3667
      %v3669 = vrot.slane %v3668, 2
      %v3670 = vadd.f32 %v3668, %v3669
      %v3671 = vrot.slane %v3670, 1
      %v3672 = vadd.f32 %v3670, %v3671
      %s3673 = vtos %v3672
      %s3674 = smul.f32 %s3673, 2.5
      %s3675 = sadd.f32 %s3319, %s3674
      %p3676 = scmp.eq.s32.totalorder %s15, 0
      // Predicated region
      $region37: #{ultragcn_forward.1} parent=35 // pred_check
        %p3677 = pneg %p3676
      $region38: #{ultragcn_forward.1} parent=35 // pred_check_branch
        %3679 = sbr.rel (%p3677) target = $region40
      $region39: #{ultragcn_forward.1} parent=35 // pred_region
        %v3680 = vmul.f32 %v198, %v198
        %v3681 = vmul.f32 %v199, %v199
        %v3682 = vmul.f32 %v200, %v200
        %v3683 = vmul.f32 %v201, %v201
        %v3684 = vsel %vm224, %v3680, 0.0
        %v3685 = vsel %vm224, %v3681, 0.0
        %v3686 = vadd.f32 %v3684, %v3685
        %v3687 = vsel %vm224, %v3682, 0.0
        %v3688 = vadd.f32 %v3686, %v3687
        %v3689 = vsel %vm224, %v3683, 0.0
        %v3690 = vadd.f32 %v3688, %v3689
        %3691 = vadd.xlane.f32.xlu0 %v3690
        %v3692 = vpop.xlane.xlu0 %3691
        %v3693 = vrot.slane %v3692, 4
        %v3694 = vadd.f32 %v3692, %v3693
        %v3695 = vrot.slane %v3694, 2
        %v3696 = vadd.f32 %v3694, %v3695
        %v3697 = vrot.slane %v3696, 1
        %v3698 = vadd.f32 %v3696, %v3697
        %s3699 = vtos %v3698
        %v3700 = vmul.f32 %v202, %v202
        %v3701 = vmul.f32 %v203, %v203
        %v3702 = vmul.f32 %v204, %v204
        %v3703 = vmul.f32 %v205, %v205
        %v3704 = vmul.f32 %v206, %v206
        %v3705 = vmul.f32 %v207, %v207
        %v3706 = vmul.f32 %v208, %v208
        %v3707 = vmul.f32 %v209, %v209
        %v3708 = vsel %vm224, %v3700, 0.0
        %v3709 = vsel %vm224, %v3701, 0.0
        %v3710 = vadd.f32 %v3708, %v3709
        %v3711 = vsel %vm224, %v3702, 0.0
        %v3712 = vadd.f32 %v3710, %v3711
        %v3713 = vsel %vm224, %v3703, 0.0
        %v3714 = vadd.f32 %v3712, %v3713
        %v3715 = vsel %vm224, %v3704, 0.0
        %v3716 = vadd.f32 %v3714, %v3715
        %v3717 = vsel %vm224, %v3705, 0.0
        %v3718 = vadd.f32 %v3716, %v3717
        %v3719 = vsel %vm224, %v3706, 0.0
        %v3720 = vadd.f32 %v3718, %v3719
        %v3721 = vsel %vm224, %v3707, 0.0
        %v3722 = vadd.f32 %v3720, %v3721
        %3723 = vadd.xlane.f32.xlu0 %v3722
        %v3724 = vpop.xlane.xlu0 %3723
        %v3725 = vrot.slane %v3724, 4
        %v3726 = vadd.f32 %v3724, %v3725
        %v3727 = vrot.slane %v3726, 2
        %v3728 = vadd.f32 %v3726, %v3727
        %v3729 = vrot.slane %v3728, 1
        %v3730 = vadd.f32 %v3728, %v3729
        %s3731 = vtos %v3730
        %s3732 = sadd.f32 %s3699, %s3731
        %s3733 = smul.f32 %s3732, 0.5
        %s3734 = smul.f32 %s3733, 0.0001
        %s3735 = sadd.f32 %s3675, %s3734
        %v3736 = vstv %s3735
        %vm3737 = vcmask 0
        %3738 = vst.msk [vmem:[%s195] sm:$0x1] %vm3737, %v3736
      $region40: #{ultragcn_forward.1} parent=35 // pred_fallthru
        _
      %p3739 = scmp.gt.s32.totalorder %s15, 0
      // Predicated region
      $region41: #{ultragcn_forward.1} parent=35 // pred_check
        %p3740 = pneg %p3739
      $region42: #{ultragcn_forward.1} parent=35 // pred_check_branch
        %3742 = sbr.rel (%p3740) target = $region44
      $region43: #{ultragcn_forward.1} parent=35 // pred_region
        %v3743 = vstv %s3675
        %vm3744 = vcmask 0
        %3745 = vst.msk [vmem:[%s195] sm:$0x1] %vm3744, %v3743
      $region44: #{ultragcn_forward.1} parent=35 // pred_fallthru
        _
      %p3746 = scmp.lt.s32.totalorder %s15, 1
      %s3747 = scalar_select %p3746, %s15, 1
      %s3748 = scalar_lea.vmem %s4, %s3747
      // Predicated region
      $region45: #{ultragcn_forward.1} parent=35 // pred_check
        %p3749 = pneg %p122
      $region46: #{ultragcn_forward.1} parent=35 // pred_check_branch
        %3751 = sbr.rel (%p3749) target = $region48
      $region47: #{ultragcn_forward.1} parent=35 // pred_region
        _
      $region48: #{ultragcn_forward.1} parent=35 // pred_fallthru
        _
    $region36: #{ultragcn_forward.1} parent=5 // pred_fallthru
      _
    %p3752 = scmp.le.s32.totalorder 2, %s10
    // Predicated region
    $region49: #{ultragcn_forward.1} parent=5 // pred_check
      %p3753 = pneg %p3752
    $region50: #{ultragcn_forward.1} parent=5 // pred_check_branch
      %3755 = sbr.rel (%p3753) target = $region52
    $region51: #{ultragcn_forward.1} parent=5 // pred_region
      %s3756 = ssub.s32 %s10, 2
      // Predicated region
      $region53: #{ultragcn_forward.1} parent=51 // pred_check
        %p3757 = pneg %p128
      $region54: #{ultragcn_forward.1} parent=51 // pred_check_branch
        %3759 = sbr.rel (%p3757) target = $region56
      $region55: #{ultragcn_forward.1} parent=51 // pred_region
        %p3760 = scmp.lt.s32.totalorder %s16, 1
        %s3761 = scalar_select %p3760, %s16, 1
        %s3762 = scalar_lea.vmem %s4, %s3761
      $region56: #{ultragcn_forward.1} parent=51 // pred_fallthru
        _
    $region52: #{ultragcn_forward.1} parent=5 // pred_fallthru
      _
  $region6: #{ultragcn_forward.1} parent=0 // loop_footer
    %s14 = sadd.s32 1, %s10
  $region7: #{ultragcn_forward.1} parent=0 // loop_footer_branch
    %9 = sbr.rel target = $region3
  $region8: #{ultragcn_forward.1} parent=0 // loop_exit
    _

</llo_original>
